<compile_context>
chip_gen: v7x
topology: tpu7x:2x2x1
jax: 0.10.0
libtpu: 0.0.40
codegen_flags: <defaults>
</compile_context>

<pallas_src>
import math
from functools import partial

import jax
import jax.numpy as jnp
from jax import lax
from jax.experimental import pallas as pl
from jax.experimental.pallas import tpu as pltpu


# ----------------------------- configuration ------------------------------
IMG = 16           # img_size
PATCH = 8          # patch_size
CIN = 3            # conv input channels (fixed by the module)
D = 32             # num_hiddens
MLP_H = 64         # mlp_num_hiddens
HEADS = 4          # num_heads
BLKS = 2           # num_blks
CLASSES = 10       # num_classes
B = 2              # batch
NUM_PATCHES = (IMG // PATCH) ** 2
SEQ = NUM_PATCHES + 1        # +1 for the cls token (= 5)
SEQ_PAD = 8                  # padded to the 8-sublane granule


# --------------------------- in-kernel helpers -----------------------------
def _layer_norm(x, gamma, beta, eps=1e-5):
    # PyTorch nn.LayerNorm: biased variance over the last dim, eps=1e-5.
    mu = jnp.mean(x, axis=-1, keepdims=True)
    var = jnp.mean(jnp.square(x - mu), axis=-1, keepdims=True)
    return (x - mu) * lax.rsqrt(var + eps) * gamma + beta


def _gelu(x):
    # TODO(synk): PyTorch nn.GELU() is the exact erf-based GELU; we use the
    # tanh approximation so all transcendentals map to Mosaic-safe EUP ops.
    return jax.nn.gelu(x, approximate=True)


# ------------------------------ fused kernel --------------------------------
def vit_fused_kernel(patches_ref, pw_ref, pb_ref, cls_ref, pos_ref,
                     ln1g_ref, ln1b_ref, wqkv_ref, wo_ref,
                     ln2g_ref, ln2b_ref, w1_ref, b1_ref, w2_ref, b2_ref,
                     hg_ref, hb_ref, hw_ref, hbias_ref,
                     o_ref, xs_ref,
                     *, batch, n_patches, seq, seq_pad, d, num_heads, num_blks):
    dk = d // num_heads
    scale = 1.0 / math.sqrt(dk)

    # ---- patch embedding: (B*NP, C*p*p) @ (C*p*p, D) + b ----
    emb = jnp.dot(patches_ref[...], pw_ref[...],
                  preferred_element_type=jnp.float32) + pb_ref[...]

    # ---- assemble [cls | patch tokens | zero pad] per batch in VMEM scratch ----
    xs_ref[...] = jnp.zeros_like(xs_ref)
    for b in range(batch):                       # static unroll (B is tiny)
        base = b * seq_pad
        xs_ref[base:base + 1, :] = cls_ref[...]
        xs_ref[base + 1:base + 1 + n_patches, :] = \
            emb[b * n_patches:(b + 1) * n_patches, :]
    # pos_ref is already zero-padded to SEQ_PAD rows; tile over the batch.
    x = xs_ref[...] + jnp.concatenate([pos_ref[...]] * batch, axis=0)  # (B*S, D)

    # Key-validity mask for padded sequence positions (mask keys >= SEQ).
    key_valid = lax.broadcasted_iota(
        jnp.int32, (num_heads * batch, seq_pad, seq_pad), 2) < seq

    for blk in range(num_blks):                  # static unroll over blocks
        # ---------------- multi-head self-attention branch ----------------
        xn = _layer_norm(x, ln1g_ref[blk], ln1b_ref[blk])
        qkv = jnp.dot(xn, wqkv_ref[blk],
                      preferred_element_type=jnp.float32)       # (B*S, 3D)
        q = qkv[:, 0:d].reshape(batch, seq_pad, d)
        k = qkv[:, d:2 * d].reshape(batch, seq_pad, d)
        v = qkv[:, 2 * d:3 * d].reshape(batch, seq_pad, d)

        # Stack heads onto the batch axis: (H*B, S, dk).
        qh = jnp.concatenate(
            [q[:, :, h * dk:(h + 1) * dk] for h in range(num_heads)], axis=0)
        kh = jnp.concatenate(
            [k[:, :, h * dk:(h + 1) * dk] for h in range(num_heads)], axis=0)
        vh = jnp.concatenate(
            [v[:, :, h * dk:(h + 1) * dk] for h in range(num_heads)], axis=0)

        s = jnp.einsum('bqd,bkd->bqk', qh, kh,
                       preferred_element_type=jnp.float32) * scale  # (H*B,S,S)
        s = jnp.where(key_valid, s, jnp.float32(-1e30))
        s = s - jnp.max(s, axis=-1, keepdims=True)
        p = jnp.exp(s)
        p = p * pl.reciprocal(jnp.sum(p, axis=-1, keepdims=True), approx=True)
        ctx = jnp.einsum('bqk,bkd->bqd', p, vh,
                         preferred_element_type=jnp.float32)        # (H*B,S,dk)

        # Concat heads back along features, then one (B*S, D) @ (D, D) matmul.
        attn = jnp.concatenate(
            [ctx[h * batch:(h + 1) * batch] for h in range(num_heads)],
            axis=-1).reshape(batch * seq_pad, d)
        x = x + jnp.dot(attn, wo_ref[blk],
                        preferred_element_type=jnp.float32)         # residual 1

        # --------------------------- MLP branch ----------------------------
        xn2 = _layer_norm(x, ln2g_ref[blk], ln2b_ref[blk])
        h1 = _gelu(jnp.dot(xn2, w1_ref[blk],
                           preferred_element_type=jnp.float32) + b1_ref[blk])
        x = x + jnp.dot(h1, w2_ref[blk],
                        preferred_element_type=jnp.float32) + b2_ref[blk]

    # ------------- MLP head: LN + linear, emit only the cls rows -------------
    xh = _layer_norm(x, hg_ref[...], hb_ref[...])
    logits = jnp.dot(xh, hw_ref[...],
                     preferred_element_type=jnp.float32) + hbias_ref[...]
    for b in range(batch):
        o_ref[b:b + 1, :] = logits[b * seq_pad:b * seq_pad + 1, :]


# ------------------------------- wrapper ------------------------------------
def vit_fused(patches, params, batch):
    blocks = params["blocks"]
    pos = params["pos"][0]                                        # (SEQ, D)
    pos_pad = jnp.zeros((SEQ_PAD, D), jnp.float32).at[:SEQ, :].set(pos)
    cls = params["cls"][0]                                        # (1, D)

    kernel = partial(vit_fused_kernel, batch=batch, n_patches=NUM_PATCHES,
                     seq=SEQ, seq_pad=SEQ_PAD, d=D, num_heads=HEADS,
                     num_blks=BLKS)
    return pl.pallas_call(
        kernel,
        out_shape=jax.ShapeDtypeStruct((batch, CLASSES), jnp.float32),
        scratch_shapes=[pltpu.VMEM((batch * SEQ_PAD, D), jnp.float32)],
    )(patches, params["patch_w"], params["patch_b"], cls, pos_pad,
      blocks["ln1_g"], blocks["ln1_b"], blocks["wqkv"], blocks["wo"],
      blocks["ln2_g"], blocks["ln2_b"], blocks["w1"], blocks["b1"],
      blocks["w2"], blocks["b2"],
      params["head_g"], params["head_b"], params["head_w"],
      params["head_bias"])


def vit_forward(x_nchw, params):
    bsz, c, h, w = x_nchw.shape
    hp, wp = h // PATCH, w // PATCH
    # Patch extraction (layout glue): (B, C, H, W) -> (B*num_patches, C*p*p),
    # patch index row-major over the patch grid, channel-major inside a patch.
    patches = x_nchw.reshape(bsz, c, hp, PATCH, wp, PATCH)
    patches = patches.transpose(0, 2, 4, 1, 3, 5).reshape(
        bsz * hp * wp, c * PATCH * PATCH)
    return vit_fused(patches, params, bsz)


# ----------------------------- parameter init ------------------------------
def init_params(key):
    ks = jax.random.split(key, 5 + BLKS)
    s = 0.02
    params = {
        "patch_w": s * jax.random.normal(ks[0], (CIN * PATCH * PATCH, D), jnp.float32),
        "patch_b": s * jax.random.normal(ks[1], (1, D), jnp.float32),
        "cls": jnp.zeros((1, 1, D), jnp.float32),                  # nn.Parameter(zeros)
        "pos": jax.random.normal(ks[2], (1, SEQ, D), jnp.float32), # nn.Parameter(randn)
        "head_g": jnp.ones((1, D), jnp.float32),
        "head_b": jnp.zeros((1, D), jnp.float32),
        "head_w": s * jax.random.normal(ks[3], (D, CLASSES), jnp.float32),
        "head_bias": s * jax.random.normal(ks[4], (1, CLASSES), jnp.float32),
    }
    wqkv, wo, w1, b1, w2, b2 = [], [], [], [], [], []
    for i in range(BLKS):
        bk = jax.random.split(ks[5 + i], 8)
        wq = s * jax.random.normal(bk[0], (D, D), jnp.float32)
        wk = s * jax.random.normal(bk[1], (D, D), jnp.float32)
        wv = s * jax.random.normal(bk[2], (D, D), jnp.float32)
        wqkv.append(jnp.concatenate([wq, wk, wv], axis=1))  # fused (D, 3D)
        wo.append(s * jax.random.normal(bk[3], (D, D), jnp.float32))
        w1.append(s * jax.random.normal(bk[4], (D, MLP_H), jnp.float32))
        b1.append(s * jax.random.normal(bk[5], (1, MLP_H), jnp.float32))
        w2.append(s * jax.random.normal(bk[6], (MLP_H, D), jnp.float32))
        b2.append(s * jax.random.normal(bk[7], (1, D), jnp.float32))
    params["blocks"] = dict(
        ln1_g=jnp.ones((BLKS, 1, D), jnp.float32),
        ln1_b=jnp.zeros((BLKS, 1, D), jnp.float32),
        wqkv=jnp.stack(wqkv), wo=jnp.stack(wo),
        ln2_g=jnp.ones((BLKS, 1, D), jnp.float32),
        ln2_b=jnp.zeros((BLKS, 1, D), jnp.float32),
        w1=jnp.stack(w1), b1=jnp.stack(b1),
        w2=jnp.stack(w2), b2=jnp.stack(b2),
    )
    return params


# --------------------------------- main --------------------------------------
if __name__ == "__main__":
    key = jax.random.PRNGKey(0)
    k_x, k_p = jax.random.split(key)
    x = jax.random.normal(k_x, (B, CIN, IMG, IMG), jnp.float32)   # NCHW input
    params = init_params(k_p)

    fwd = jax.jit(vit_forward)
    logits = jax.block_until_ready(fwd(x, params))
    assert logits.shape == (B, CLASSES), logits.shape
    assert bool(jnp.all(jnp.isfinite(logits)))
    print("KERNEL_OK")
</pallas_src>

<mosaic_0001>
module attributes {stable_mosaic.version = 11 : i64} {
  func.func @vit_fused_kernel(%arg0: memref<8x192xf32, #tpu.memory_space<vmem>>, %arg1: memref<192x32xf32, #tpu.memory_space<vmem>>, %arg2: memref<1x32xf32, #tpu.memory_space<vmem>>, %arg3: memref<1x32xf32, #tpu.memory_space<vmem>>, %arg4: memref<8x32xf32, #tpu.memory_space<vmem>>, %arg5: memref<2x1x32xf32, #tpu.memory_space<vmem>>, %arg6: memref<2x1x32xf32, #tpu.memory_space<vmem>>, %arg7: memref<2x32x96xf32, #tpu.memory_space<vmem>>, %arg8: memref<2x32x32xf32, #tpu.memory_space<vmem>>, %arg9: memref<2x1x32xf32, #tpu.memory_space<vmem>>, %arg10: memref<2x1x32xf32, #tpu.memory_space<vmem>>, %arg11: memref<2x32x64xf32, #tpu.memory_space<vmem>>, %arg12: memref<2x1x64xf32, #tpu.memory_space<vmem>>, %arg13: memref<2x64x32xf32, #tpu.memory_space<vmem>>, %arg14: memref<2x1x32xf32, #tpu.memory_space<vmem>>, %arg15: memref<1x32xf32, #tpu.memory_space<vmem>>, %arg16: memref<1x32xf32, #tpu.memory_space<vmem>>, %arg17: memref<32x10xf32, #tpu.memory_space<vmem>>, %arg18: memref<1x10xf32, #tpu.memory_space<vmem>>, %arg19: memref<2x10xf32, #tpu.memory_space<vmem>>, %arg20: memref<16x32xf32, #tpu.memory_space<vmem>>) attributes {dimension_semantics = [], scalar_prefetch = 0 : i64, scratch_operands = 1 : i64, tpu.core_type = #tpu.core_type<tc>} {
    %c0 = arith.constant 0 : index
    %c0_0 = arith.constant 0 : index
    %0 = vector.load %arg0[%c0, %c0_0] : memref<8x192xf32, #tpu.memory_space<vmem>>, vector<8x192xf32>
    %c0_1 = arith.constant 0 : index
    %c0_2 = arith.constant 0 : index
    %1 = vector.load %arg1[%c0_1, %c0_2] : memref<192x32xf32, #tpu.memory_space<vmem>>, vector<192x32xf32>
    %cst = arith.constant dense<0.000000e+00> : vector<8x32xf32>
    %2 = tpu.matmul %0, %1, %cst {dimension_numbers = #tpu.dot_dimension_numbers<[1], [0], [0], [1], [0, 0, 1, 1], [], []>} : vector<8x192xf32>, vector<192x32xf32>, vector<8x32xf32> -> vector<8x32xf32>
    %c0_3 = arith.constant 0 : index
    %c0_4 = arith.constant 0 : index
    %3 = vector.load %arg2[%c0_3, %c0_4] : memref<1x32xf32, #tpu.memory_space<vmem>>, vector<1x32xf32>
    %4 = vector.broadcast %3 : vector<1x32xf32> to vector<8x32xf32>
    %5 = arith.addf %2, %4 : vector<8x32xf32>
    %cst_5 = arith.constant 0.000000e+00 : f32
    %6 = vector.broadcast %cst_5 : f32 to vector<16x32xf32>
    %c0_6 = arith.constant 0 : index
    %c0_7 = arith.constant 0 : index
    %7 = vector.load %arg20[%c0_6, %c0_7] : memref<16x32xf32, #tpu.memory_space<vmem>>, vector<16x32xf32>
    tpu.vector_store %arg20[%c0_6, %c0_7], %6 {strides = array<i32>} : memref<16x32xf32, #tpu.memory_space<vmem>>, vector<16x32xf32>,
    %c0_8 = arith.constant 0 : index
    %c0_9 = arith.constant 0 : index
    %8 = vector.load %arg3[%c0_8, %c0_9] : memref<1x32xf32, #tpu.memory_space<vmem>>, vector<1x32xf32>
    %c0_10 = arith.constant 0 : index
    %c0_11 = arith.constant 0 : index
    %9 = vector.load %arg20[%c0_10, %c0_11] : memref<16x32xf32, #tpu.memory_space<vmem>>, vector<1x32xf32>
    tpu.vector_store %arg20[%c0_10, %c0_11], %8 {strides = array<i32>} : memref<16x32xf32, #tpu.memory_space<vmem>>, vector<1x32xf32>,
    %10 = vector.extract_strided_slice %5 {offsets = [0, 0], sizes = [4, 32], strides = [1, 1]} : vector<8x32xf32> to vector<4x32xf32>
    %c1 = arith.constant 1 : index
    %c0_12 = arith.constant 0 : index
    %11 = vector.load %arg20[%c1, %c0_12] : memref<16x32xf32, #tpu.memory_space<vmem>>, vector<4x32xf32>
    tpu.vector_store %arg20[%c1, %c0_12], %10 {strides = array<i32>} : memref<16x32xf32, #tpu.memory_space<vmem>>, vector<4x32xf32>,
    %c0_13 = arith.constant 0 : index
    %c0_14 = arith.constant 0 : index
    %12 = vector.load %arg3[%c0_13, %c0_14] : memref<1x32xf32, #tpu.memory_space<vmem>>, vector<1x32xf32>
    %c8 = arith.constant 8 : index
    %c0_15 = arith.constant 0 : index
    %13 = vector.load %arg20[%c8, %c0_15] : memref<16x32xf32, #tpu.memory_space<vmem>>, vector<1x32xf32>
    tpu.vector_store %arg20[%c8, %c0_15], %12 {strides = array<i32>} : memref<16x32xf32, #tpu.memory_space<vmem>>, vector<1x32xf32>,
    %14 = vector.extract_strided_slice %5 {offsets = [4, 0], sizes = [4, 32], strides = [1, 1]} : vector<8x32xf32> to vector<4x32xf32>
    %c9 = arith.constant 9 : index
    %c0_16 = arith.constant 0 : index
    %15 = vector.load %arg20[%c9, %c0_16] : memref<16x32xf32, #tpu.memory_space<vmem>>, vector<4x32xf32>
    tpu.vector_store %arg20[%c9, %c0_16], %14 {strides = array<i32>} : memref<16x32xf32, #tpu.memory_space<vmem>>, vector<4x32xf32>,
    %c0_17 = arith.constant 0 : index
    %c0_18 = arith.constant 0 : index
    %16 = vector.load %arg20[%c0_17, %c0_18] : memref<16x32xf32, #tpu.memory_space<vmem>>, vector<16x32xf32>
    %c0_19 = arith.constant 0 : index
    %c0_20 = arith.constant 0 : index
    %17 = vector.load %arg4[%c0_19, %c0_20] : memref<8x32xf32, #tpu.memory_space<vmem>>, vector<8x32xf32>
    %18 = tpu.concatenate %17, %17 in 0 : vector<8x32xf32>, vector<8x32xf32> -> vector<16x32xf32>
    %19 = arith.addf %16, %18 : vector<16x32xf32>
    %20 = tpu.iota {dimensions = array<i32: 2>} : vector<8x8x8xi32>
    %c5_i32 = arith.constant 5 : i32
    %21 = vector.broadcast %c5_i32 : i32 to vector<8x8x8xi32>
    %22 = arith.cmpi slt, %20, %21 : vector<8x8x8xi32>
    %c0_21 = arith.constant 0 : index
    %c0_22 = arith.constant 0 : index
    %c0_23 = arith.constant 0 : index
    %23 = vector.load %arg5[%c0_21, %c0_22, %c0_23] : memref<2x1x32xf32, #tpu.memory_space<vmem>>, vector<1x1x32xf32>
    %24 = vector.shape_cast %23 : vector<1x1x32xf32> to vector<1x32xf32>
    %c0_24 = arith.constant 0 : index
    %c0_25 = arith.constant 0 : index
    %c0_26 = arith.constant 0 : index
    %25 = vector.load %arg6[%c0_24, %c0_25, %c0_26] : memref<2x1x32xf32, #tpu.memory_space<vmem>>, vector<1x1x32xf32>
    %26 = vector.shape_cast %25 : vector<1x1x32xf32> to vector<1x32xf32>
    %cst_27 = arith.constant dense<0.000000e+00> : vector<16xf32>
    %27 = vector.multi_reduction <add>, %19, %cst_27 [1] : vector<16x32xf32> to vector<16xf32>
    %28 = vector.shape_cast %27 : vector<16xf32> to vector<16x1xf32>
    %cst_28 = arith.constant 3.200000e+01 : f32
    %29 = vector.broadcast %cst_28 : f32 to vector<16x1xf32>
    %30 = arith.divf %28, %29 : vector<16x1xf32>
    %31 = vector.broadcast %30 : vector<16x1xf32> to vector<16x32xf32>
    %32 = arith.subf %19, %31 : vector<16x32xf32>
    %33 = arith.mulf %32, %32 : vector<16x32xf32>
    %cst_29 = arith.constant dense<0.000000e+00> : vector<16xf32>
    %34 = vector.multi_reduction <add>, %33, %cst_29 [1] : vector<16x32xf32> to vector<16xf32>
    %35 = vector.shape_cast %34 : vector<16xf32> to vector<16x1xf32>
    %cst_30 = arith.constant 3.200000e+01 : f32
    %36 = vector.broadcast %cst_30 : f32 to vector<16x1xf32>
    %37 = arith.divf %35, %36 : vector<16x1xf32>
    %38 = vector.broadcast %30 : vector<16x1xf32> to vector<16x32xf32>
    %39 = arith.subf %19, %38 : vector<16x32xf32>
    %cst_31 = arith.constant 9.99999974E-6 : f32
    %40 = vector.broadcast %cst_31 : f32 to vector<16x1xf32>
    %41 = arith.addf %37, %40 : vector<16x1xf32>
    %42 = math.rsqrt %41 : vector<16x1xf32>
    %43 = vector.broadcast %42 : vector<16x1xf32> to vector<16x32xf32>
    %44 = arith.mulf %39, %43 : vector<16x32xf32>
    %45 = vector.broadcast %24 : vector<1x32xf32> to vector<16x32xf32>
    %46 = arith.mulf %44, %45 : vector<16x32xf32>
    %47 = vector.broadcast %26 : vector<1x32xf32> to vector<16x32xf32>
    %48 = arith.addf %46, %47 : vector<16x32xf32>
    %c0_32 = arith.constant 0 : index
    %c0_33 = arith.constant 0 : index
    %c0_34 = arith.constant 0 : index
    %49 = vector.load %arg7[%c0_32, %c0_33, %c0_34] : memref<2x32x96xf32, #tpu.memory_space<vmem>>, vector<1x32x96xf32>
    %50 = vector.shape_cast %49 : vector<1x32x96xf32> to vector<32x96xf32>
    %cst_35 = arith.constant dense<0.000000e+00> : vector<16x96xf32>
    %51 = tpu.matmul %48, %50, %cst_35 {dimension_numbers = #tpu.dot_dimension_numbers<[1], [0], [0], [1], [0, 0, 1, 1], [], []>} : vector<16x32xf32>, vector<32x96xf32>, vector<16x96xf32> -> vector<16x96xf32>
    %52 = vector.extract_strided_slice %51 {offsets = [0, 0], sizes = [16, 32], strides = [1, 1]} : vector<16x96xf32> to vector<16x32xf32>
    %53 = vector.shape_cast %52 : vector<16x32xf32> to vector<2x8x32xf32>
    %54 = vector.extract_strided_slice %51 {offsets = [0, 32], sizes = [16, 32], strides = [1, 1]} : vector<16x96xf32> to vector<16x32xf32>
    %55 = vector.shape_cast %54 : vector<16x32xf32> to vector<2x8x32xf32>
    %56 = vector.extract_strided_slice %51 {offsets = [0, 64], sizes = [16, 32], strides = [1, 1]} : vector<16x96xf32> to vector<16x32xf32>
    %57 = vector.shape_cast %56 : vector<16x32xf32> to vector<2x8x32xf32>
    %58 = vector.extract_strided_slice %53 {offsets = [0, 0, 0], sizes = [2, 8, 8], strides = [1, 1, 1]} : vector<2x8x32xf32> to vector<2x8x8xf32>
    %59 = vector.extract_strided_slice %53 {offsets = [0, 0, 8], sizes = [2, 8, 8], strides = [1, 1, 1]} : vector<2x8x32xf32> to vector<2x8x8xf32>
    %60 = vector.extract_strided_slice %53 {offsets = [0, 0, 16], sizes = [2, 8, 8], strides = [1, 1, 1]} : vector<2x8x32xf32> to vector<2x8x8xf32>
    %61 = vector.extract_strided_slice %53 {offsets = [0, 0, 24], sizes = [2, 8, 8], strides = [1, 1, 1]} : vector<2x8x32xf32> to vector<2x8x8xf32>
    %62 = tpu.concatenate %58, %59, %60, %61 in 0 : vector<2x8x8xf32>, vector<2x8x8xf32>, vector<2x8x8xf32>, vector<2x8x8xf32> -> vector<8x8x8xf32>
    %63 = vector.extract_strided_slice %55 {offsets = [0, 0, 0], sizes = [2, 8, 8], strides = [1, 1, 1]} : vector<2x8x32xf32> to vector<2x8x8xf32>
    %64 = vector.extract_strided_slice %55 {offsets = [0, 0, 8], sizes = [2, 8, 8], strides = [1, 1, 1]} : vector<2x8x32xf32> to vector<2x8x8xf32>
    %65 = vector.extract_strided_slice %55 {offsets = [0, 0, 16], sizes = [2, 8, 8], strides = [1, 1, 1]} : vector<2x8x32xf32> to vector<2x8x8xf32>
    %66 = vector.extract_strided_slice %55 {offsets = [0, 0, 24], sizes = [2, 8, 8], strides = [1, 1, 1]} : vector<2x8x32xf32> to vector<2x8x8xf32>
    %67 = tpu.concatenate %63, %64, %65, %66 in 0 : vector<2x8x8xf32>, vector<2x8x8xf32>, vector<2x8x8xf32>, vector<2x8x8xf32> -> vector<8x8x8xf32>
    %68 = vector.extract_strided_slice %57 {offsets = [0, 0, 0], sizes = [2, 8, 8], strides = [1, 1, 1]} : vector<2x8x32xf32> to vector<2x8x8xf32>
    %69 = vector.extract_strided_slice %57 {offsets = [0, 0, 8], sizes = [2, 8, 8], strides = [1, 1, 1]} : vector<2x8x32xf32> to vector<2x8x8xf32>
    %70 = vector.extract_strided_slice %57 {offsets = [0, 0, 16], sizes = [2, 8, 8], strides = [1, 1, 1]} : vector<2x8x32xf32> to vector<2x8x8xf32>
    %71 = vector.extract_strided_slice %57 {offsets = [0, 0, 24], sizes = [2, 8, 8], strides = [1, 1, 1]} : vector<2x8x32xf32> to vector<2x8x8xf32>
    %72 = tpu.concatenate %68, %69, %70, %71 in 0 : vector<2x8x8xf32>, vector<2x8x8xf32>, vector<2x8x8xf32>, vector<2x8x8xf32> -> vector<8x8x8xf32>
    "tpu.trace_start"() <{level = 10 : i32, message = "bqd,bkd->bqk"}> : () -> ()
    %cst_36 = arith.constant dense<0.000000e+00> : vector<8x8x8xf32>
    %73 = tpu.matmul %62, %67, %cst_36 {dimension_numbers = #tpu.dot_dimension_numbers<[2], [2], [1], [1], [0, 0, 0, 1, 1, 1], [0], [0]>} : vector<8x8x8xf32>, vector<8x8x8xf32>, vector<8x8x8xf32> -> vector<8x8x8xf32>
    "tpu.trace_stop"() : () -> ()
    %cst_37 = arith.constant 0.353553385 : f32
    %74 = vector.broadcast %cst_37 : f32 to vector<8x8x8xf32>
    %75 = arith.mulf %73, %74 : vector<8x8x8xf32>
    %cst_38 = arith.constant -1.000000e+30 : f32
    %76 = vector.broadcast %cst_38 : f32 to vector<8x8x8xf32>
    %77 = arith.select %22, %75, %76 : vector<8x8x8xi1>, vector<8x8x8xf32>
    %cst_39 = arith.constant dense<0xFF800000> : vector<8x8xf32>
    %78 = vector.multi_reduction <maximumf>, %77, %cst_39 [2] : vector<8x8x8xf32> to vector<8x8xf32>
    %79 = vector.shape_cast %78 : vector<8x8xf32> to vector<8x8x1xf32>
    %80 = vector.broadcast %79 : vector<8x8x1xf32> to vector<8x8x8xf32>
    %81 = arith.subf %77, %80 : vector<8x8x8xf32>
    %82 = math.exp %81 : vector<8x8x8xf32>
    %cst_40 = arith.constant dense<0.000000e+00> : vector<8x8xf32>
    %83 = vector.multi_reduction <add>, %82, %cst_40 [2] : vector<8x8x8xf32> to vector<8x8xf32>
    %84 = vector.shape_cast %83 : vector<8x8xf32> to vector<8x8x1xf32>
    %85 = tpu.reciprocal %84 {approx = true} : vector<8x8x1xf32> -> vector<8x8x1xf32>
    %86 = vector.broadcast %85 : vector<8x8x1xf32> to vector<8x8x8xf32>
    %87 = arith.mulf %82, %86 : vector<8x8x8xf32>
    "tpu.trace_start"() <{level = 10 : i32, message = "bqk,bkd->bqd"}> : () -> ()
    %cst_41 = arith.constant dense<0.000000e+00> : vector<8x8x8xf32>
    %88 = tpu.matmul %87, %72, %cst_41 {dimension_numbers = #tpu.dot_dimension_numbers<[2], [1], [1], [2], [0, 0, 0, 1, 1, 2], [0], [0]>} : vector<8x8x8xf32>, vector<8x8x8xf32>, vector<8x8x8xf32> -> vector<8x8x8xf32>
    "tpu.trace_stop"() : () -> ()
    %89 = vector.extract_strided_slice %88 {offsets = [0, 0, 0], sizes = [2, 8, 8], strides = [1, 1, 1]} : vector<8x8x8xf32> to vector<2x8x8xf32>
    %90 = vector.extract_strided_slice %88 {offsets = [2, 0, 0], sizes = [2, 8, 8], strides = [1, 1, 1]} : vector<8x8x8xf32> to vector<2x8x8xf32>
    %91 = vector.extract_strided_slice %88 {offsets = [4, 0, 0], sizes = [2, 8, 8], strides = [1, 1, 1]} : vector<8x8x8xf32> to vector<2x8x8xf32>
    %92 = vector.extract_strided_slice %88 {offsets = [6, 0, 0], sizes = [2, 8, 8], strides = [1, 1, 1]} : vector<8x8x8xf32> to vector<2x8x8xf32>
    %93 = tpu.concatenate %89, %90, %91, %92 in 2 : vector<2x8x8xf32>, vector<2x8x8xf32>, vector<2x8x8xf32>, vector<2x8x8xf32> -> vector<2x8x32xf32>
    %94 = vector.shape_cast %93 : vector<2x8x32xf32> to vector<16x32xf32>
    %c0_42 = arith.constant 0 : index
    %c0_43 = arith.constant 0 : index
    %c0_44 = arith.constant 0 : index
    %95 = vector.load %arg8[%c0_42, %c0_43, %c0_44] : memref<2x32x32xf32, #tpu.memory_space<vmem>>, vector<1x32x32xf32>
    %96 = vector.shape_cast %95 : vector<1x32x32xf32> to vector<32x32xf32>
    %cst_45 = arith.constant dense<0.000000e+00> : vector<16x32xf32>
    %97 = tpu.matmul %94, %96, %cst_45 {dimension_numbers = #tpu.dot_dimension_numbers<[1], [0], [0], [1], [0, 0, 1, 1], [], []>} : vector<16x32xf32>, vector<32x32xf32>, vector<16x32xf32> -> vector<16x32xf32>
    %98 = arith.addf %19, %97 : vector<16x32xf32>
    %c0_46 = arith.constant 0 : index
    %c0_47 = arith.constant 0 : index
    %c0_48 = arith.constant 0 : index
    %99 = vector.load %arg9[%c0_46, %c0_47, %c0_48] : memref<2x1x32xf32, #tpu.memory_space<vmem>>, vector<1x1x32xf32>
    %100 = vector.shape_cast %99 : vector<1x1x32xf32> to vector<1x32xf32>
    %c0_49 = arith.constant 0 : index
    %c0_50 = arith.constant 0 : index
    %c0_51 = arith.constant 0 : index
    %101 = vector.load %arg10[%c0_49, %c0_50, %c0_51] : memref<2x1x32xf32, #tpu.memory_space<vmem>>, vector<1x1x32xf32>
    %102 = vector.shape_cast %101 : vector<1x1x32xf32> to vector<1x32xf32>
    %cst_52 = arith.constant dense<0.000000e+00> : vector<16xf32>
    %103 = vector.multi_reduction <add>, %98, %cst_52 [1] : vector<16x32xf32> to vector<16xf32>
    %104 = vector.shape_cast %103 : vector<16xf32> to vector<16x1xf32>
    %cst_53 = arith.constant 3.200000e+01 : f32
    %105 = vector.broadcast %cst_53 : f32 to vector<16x1xf32>
    %106 = arith.divf %104, %105 : vector<16x1xf32>
    %107 = vector.broadcast %106 : vector<16x1xf32> to vector<16x32xf32>
    %108 = arith.subf %98, %107 : vector<16x32xf32>
    %109 = arith.mulf %108, %108 : vector<16x32xf32>
    %cst_54 = arith.constant dense<0.000000e+00> : vector<16xf32>
    %110 = vector.multi_reduction <add>, %109, %cst_54 [1] : vector<16x32xf32> to vector<16xf32>
    %111 = vector.shape_cast %110 : vector<16xf32> to vector<16x1xf32>
    %cst_55 = arith.constant 3.200000e+01 : f32
    %112 = vector.broadcast %cst_55 : f32 to vector<16x1xf32>
    %113 = arith.divf %111, %112 : vector<16x1xf32>
    %114 = vector.broadcast %106 : vector<16x1xf32> to vector<16x32xf32>
    %115 = arith.subf %98, %114 : vector<16x32xf32>
    %cst_56 = arith.constant 9.99999974E-6 : f32
    %116 = vector.broadcast %cst_56 : f32 to vector<16x1xf32>
    %117 = arith.addf %113, %116 : vector<16x1xf32>
    %118 = math.rsqrt %117 : vector<16x1xf32>
    %119 = vector.broadcast %118 : vector<16x1xf32> to vector<16x32xf32>
    %120 = arith.mulf %115, %119 : vector<16x32xf32>
    %121 = vector.broadcast %100 : vector<1x32xf32> to vector<16x32xf32>
    %122 = arith.mulf %120, %121 : vector<16x32xf32>
    %123 = vector.broadcast %102 : vector<1x32xf32> to vector<16x32xf32>
    %124 = arith.addf %122, %123 : vector<16x32xf32>
    %c0_57 = arith.constant 0 : index
    %c0_58 = arith.constant 0 : index
    %c0_59 = arith.constant 0 : index
    %125 = vector.load %arg11[%c0_57, %c0_58, %c0_59] : memref<2x32x64xf32, #tpu.memory_space<vmem>>, vector<1x32x64xf32>
    %126 = vector.shape_cast %125 : vector<1x32x64xf32> to vector<32x64xf32>
    %cst_60 = arith.constant dense<0.000000e+00> : vector<16x64xf32>
    %127 = tpu.matmul %124, %126, %cst_60 {dimension_numbers = #tpu.dot_dimension_numbers<[1], [0], [0], [1], [0, 0, 1, 1], [], []>} : vector<16x32xf32>, vector<32x64xf32>, vector<16x64xf32> -> vector<16x64xf32>
    %c0_61 = arith.constant 0 : index
    %c0_62 = arith.constant 0 : index
    %c0_63 = arith.constant 0 : index
    %128 = vector.load %arg12[%c0_61, %c0_62, %c0_63] : memref<2x1x64xf32, #tpu.memory_space<vmem>>, vector<1x1x64xf32>
    %129 = vector.shape_cast %128 : vector<1x1x64xf32> to vector<1x64xf32>
    %130 = vector.broadcast %129 : vector<1x64xf32> to vector<16x64xf32>
    %131 = arith.addf %127, %130 : vector<16x64xf32>
    %132 = arith.mulf %131, %131 : vector<16x64xf32>
    %133 = arith.mulf %131, %132 : vector<16x64xf32>
    %cst_64 = arith.constant 4.471500e-02 : f32
    %134 = vector.broadcast %cst_64 : f32 to vector<16x64xf32>
    %135 = arith.mulf %134, %133 : vector<16x64xf32>
    %136 = arith.addf %131, %135 : vector<16x64xf32>
    %cst_65 = arith.constant 0.797884583 : f32
    %137 = vector.broadcast %cst_65 : f32 to vector<16x64xf32>
    %138 = arith.mulf %137, %136 : vector<16x64xf32>
    %139 = math.tanh %138 : vector<16x64xf32>
    %cst_66 = arith.constant 1.000000e+00 : f32
    %140 = vector.broadcast %cst_66 : f32 to vector<16x64xf32>
    %141 = arith.addf %140, %139 : vector<16x64xf32>
    %cst_67 = arith.constant 5.000000e-01 : f32
    %142 = vector.broadcast %cst_67 : f32 to vector<16x64xf32>
    %143 = arith.mulf %142, %141 : vector<16x64xf32>
    %144 = arith.mulf %131, %143 : vector<16x64xf32>
    %c0_68 = arith.constant 0 : index
    %c0_69 = arith.constant 0 : index
    %c0_70 = arith.constant 0 : index
    %145 = vector.load %arg13[%c0_68, %c0_69, %c0_70] : memref<2x64x32xf32, #tpu.memory_space<vmem>>, vector<1x64x32xf32>
    %146 = vector.shape_cast %145 : vector<1x64x32xf32> to vector<64x32xf32>
    %cst_71 = arith.constant dense<0.000000e+00> : vector<16x32xf32>
    %147 = tpu.matmul %144, %146, %cst_71 {dimension_numbers = #tpu.dot_dimension_numbers<[1], [0], [0], [1], [0, 0, 1, 1], [], []>} : vector<16x64xf32>, vector<64x32xf32>, vector<16x32xf32> -> vector<16x32xf32>
    %148 = arith.addf %98, %147 : vector<16x32xf32>
    %c0_72 = arith.constant 0 : index
    %c0_73 = arith.constant 0 : index
    %c0_74 = arith.constant 0 : index
    %149 = vector.load %arg14[%c0_72, %c0_73, %c0_74] : memref<2x1x32xf32, #tpu.memory_space<vmem>>, vector<1x1x32xf32>
    %150 = vector.shape_cast %149 : vector<1x1x32xf32> to vector<1x32xf32>
    %151 = vector.broadcast %150 : vector<1x32xf32> to vector<16x32xf32>
    %152 = arith.addf %148, %151 : vector<16x32xf32>
    %c1_75 = arith.constant 1 : index
    %c0_76 = arith.constant 0 : index
    %c0_77 = arith.constant 0 : index
    %153 = vector.load %arg5[%c1_75, %c0_76, %c0_77] : memref<2x1x32xf32, #tpu.memory_space<vmem>>, vector<1x1x32xf32>
    %154 = vector.shape_cast %153 : vector<1x1x32xf32> to vector<1x32xf32>
    %c1_78 = arith.constant 1 : index
    %c0_79 = arith.constant 0 : index
    %c0_80 = arith.constant 0 : index
    %155 = vector.load %arg6[%c1_78, %c0_79, %c0_80] : memref<2x1x32xf32, #tpu.memory_space<vmem>>, vector<1x1x32xf32>
    %156 = vector.shape_cast %155 : vector<1x1x32xf32> to vector<1x32xf32>
    %cst_81 = arith.constant dense<0.000000e+00> : vector<16xf32>
    %157 = vector.multi_reduction <add>, %152, %cst_81 [1] : vector<16x32xf32> to vector<16xf32>
    %158 = vector.shape_cast %157 : vector<16xf32> to vector<16x1xf32>
    %cst_82 = arith.constant 3.200000e+01 : f32
    %159 = vector.broadcast %cst_82 : f32 to vector<16x1xf32>
    %160 = arith.divf %158, %159 : vector<16x1xf32>
    %161 = vector.broadcast %160 : vector<16x1xf32> to vector<16x32xf32>
    %162 = arith.subf %152, %161 : vector<16x32xf32>
    %163 = arith.mulf %162, %162 : vector<16x32xf32>
    %cst_83 = arith.constant dense<0.000000e+00> : vector<16xf32>
    %164 = vector.multi_reduction <add>, %163, %cst_83 [1] : vector<16x32xf32> to vector<16xf32>
    %165 = vector.shape_cast %164 : vector<16xf32> to vector<16x1xf32>
    %cst_84 = arith.constant 3.200000e+01 : f32
    %166 = vector.broadcast %cst_84 : f32 to vector<16x1xf32>
    %167 = arith.divf %165, %166 : vector<16x1xf32>
    %168 = vector.broadcast %160 : vector<16x1xf32> to vector<16x32xf32>
    %169 = arith.subf %152, %168 : vector<16x32xf32>
    %cst_85 = arith.constant 9.99999974E-6 : f32
    %170 = vector.broadcast %cst_85 : f32 to vector<16x1xf32>
    %171 = arith.addf %167, %170 : vector<16x1xf32>
    %172 = math.rsqrt %171 : vector<16x1xf32>
    %173 = vector.broadcast %172 : vector<16x1xf32> to vector<16x32xf32>
    %174 = arith.mulf %169, %173 : vector<16x32xf32>
    %175 = vector.broadcast %154 : vector<1x32xf32> to vector<16x32xf32>
    %176 = arith.mulf %174, %175 : vector<16x32xf32>
    %177 = vector.broadcast %156 : vector<1x32xf32> to vector<16x32xf32>
    %178 = arith.addf %176, %177 : vector<16x32xf32>
    %c1_86 = arith.constant 1 : index
    %c0_87 = arith.constant 0 : index
    %c0_88 = arith.constant 0 : index
    %179 = vector.load %arg7[%c1_86, %c0_87, %c0_88] : memref<2x32x96xf32, #tpu.memory_space<vmem>>, vector<1x32x96xf32>
    %180 = vector.shape_cast %179 : vector<1x32x96xf32> to vector<32x96xf32>
    %cst_89 = arith.constant dense<0.000000e+00> : vector<16x96xf32>
    %181 = tpu.matmul %178, %180, %cst_89 {dimension_numbers = #tpu.dot_dimension_numbers<[1], [0], [0], [1], [0, 0, 1, 1], [], []>} : vector<16x32xf32>, vector<32x96xf32>, vector<16x96xf32> -> vector<16x96xf32>
    %182 = vector.extract_strided_slice %181 {offsets = [0, 0], sizes = [16, 32], strides = [1, 1]} : vector<16x96xf32> to vector<16x32xf32>
    %183 = vector.shape_cast %182 : vector<16x32xf32> to vector<2x8x32xf32>
    %184 = vector.extract_strided_slice %181 {offsets = [0, 32], sizes = [16, 32], strides = [1, 1]} : vector<16x96xf32> to vector<16x32xf32>
    %185 = vector.shape_cast %184 : vector<16x32xf32> to vector<2x8x32xf32>
    %186 = vector.extract_strided_slice %181 {offsets = [0, 64], sizes = [16, 32], strides = [1, 1]} : vector<16x96xf32> to vector<16x32xf32>
    %187 = vector.shape_cast %186 : vector<16x32xf32> to vector<2x8x32xf32>
    %188 = vector.extract_strided_slice %183 {offsets = [0, 0, 0], sizes = [2, 8, 8], strides = [1, 1, 1]} : vector<2x8x32xf32> to vector<2x8x8xf32>
    %189 = vector.extract_strided_slice %183 {offsets = [0, 0, 8], sizes = [2, 8, 8], strides = [1, 1, 1]} : vector<2x8x32xf32> to vector<2x8x8xf32>
    %190 = vector.extract_strided_slice %183 {offsets = [0, 0, 16], sizes = [2, 8, 8], strides = [1, 1, 1]} : vector<2x8x32xf32> to vector<2x8x8xf32>
    %191 = vector.extract_strided_slice %183 {offsets = [0, 0, 24], sizes = [2, 8, 8], strides = [1, 1, 1]} : vector<2x8x32xf32> to vector<2x8x8xf32>
    %192 = tpu.concatenate %188, %189, %190, %191 in 0 : vector<2x8x8xf32>, vector<2x8x8xf32>, vector<2x8x8xf32>, vector<2x8x8xf32> -> vector<8x8x8xf32>
    %193 = vector.extract_strided_slice %185 {offsets = [0, 0, 0], sizes = [2, 8, 8], strides = [1, 1, 1]} : vector<2x8x32xf32> to vector<2x8x8xf32>
    %194 = vector.extract_strided_slice %185 {offsets = [0, 0, 8], sizes = [2, 8, 8], strides = [1, 1, 1]} : vector<2x8x32xf32> to vector<2x8x8xf32>
    %195 = vector.extract_strided_slice %185 {offsets = [0, 0, 16], sizes = [2, 8, 8], strides = [1, 1, 1]} : vector<2x8x32xf32> to vector<2x8x8xf32>
    %196 = vector.extract_strided_slice %185 {offsets = [0, 0, 24], sizes = [2, 8, 8], strides = [1, 1, 1]} : vector<2x8x32xf32> to vector<2x8x8xf32>
    %197 = tpu.concatenate %193, %194, %195, %196 in 0 : vector<2x8x8xf32>, vector<2x8x8xf32>, vector<2x8x8xf32>, vector<2x8x8xf32> -> vector<8x8x8xf32>
    %198 = vector.extract_strided_slice %187 {offsets = [0, 0, 0], sizes = [2, 8, 8], strides = [1, 1, 1]} : vector<2x8x32xf32> to vector<2x8x8xf32>
    %199 = vector.extract_strided_slice %187 {offsets = [0, 0, 8], sizes = [2, 8, 8], strides = [1, 1, 1]} : vector<2x8x32xf32> to vector<2x8x8xf32>
    %200 = vector.extract_strided_slice %187 {offsets = [0, 0, 16], sizes = [2, 8, 8], strides = [1, 1, 1]} : vector<2x8x32xf32> to vector<2x8x8xf32>
    %201 = vector.extract_strided_slice %187 {offsets = [0, 0, 24], sizes = [2, 8, 8], strides = [1, 1, 1]} : vector<2x8x32xf32> to vector<2x8x8xf32>
    %202 = tpu.concatenate %198, %199, %200, %201 in 0 : vector<2x8x8xf32>, vector<2x8x8xf32>, vector<2x8x8xf32>, vector<2x8x8xf32> -> vector<8x8x8xf32>
    "tpu.trace_start"() <{level = 10 : i32, message = "bqd,bkd->bqk"}> : () -> ()
    %cst_90 = arith.constant dense<0.000000e+00> : vector<8x8x8xf32>
    %203 = tpu.matmul %192, %197, %cst_90 {dimension_numbers = #tpu.dot_dimension_numbers<[2], [2], [1], [1], [0, 0, 0, 1, 1, 1], [0], [0]>} : vector<8x8x8xf32>, vector<8x8x8xf32>, vector<8x8x8xf32> -> vector<8x8x8xf32>
    "tpu.trace_stop"() : () -> ()
    %cst_91 = arith.constant 0.353553385 : f32
    %204 = vector.broadcast %cst_91 : f32 to vector<8x8x8xf32>
    %205 = arith.mulf %203, %204 : vector<8x8x8xf32>
    %cst_92 = arith.constant -1.000000e+30 : f32
    %206 = vector.broadcast %cst_92 : f32 to vector<8x8x8xf32>
    %207 = arith.select %22, %205, %206 : vector<8x8x8xi1>, vector<8x8x8xf32>
    %cst_93 = arith.constant dense<0xFF800000> : vector<8x8xf32>
    %208 = vector.multi_reduction <maximumf>, %207, %cst_93 [2] : vector<8x8x8xf32> to vector<8x8xf32>
    %209 = vector.shape_cast %208 : vector<8x8xf32> to vector<8x8x1xf32>
    %210 = vector.broadcast %209 : vector<8x8x1xf32> to vector<8x8x8xf32>
    %211 = arith.subf %207, %210 : vector<8x8x8xf32>
    %212 = math.exp %211 : vector<8x8x8xf32>
    %cst_94 = arith.constant dense<0.000000e+00> : vector<8x8xf32>
    %213 = vector.multi_reduction <add>, %212, %cst_94 [2] : vector<8x8x8xf32> to vector<8x8xf32>
    %214 = vector.shape_cast %213 : vector<8x8xf32> to vector<8x8x1xf32>
    %215 = tpu.reciprocal %214 {approx = true} : vector<8x8x1xf32> -> vector<8x8x1xf32>
    %216 = vector.broadcast %215 : vector<8x8x1xf32> to vector<8x8x8xf32>
    %217 = arith.mulf %212, %216 : vector<8x8x8xf32>
    "tpu.trace_start"() <{level = 10 : i32, message = "bqk,bkd->bqd"}> : () -> ()
    %cst_95 = arith.constant dense<0.000000e+00> : vector<8x8x8xf32>
    %218 = tpu.matmul %217, %202, %cst_95 {dimension_numbers = #tpu.dot_dimension_numbers<[2], [1], [1], [2], [0, 0, 0, 1, 1, 2], [0], [0]>} : vector<8x8x8xf32>, vector<8x8x8xf32>, vector<8x8x8xf32> -> vector<8x8x8xf32>
    "tpu.trace_stop"() : () -> ()
    %219 = vector.extract_strided_slice %218 {offsets = [0, 0, 0], sizes = [2, 8, 8], strides = [1, 1, 1]} : vector<8x8x8xf32> to vector<2x8x8xf32>
    %220 = vector.extract_strided_slice %218 {offsets = [2, 0, 0], sizes = [2, 8, 8], strides = [1, 1, 1]} : vector<8x8x8xf32> to vector<2x8x8xf32>
    %221 = vector.extract_strided_slice %218 {offsets = [4, 0, 0], sizes = [2, 8, 8], strides = [1, 1, 1]} : vector<8x8x8xf32> to vector<2x8x8xf32>
    %222 = vector.extract_strided_slice %218 {offsets = [6, 0, 0], sizes = [2, 8, 8], strides = [1, 1, 1]} : vector<8x8x8xf32> to vector<2x8x8xf32>
    %223 = tpu.concatenate %219, %220, %221, %222 in 2 : vector<2x8x8xf32>, vector<2x8x8xf32>, vector<2x8x8xf32>, vector<2x8x8xf32> -> vector<2x8x32xf32>
    %224 = vector.shape_cast %223 : vector<2x8x32xf32> to vector<16x32xf32>
    %c1_96 = arith.constant 1 : index
    %c0_97 = arith.constant 0 : index
    %c0_98 = arith.constant 0 : index
    %225 = vector.load %arg8[%c1_96, %c0_97, %c0_98] : memref<2x32x32xf32, #tpu.memory_space<vmem>>, vector<1x32x32xf32>
    %226 = vector.shape_cast %225 : vector<1x32x32xf32> to vector<32x32xf32>
    %cst_99 = arith.constant dense<0.000000e+00> : vector<16x32xf32>
    %227 = tpu.matmul %224, %226, %cst_99 {dimension_numbers = #tpu.dot_dimension_numbers<[1], [0], [0], [1], [0, 0, 1, 1], [], []>} : vector<16x32xf32>, vector<32x32xf32>, vector<16x32xf32> -> vector<16x32xf32>
    %228 = arith.addf %152, %227 : vector<16x32xf32>
    %c1_100 = arith.constant 1 : index
    %c0_101 = arith.constant 0 : index
    %c0_102 = arith.constant 0 : index
    %229 = vector.load %arg9[%c1_100, %c0_101, %c0_102] : memref<2x1x32xf32, #tpu.memory_space<vmem>>, vector<1x1x32xf32>
    %230 = vector.shape_cast %229 : vector<1x1x32xf32> to vector<1x32xf32>
    %c1_103 = arith.constant 1 : index
    %c0_104 = arith.constant 0 : index
    %c0_105 = arith.constant 0 : index
    %231 = vector.load %arg10[%c1_103, %c0_104, %c0_105] : memref<2x1x32xf32, #tpu.memory_space<vmem>>, vector<1x1x32xf32>
    %232 = vector.shape_cast %231 : vector<1x1x32xf32> to vector<1x32xf32>
    %cst_106 = arith.constant dense<0.000000e+00> : vector<16xf32>
    %233 = vector.multi_reduction <add>, %228, %cst_106 [1] : vector<16x32xf32> to vector<16xf32>
    %234 = vector.shape_cast %233 : vector<16xf32> to vector<16x1xf32>
    %cst_107 = arith.constant 3.200000e+01 : f32
    %235 = vector.broadcast %cst_107 : f32 to vector<16x1xf32>
    %236 = arith.divf %234, %235 : vector<16x1xf32>
    %237 = vector.broadcast %236 : vector<16x1xf32> to vector<16x32xf32>
    %238 = arith.subf %228, %237 : vector<16x32xf32>
    %239 = arith.mulf %238, %238 : vector<16x32xf32>
    %cst_108 = arith.constant dense<0.000000e+00> : vector<16xf32>
    %240 = vector.multi_reduction <add>, %239, %cst_108 [1] : vector<16x32xf32> to vector<16xf32>
    %241 = vector.shape_cast %240 : vector<16xf32> to vector<16x1xf32>
    %cst_109 = arith.constant 3.200000e+01 : f32
    %242 = vector.broadcast %cst_109 : f32 to vector<16x1xf32>
    %243 = arith.divf %241, %242 : vector<16x1xf32>
    %244 = vector.broadcast %236 : vector<16x1xf32> to vector<16x32xf32>
    %245 = arith.subf %228, %244 : vector<16x32xf32>
    %cst_110 = arith.constant 9.99999974E-6 : f32
    %246 = vector.broadcast %cst_110 : f32 to vector<16x1xf32>
    %247 = arith.addf %243, %246 : vector<16x1xf32>
    %248 = math.rsqrt %247 : vector<16x1xf32>
    %249 = vector.broadcast %248 : vector<16x1xf32> to vector<16x32xf32>
    %250 = arith.mulf %245, %249 : vector<16x32xf32>
    %251 = vector.broadcast %230 : vector<1x32xf32> to vector<16x32xf32>
    %252 = arith.mulf %250, %251 : vector<16x32xf32>
    %253 = vector.broadcast %232 : vector<1x32xf32> to vector<16x32xf32>
    %254 = arith.addf %252, %253 : vector<16x32xf32>
    %c1_111 = arith.constant 1 : index
    %c0_112 = arith.constant 0 : index
    %c0_113 = arith.constant 0 : index
    %255 = vector.load %arg11[%c1_111, %c0_112, %c0_113] : memref<2x32x64xf32, #tpu.memory_space<vmem>>, vector<1x32x64xf32>
    %256 = vector.shape_cast %255 : vector<1x32x64xf32> to vector<32x64xf32>
    %cst_114 = arith.constant dense<0.000000e+00> : vector<16x64xf32>
    %257 = tpu.matmul %254, %256, %cst_114 {dimension_numbers = #tpu.dot_dimension_numbers<[1], [0], [0], [1], [0, 0, 1, 1], [], []>} : vector<16x32xf32>, vector<32x64xf32>, vector<16x64xf32> -> vector<16x64xf32>
    %c1_115 = arith.constant 1 : index
    %c0_116 = arith.constant 0 : index
    %c0_117 = arith.constant 0 : index
    %258 = vector.load %arg12[%c1_115, %c0_116, %c0_117] : memref<2x1x64xf32, #tpu.memory_space<vmem>>, vector<1x1x64xf32>
    %259 = vector.shape_cast %258 : vector<1x1x64xf32> to vector<1x64xf32>
    %260 = vector.broadcast %259 : vector<1x64xf32> to vector<16x64xf32>
    %261 = arith.addf %257, %260 : vector<16x64xf32>
    %262 = arith.mulf %261, %261 : vector<16x64xf32>
    %263 = arith.mulf %261, %262 : vector<16x64xf32>
    %cst_118 = arith.constant 4.471500e-02 : f32
    %264 = vector.broadcast %cst_118 : f32 to vector<16x64xf32>
    %265 = arith.mulf %264, %263 : vector<16x64xf32>
    %266 = arith.addf %261, %265 : vector<16x64xf32>
    %cst_119 = arith.constant 0.797884583 : f32
    %267 = vector.broadcast %cst_119 : f32 to vector<16x64xf32>
    %268 = arith.mulf %267, %266 : vector<16x64xf32>
    %269 = math.tanh %268 : vector<16x64xf32>
    %cst_120 = arith.constant 1.000000e+00 : f32
    %270 = vector.broadcast %cst_120 : f32 to vector<16x64xf32>
    %271 = arith.addf %270, %269 : vector<16x64xf32>
    %cst_121 = arith.constant 5.000000e-01 : f32
    %272 = vector.broadcast %cst_121 : f32 to vector<16x64xf32>
    %273 = arith.mulf %272, %271 : vector<16x64xf32>
    %274 = arith.mulf %261, %273 : vector<16x64xf32>
    %c1_122 = arith.constant 1 : index
    %c0_123 = arith.constant 0 : index
    %c0_124 = arith.constant 0 : index
    %275 = vector.load %arg13[%c1_122, %c0_123, %c0_124] : memref<2x64x32xf32, #tpu.memory_space<vmem>>, vector<1x64x32xf32>
    %276 = vector.shape_cast %275 : vector<1x64x32xf32> to vector<64x32xf32>
    %cst_125 = arith.constant dense<0.000000e+00> : vector<16x32xf32>
    %277 = tpu.matmul %274, %276, %cst_125 {dimension_numbers = #tpu.dot_dimension_numbers<[1], [0], [0], [1], [0, 0, 1, 1], [], []>} : vector<16x64xf32>, vector<64x32xf32>, vector<16x32xf32> -> vector<16x32xf32>
    %278 = arith.addf %228, %277 : vector<16x32xf32>
    %c1_126 = arith.constant 1 : index
    %c0_127 = arith.constant 0 : index
    %c0_128 = arith.constant 0 : index
    %279 = vector.load %arg14[%c1_126, %c0_127, %c0_128] : memref<2x1x32xf32, #tpu.memory_space<vmem>>, vector<1x1x32xf32>
    %280 = vector.shape_cast %279 : vector<1x1x32xf32> to vector<1x32xf32>
    %281 = vector.broadcast %280 : vector<1x32xf32> to vector<16x32xf32>
    %282 = arith.addf %278, %281 : vector<16x32xf32>
    %c0_129 = arith.constant 0 : index
    %c0_130 = arith.constant 0 : index
    %283 = vector.load %arg15[%c0_129, %c0_130] : memref<1x32xf32, #tpu.memory_space<vmem>>, vector<1x32xf32>
    %c0_131 = arith.constant 0 : index
    %c0_132 = arith.constant 0 : index
    %284 = vector.load %arg16[%c0_131, %c0_132] : memref<1x32xf32, #tpu.memory_space<vmem>>, vector<1x32xf32>
    %cst_133 = arith.constant dense<0.000000e+00> : vector<16xf32>
    %285 = vector.multi_reduction <add>, %282, %cst_133 [1] : vector<16x32xf32> to vector<16xf32>
    %286 = vector.shape_cast %285 : vector<16xf32> to vector<16x1xf32>
    %cst_134 = arith.constant 3.200000e+01 : f32
    %287 = vector.broadcast %cst_134 : f32 to vector<16x1xf32>
    %288 = arith.divf %286, %287 : vector<16x1xf32>
    %289 = vector.broadcast %288 : vector<16x1xf32> to vector<16x32xf32>
    %290 = arith.subf %282, %289 : vector<16x32xf32>
    %291 = arith.mulf %290, %290 : vector<16x32xf32>
    %cst_135 = arith.constant dense<0.000000e+00> : vector<16xf32>
    %292 = vector.multi_reduction <add>, %291, %cst_135 [1] : vector<16x32xf32> to vector<16xf32>
    %293 = vector.shape_cast %292 : vector<16xf32> to vector<16x1xf32>
    %cst_136 = arith.constant 3.200000e+01 : f32
    %294 = vector.broadcast %cst_136 : f32 to vector<16x1xf32>
    %295 = arith.divf %293, %294 : vector<16x1xf32>
    %296 = vector.broadcast %288 : vector<16x1xf32> to vector<16x32xf32>
    %297 = arith.subf %282, %296 : vector<16x32xf32>
    %cst_137 = arith.constant 9.99999974E-6 : f32
    %298 = vector.broadcast %cst_137 : f32 to vector<16x1xf32>
    %299 = arith.addf %295, %298 : vector<16x1xf32>
    %300 = math.rsqrt %299 : vector<16x1xf32>
    %301 = vector.broadcast %300 : vector<16x1xf32> to vector<16x32xf32>
    %302 = arith.mulf %297, %301 : vector<16x32xf32>
    %303 = vector.broadcast %283 : vector<1x32xf32> to vector<16x32xf32>
    %304 = arith.mulf %302, %303 : vector<16x32xf32>
    %305 = vector.broadcast %284 : vector<1x32xf32> to vector<16x32xf32>
    %306 = arith.addf %304, %305 : vector<16x32xf32>
    %c0_138 = arith.constant 0 : index
    %c0_139 = arith.constant 0 : index
    %307 = vector.load %arg17[%c0_138, %c0_139] : memref<32x10xf32, #tpu.memory_space<vmem>>, vector<32x10xf32>
    %cst_140 = arith.constant dense<0.000000e+00> : vector<16x10xf32>
    %308 = tpu.matmul %306, %307, %cst_140 {dimension_numbers = #tpu.dot_dimension_numbers<[1], [0], [0], [1], [0, 0, 1, 1], [], []>} : vector<16x32xf32>, vector<32x10xf32>, vector<16x10xf32> -> vector<16x10xf32>
    %c0_141 = arith.constant 0 : index
    %c0_142 = arith.constant 0 : index
    %309 = vector.load %arg18[%c0_141, %c0_142] : memref<1x10xf32, #tpu.memory_space<vmem>>, vector<1x10xf32>
    %310 = vector.broadcast %309 : vector<1x10xf32> to vector<16x10xf32>
    %311 = arith.addf %308, %310 : vector<16x10xf32>
    %312 = vector.extract_strided_slice %311 {offsets = [0, 0], sizes = [1, 10], strides = [1, 1]} : vector<16x10xf32> to vector<1x10xf32>
    %c0_143 = arith.constant 0 : index
    %c0_144 = arith.constant 0 : index
    %313 = vector.load %arg19[%c0_143, %c0_144] : memref<2x10xf32, #tpu.memory_space<vmem>>, vector<1x10xf32>
    tpu.vector_store %arg19[%c0_143, %c0_144], %312 {strides = array<i32>} : memref<2x10xf32, #tpu.memory_space<vmem>>, vector<1x10xf32>,
    %314 = vector.extract_strided_slice %311 {offsets = [8, 0], sizes = [1, 10], strides = [1, 1]} : vector<16x10xf32> to vector<1x10xf32>
    %c1_145 = arith.constant 1 : index
    %c0_146 = arith.constant 0 : index
    %315 = vector.load %arg19[%c1_145, %c0_146] : memref<2x10xf32, #tpu.memory_space<vmem>>, vector<1x10xf32>
    tpu.vector_store %arg19[%c1_145, %c0_146], %314 {strides = array<i32>} : memref<2x10xf32, #tpu.memory_space<vmem>>, vector<1x10xf32>,
    return
  }
}

</mosaic_0001>

<llo_original>
// kernel: vit_forward.1
$region0: #{vit_forward.1}
  #allocation0 [shape = 'u32[]', space=smem, size = 0x4, offset = 0x4, fixed_abs, tag = 'smem constant byte address 0x4 - core index']
  #allocation1 [shape = 'u32[144,128]{1,0:T(1,128)}', space=vmem, size = 0x12000, scoped, tag = 'internal scratch']
  #allocation2 [shape = 'f32[16,32]{1,0:T(8,128)}', space=vmem, size = 0x2000, scoped, tag = 'scratch operand']
  %s0 = inlined_call_operand.vmem [shape: f32[8,192], index: 0, kind: input, shape index: {}]
  %s1 = inlined_call_operand.vmem [shape: f32[192,32], index: 1, kind: input, shape index: {}]
  %s2 = inlined_call_operand.vmem [shape: f32[1,32], index: 2, kind: input, shape index: {}]
  %s3 = inlined_call_operand.vmem [shape: f32[1,32], index: 3, kind: input, shape index: {}]
  %s4 = inlined_call_operand.vmem [shape: f32[8,32], index: 4, kind: input, shape index: {}]
  %s5 = inlined_call_operand.vmem [shape: f32[2,1,32], index: 5, kind: input, shape index: {}]
  %s6 = inlined_call_operand.vmem [shape: f32[2,1,32], index: 6, kind: input, shape index: {}]
  %s7 = inlined_call_operand.vmem [shape: f32[2,32,96], index: 7, kind: input, shape index: {}]
  %s8 = inlined_call_operand.vmem [shape: f32[2,32,32], index: 8, kind: input, shape index: {}]
  %s9 = inlined_call_operand.vmem [shape: f32[2,1,32], index: 9, kind: input, shape index: {}]
  %s10 = inlined_call_operand.vmem [shape: f32[2,1,32], index: 10, kind: input, shape index: {}]
  %s11 = inlined_call_operand.vmem [shape: f32[2,32,64], index: 11, kind: input, shape index: {}]
  %s12 = inlined_call_operand.vmem [shape: f32[2,1,64], index: 12, kind: input, shape index: {}]
  %s13 = inlined_call_operand.vmem [shape: f32[2,64,32], index: 13, kind: input, shape index: {}]
  %s14 = inlined_call_operand.vmem [shape: f32[2,1,32], index: 14, kind: input, shape index: {}]
  %s15 = inlined_call_operand.vmem [shape: f32[1,32], index: 15, kind: input, shape index: {}]
  %s16 = inlined_call_operand.vmem [shape: f32[1,32], index: 16, kind: input, shape index: {}]
  %s17 = inlined_call_operand.vmem [shape: f32[32,10], index: 17, kind: input, shape index: {}]
  %s18 = inlined_call_operand.vmem [shape: f32[1,10], index: 18, kind: input, shape index: {}]
  %s19 = inlined_call_operand.hbm [shape: f32[2,10], index: 19, kind: output, shape index: {}]
  %s20 = sld [smem:[#allocation0]]
  $region86: #{vit_forward.1} parent=0
    _
  %s22 = ssub.s32 1, %s20
  %s23 = scalar_select 0, %s22, %s20
  $region1: #{vit_forward.1} parent=0
    #allocation3 [shape = 'u8[1024]{0}', space=vmem, size = 0x400, scoped, tag = 'output window, operand 0, single buffered']
    #allocation4 [shape = 's32[1]{0}', space=sflag, size = 0x4, scoped, tag = 'scoped memory for vit_forward.1']
    %24 = vsyncpa [#allocation4], 0
    // Predicated region
    $region2: #{vit_forward.1} parent=1 // pred_check
      _
    $region3: #{vit_forward.1} parent=1 // pred_check_branch
      %26 = sbr.rel (0) target = $region5
    $region4: #{vit_forward.1} parent=1 // pred_region
      _
    $region5: #{vit_forward.1} parent=1 // pred_fallthru
      _
    // Predicated region
    $region6: #{vit_forward.1} parent=1 // pred_check
      _
    $region7: #{vit_forward.1} parent=1 // pred_check_branch
      %28 = sbr.rel (0) target = $region9
    $region8: #{vit_forward.1} parent=1 // pred_region
      _
    $region9: #{vit_forward.1} parent=1 // pred_fallthru
      _
    // Predicated region
    $region10: #{vit_forward.1} parent=1 // pred_check
      _
    $region11: #{vit_forward.1} parent=1 // pred_check_branch
      %30 = sbr.rel (0) target = $region13
    $region12: #{vit_forward.1} parent=1 // pred_region
      _
    $region13: #{vit_forward.1} parent=1 // pred_fallthru
      _
    // Predicated region
    $region14: #{vit_forward.1} parent=1 // pred_check
      _
    $region15: #{vit_forward.1} parent=1 // pred_check_branch
      %32 = sbr.rel (0) target = $region17
    $region16: #{vit_forward.1} parent=1 // pred_region
      _
    $region17: #{vit_forward.1} parent=1 // pred_fallthru
      _
    // Predicated region
    $region18: #{vit_forward.1} parent=1 // pred_check
      _
    $region19: #{vit_forward.1} parent=1 // pred_check_branch
      %34 = sbr.rel (0) target = $region21
    $region20: #{vit_forward.1} parent=1 // pred_region
      _
    $region21: #{vit_forward.1} parent=1 // pred_fallthru
      _
    // Predicated region
    $region22: #{vit_forward.1} parent=1 // pred_check
      _
    $region23: #{vit_forward.1} parent=1 // pred_check_branch
      %36 = sbr.rel (0) target = $region25
    $region24: #{vit_forward.1} parent=1 // pred_region
      _
    $region25: #{vit_forward.1} parent=1 // pred_fallthru
      _
    // Predicated region
    $region26: #{vit_forward.1} parent=1 // pred_check
      _
    $region27: #{vit_forward.1} parent=1 // pred_check_branch
      %38 = sbr.rel (0) target = $region29
    $region28: #{vit_forward.1} parent=1 // pred_region
      _
    $region29: #{vit_forward.1} parent=1 // pred_fallthru
      _
    // Predicated region
    $region30: #{vit_forward.1} parent=1 // pred_check
      _
    $region31: #{vit_forward.1} parent=1 // pred_check_branch
      %40 = sbr.rel (0) target = $region33
    $region32: #{vit_forward.1} parent=1 // pred_region
      _
    $region33: #{vit_forward.1} parent=1 // pred_fallthru
      _
    // Predicated region
    $region34: #{vit_forward.1} parent=1 // pred_check
      _
    $region35: #{vit_forward.1} parent=1 // pred_check_branch
      %42 = sbr.rel (0) target = $region37
    $region36: #{vit_forward.1} parent=1 // pred_region
      _
    $region37: #{vit_forward.1} parent=1 // pred_fallthru
      _
    // Predicated region
    $region38: #{vit_forward.1} parent=1 // pred_check
      _
    $region39: #{vit_forward.1} parent=1 // pred_check_branch
      %44 = sbr.rel (0) target = $region41
    $region40: #{vit_forward.1} parent=1 // pred_region
      _
    $region41: #{vit_forward.1} parent=1 // pred_fallthru
      _
    // Predicated region
    $region42: #{vit_forward.1} parent=1 // pred_check
      _
    $region43: #{vit_forward.1} parent=1 // pred_check_branch
      %46 = sbr.rel (0) target = $region45
    $region44: #{vit_forward.1} parent=1 // pred_region
      _
    $region45: #{vit_forward.1} parent=1 // pred_fallthru
      _
    // Predicated region
    $region46: #{vit_forward.1} parent=1 // pred_check
      _
    $region47: #{vit_forward.1} parent=1 // pred_check_branch
      %48 = sbr.rel (0) target = $region49
    $region48: #{vit_forward.1} parent=1 // pred_region
      _
    $region49: #{vit_forward.1} parent=1 // pred_fallthru
      _
    // Predicated region
    $region50: #{vit_forward.1} parent=1 // pred_check
      _
    $region51: #{vit_forward.1} parent=1 // pred_check_branch
      %50 = sbr.rel (0) target = $region53
    $region52: #{vit_forward.1} parent=1 // pred_region
      _
    $region53: #{vit_forward.1} parent=1 // pred_fallthru
      _
    // Predicated region
    $region54: #{vit_forward.1} parent=1 // pred_check
      _
    $region55: #{vit_forward.1} parent=1 // pred_check_branch
      %52 = sbr.rel (0) target = $region57
    $region56: #{vit_forward.1} parent=1 // pred_region
      _
    $region57: #{vit_forward.1} parent=1 // pred_fallthru
      _
    // Predicated region
    $region58: #{vit_forward.1} parent=1 // pred_check
      _
    $region59: #{vit_forward.1} parent=1 // pred_check_branch
      %54 = sbr.rel (0) target = $region61
    $region60: #{vit_forward.1} parent=1 // pred_region
      _
    $region61: #{vit_forward.1} parent=1 // pred_fallthru
      _
    // Predicated region
    $region62: #{vit_forward.1} parent=1 // pred_check
      _
    $region63: #{vit_forward.1} parent=1 // pred_check_branch
      %56 = sbr.rel (0) target = $region65
    $region64: #{vit_forward.1} parent=1 // pred_region
      _
    $region65: #{vit_forward.1} parent=1 // pred_fallthru
      _
    // Predicated region
    $region66: #{vit_forward.1} parent=1 // pred_check
      _
    $region67: #{vit_forward.1} parent=1 // pred_check_branch
      %58 = sbr.rel (0) target = $region69
    $region68: #{vit_forward.1} parent=1 // pred_region
      _
    $region69: #{vit_forward.1} parent=1 // pred_fallthru
      _
    // Predicated region
    $region70: #{vit_forward.1} parent=1 // pred_check
      _
    $region71: #{vit_forward.1} parent=1 // pred_check_branch
      %60 = sbr.rel (0) target = $region73
    $region72: #{vit_forward.1} parent=1 // pred_region
      _
    $region73: #{vit_forward.1} parent=1 // pred_fallthru
      _
    // Predicated region
    $region74: #{vit_forward.1} parent=1 // pred_check
      _
    $region75: #{vit_forward.1} parent=1 // pred_check_branch
      %62 = sbr.rel (0) target = $region77
    $region76: #{vit_forward.1} parent=1 // pred_region
      _
    $region77: #{vit_forward.1} parent=1 // pred_fallthru
      _
    %v63 = vld [vmem:[%s0] sm:$0xff]
    %v64 = vld [vmem:[%s0 + $0x8] sm:$0xff]
    %v65 = vld [vmem:[%s1] sm:$0xff]
    %v66 = vld [vmem:[%s1 + $0x8] sm:$0xff]
    %v67 = vld [vmem:[%s1 + $0x10] sm:$0xff]
    %v68 = vld [vmem:[%s1 + $0x18] sm:$0xff]
    %v69 = vld [vmem:[%s1 + $0x20] sm:$0xff]
    %v70 = vld [vmem:[%s1 + $0x28] sm:$0xff]
    %v71 = vld [vmem:[%s1 + $0x30] sm:$0xff]
    %v72 = vld [vmem:[%s1 + $0x38] sm:$0xff]
    %v73 = vld [vmem:[%s1 + $0x40] sm:$0xff]
    %v74 = vld [vmem:[%s1 + $0x48] sm:$0xff]
    %v75 = vld [vmem:[%s1 + $0x50] sm:$0xff]
    %v76 = vld [vmem:[%s1 + $0x58] sm:$0xff]
    %v77 = vld [vmem:[%s1 + $0x60] sm:$0xff]
    %v78 = vld [vmem:[%s1 + $0x68] sm:$0xff]
    %v79 = vld [vmem:[%s1 + $0x70] sm:$0xff]
    %v80 = vld [vmem:[%s1 + $0x78] sm:$0xff]
    %v81 = vld [vmem:[%s1 + $0x80] sm:$0xff]
    %v82 = vld [vmem:[%s1 + $0x88] sm:$0xff]
    %v83 = vld [vmem:[%s1 + $0x90] sm:$0xff]
    %v84 = vld [vmem:[%s1 + $0x98] sm:$0xff]
    %v85 = vld [vmem:[%s1 + $0xa0] sm:$0xff]
    %v86 = vld [vmem:[%s1 + $0xa8] sm:$0xff]
    %v87 = vld [vmem:[%s1 + $0xb0] sm:$0xff]
    %v88 = vld [vmem:[%s1 + $0xb8] sm:$0xff]
    %v89 = vld [vmem:[%s2] sm:$0x1]
    %v91 = vlaneseq
    %v92 = vshrl.u32 %v91, 7
    %v93 = vsub.s32 0, %v92
    %v94 = vrot.slane %v89, %v93
    %vm96 = vcmask 523264
    %v98 = vsel %vm96, %v64, 0
    %100 = vmatprep.subr.mxu0 0.0
    %101 = vmatpush1.msra.mxu0 %v65
    %102 = vmatprep.subr.mxu0 0.0
    %103 = vmatpush1.msra.mxu0 %v66
    %104 = vmatprep.subr.mxu0 0.0
    %105 = vmatpush1.msra.mxu0 %v67
    %106 = vmatprep.subr.mxu0 0.0
    %107 = vmatpush1.msra.mxu0 %v68
    %108 = vmatprep.subr.mxu0 0.0
    %109 = vmatpush1.msra.mxu0 %v69
    %110 = vmatprep.subr.mxu0 0.0
    %111 = vmatpush1.msra.mxu0 %v70
    %112 = vmatprep.subr.mxu0 0.0
    %113 = vmatpush1.msra.mxu0 %v71
    %114 = vmatprep.subr.mxu0 0.0
    %115 = vmatpush1.msra.mxu0 %v72
    %116 = vmatprep.subr.mxu0 0.0
    %117 = vmatpush1.msra.mxu0 %v73
    %118 = vmatprep.subr.mxu0 0.0
    %119 = vmatpush1.msra.mxu0 %v74
    %120 = vmatprep.subr.mxu0 0.0
    %121 = vmatpush1.msra.mxu0 %v75
    %122 = vmatprep.subr.mxu0 0.0
    %123 = vmatpush1.msra.mxu0 %v76
    %124 = vmatprep.subr.mxu0 0.0
    %125 = vmatpush1.msra.mxu0 %v77
    %126 = vmatprep.subr.mxu0 0.0
    %127 = vmatpush1.msra.mxu0 %v78
    %128 = vmatprep.subr.mxu0 0.0
    %129 = vmatpush1.msra.mxu0 %v79
    %130 = vmatprep.subr.mxu0 0.0
    %131 = vmatpush1.msra.mxu0 %v80
    %132 = vmatprep.subr.mxu0 0.0
    %133 = vmatpush1.msra.mxu0 %v81
    %134 = vmatprep.subr.mxu0 0.0
    %135 = vmatpush1.msra.mxu0 %v82
    %136 = vmatprep.subr.mxu0 0.0
    %137 = vmatpush1.msra.mxu0 %v83
    %138 = vmatprep.subr.mxu0 0.0
    %139 = vmatpush1.msra.mxu0 %v84
    %140 = vmatprep.subr.mxu0 0.0
    %141 = vmatpush1.msra.mxu0 %v85
    %142 = vmatprep.subr.mxu0 0.0
    %143 = vmatpush1.msra.mxu0 %v86
    %144 = vmatprep.subr.mxu0 0.0
    %145 = vmatpush1.msra.mxu0 %v87
    %146 = vmatprep.subr.mxu0 0.0
    %147 = vmatpush1.msra.mxu0 %v88
    %148 = vmatprep.subr.mxu0 0.0
    %149 = vmatpush1.msra.mxu0 0.0
    %150 = vmatprep.subr.mxu0 0.0
    %151 = vmatpush1.msra.mxu0 0.0
    %152 = vmatprep.subr.mxu0 0.0
    %153 = vmatpush1.msra.mxu0 0.0
    %154 = vmatprep.subr.mxu0 0.0
    %155 = vmatpush1.msra.mxu0 0.0
    %156 = vmatprep.subr.mxu0 0.0
    %157 = vmatpush1.msra.mxu0 0.0
    %158 = vmatprep.subr.mxu0 0.0
    %159 = vmatpush1.msra.mxu0 0.0
    %160 = vmatprep.subr.mxu0 0.0
    %161 = vmatpush1.msra.mxu0 0.0
    %162 = vmatprep.subr.mxu0 0.0
    %163 = vmatpush1.msra.mxu0 0.0
    %164 = vmatprep.mubr.f32.mxu0 %v98
    %165 = vmatmul.mubr.f32.gmra.mrb[0].mxu0 %v63
    %v166 = vpop.f32.mrb[0].mxu0
    %v167 = vadd.f32 %v94, %v166
    %v168 = vpop.f32.mrb[0].mxu0
    %169 = vdwg.mxu0
    %vm170 = vcmask 261120
    %171 = vst.msk [vmem:[#allocation2] sm:$0xff] %vm170, 0.0
    %172 = vst.msk [vmem:[#allocation2 + $0x8] sm:$0xff] %vm170, 0.0
    %v173 = vld [vmem:[%s3] sm:$0x1]
    %vm174 = vcmask 253952
    %175 = vst.msk [vmem:[#allocation2] sm:$0x1] %vm174, %v173
    %vm176 = vcmask 257024
    %177 = vst.msk [vmem:[#allocation2 + $0x1] sm:$0xf] %vm176, %v167
    %v178 = vld [vmem:[%s3] sm:$0x1]
    %179 = vst.msk [vmem:[#allocation2 + $0x8] sm:$0x1] %vm174, %v178
    %vm180 = vcmask 261124
    %181 = vst.msk [vmem:[#allocation2 + $0x5] sm:$0xf0] %vm180, %v167
    %v182 = vld [vmem:[#allocation2] sm:$0xff]
    %v183 = vld [vmem:[#allocation2 + $0x8] sm:$0xff]
    %v184 = vld [vmem:[%s4] sm:$0xff]
    %v185 = vadd.f32 %v182, %v184
    %v186 = vadd.f32 %v183, %v184
    %v187 = vlaneseq
    %v188 = vand.u32 %v187, 127
    %vm189 = vcmp.lt.s32.totalorder %v188, 5
    %v190 = vld [vmem:[%s5] sm:$0x1]
    %v191 = vld [vmem:[%s6] sm:$0x1]
    %v192 = vsel %vm170, %v185, 0.0
    %193 = vadd.xlane.f32.xlu0 %v192
    %v194 = vpop.xlane.xlu0 %193
    %v195 = vsel %vm170, %v186, 0.0
    %196 = vadd.xlane.f32.xlu0 %v195
    %v197 = vpop.xlane.xlu0 %196
    %v198 = vrcp.pop 32.0
    %v199 = vmul.f32 %v194, %v198
    %v200 = vmul.f32 %v197, %v198
    %v201 = vsub.f32 %v185, %v199
    %v202 = vsub.f32 %v186, %v200
    %v203 = vmul.f32 %v201, %v201
    %v204 = vmul.f32 %v202, %v202
    %v205 = vsel %vm170, %v203, 0.0
    %206 = vadd.xlane.f32.xlu0 %v205
    %v207 = vpop.xlane.xlu0 %206
    %v208 = vsel %vm170, %v204, 0.0
    %209 = vadd.xlane.f32.xlu0 %v208
    %v210 = vpop.xlane.xlu0 %209
    %v211 = vmul.f32 %v207, %v198
    %v212 = vmul.f32 %v210, %v198
    %v213 = vadd.f32 %v211, 1e-05
    %v214 = vadd.f32 %v212, 1e-05
    %v215 = vrsqrt.pop %v213
    %v216 = vrsqrt.pop %v214
    %v217 = vmul.f32 %v201, %v215
    %v218 = vmul.f32 %v202, %v216
    %v220 = vlaneseq
    %v221 = vshrl.u32 %v220, 7
    %v222 = vsub.s32 0, %v221
    %v223 = vrot.slane %v190, %v222
    %v225 = vmul.f32 %v217, %v223
    %v226 = vmul.f32 %v218, %v223
    %v228 = vlaneseq
    %v229 = vshrl.u32 %v228, 7
    %v230 = vsub.s32 0, %v229
    %v231 = vrot.slane %v191, %v230
    %v233 = vadd.f32 %v225, %v231
    %v234 = vadd.f32 %v226, %v231
    %v235 = vld [vmem:[%s7] sm:$0xff]
    %v236 = vld [vmem:[%s7 + $0x8] sm:$0xff]
    %v237 = vld [vmem:[%s7 + $0x10] sm:$0xff]
    %v238 = vld [vmem:[%s7 + $0x18] sm:$0xff]
    %v240 = vsel %vm170, %v233, 0
    %v243 = vsel %vm170, %v234, 0
    %245 = vmatprep.subr.mxu0 0.0
    %246 = vmatpush1.msra.mxu0 %v235
    %247 = vmatprep.subr.mxu0 0.0
    %248 = vmatpush1.msra.mxu0 %v236
    %249 = vmatprep.subr.mxu0 0.0
    %250 = vmatpush1.msra.mxu0 %v237
    %251 = vmatprep.subr.mxu0 0.0
    %252 = vmatpush1.msra.mxu0 %v238
    %253 = vmatprep.subr.mxu0 0.0
    %254 = vmatpush1.msra.mxu0 0.0
    %255 = vmatprep.subr.mxu0 0.0
    %256 = vmatpush1.msra.mxu0 0.0
    %257 = vmatprep.subr.mxu0 0.0
    %258 = vmatpush1.msra.mxu0 0.0
    %259 = vmatprep.subr.mxu0 0.0
    %260 = vmatpush1.msra.mxu0 0.0
    %261 = vmatprep.subr.mxu0 0.0
    %262 = vmatpush1.msra.mxu0 0.0
    %263 = vmatprep.subr.mxu0 0.0
    %264 = vmatpush1.msra.mxu0 0.0
    %265 = vmatprep.subr.mxu0 0.0
    %266 = vmatpush1.msra.mxu0 0.0
    %267 = vmatprep.subr.mxu0 0.0
    %268 = vmatpush1.msra.mxu0 0.0
    %269 = vmatprep.subr.mxu0 0.0
    %270 = vmatpush1.msra.mxu0 0.0
    %271 = vmatprep.subr.mxu0 0.0
    %272 = vmatpush1.msra.mxu0 0.0
    %273 = vmatprep.subr.mxu0 0.0
    %274 = vmatpush1.msra.mxu0 0.0
    %275 = vmatprep.subr.mxu0 0.0
    %276 = vmatpush1.msra.mxu0 0.0
    %277 = vmatprep.subr.mxu0 0.0
    %278 = vmatpush1.msra.mxu0 0.0
    %279 = vmatprep.subr.mxu0 0.0
    %280 = vmatpush1.msra.mxu0 0.0
    %281 = vmatprep.subr.mxu0 0.0
    %282 = vmatpush1.msra.mxu0 0.0
    %283 = vmatprep.subr.mxu0 0.0
    %284 = vmatpush1.msra.mxu0 0.0
    %285 = vmatprep.subr.mxu0 0.0
    %286 = vmatpush1.msra.mxu0 0.0
    %287 = vmatprep.subr.mxu0 0.0
    %288 = vmatpush1.msra.mxu0 0.0
    %289 = vmatprep.subr.mxu0 0.0
    %290 = vmatpush1.msra.mxu0 0.0
    %291 = vmatprep.subr.mxu0 0.0
    %292 = vmatpush1.msra.mxu0 0.0
    %293 = vmatprep.subr.mxu0 0.0
    %294 = vmatpush1.msra.mxu0 0.0
    %295 = vmatprep.subr.mxu0 0.0
    %296 = vmatpush1.msra.mxu0 0.0
    %297 = vmatprep.subr.mxu0 0.0
    %298 = vmatpush1.msra.mxu0 0.0
    %299 = vmatprep.subr.mxu0 0.0
    %300 = vmatpush1.msra.mxu0 0.0
    %301 = vmatprep.subr.mxu0 0.0
    %302 = vmatpush1.msra.mxu0 0.0
    %303 = vmatprep.subr.mxu0 0.0
    %304 = vmatpush1.msra.mxu0 0.0
    %305 = vmatprep.subr.mxu0 0.0
    %306 = vmatpush1.msra.mxu0 0.0
    %307 = vmatprep.subr.mxu0 0.0
    %308 = vmatpush1.msra.mxu0 0.0
    %309 = vmatprep.mubr.f32.mxu0 0.0
    %310 = vmatmul.mubr.f32.gmra.mrb[0].mxu0 %v240
    %v311 = vpop.f32.mrb[0].mxu0
    %v312 = vadd.f32 0.0, %v311
    %v313 = vpop.f32.mrb[0].mxu0
    %314 = vmatprep.mubr.f32.mxu0 0.0
    %315 = vmatmul.mubr.f32.gmra.mrb[0].mxu0 %v243
    %v316 = vpop.f32.mrb[0].mxu0
    %v317 = vadd.f32 0.0, %v316
    %v318 = vpop.f32.mrb[0].mxu0
    %319 = vdwg.mxu0
    %322 = vrot.lane.b32.xlu0 %v312, 120
    %v323 = vpop.permute.xlu0 %322
    %324 = vrot.lane.b32.xlu0 %v317, 120
    %v325 = vpop.permute.xlu0 %324
    %326 = vrot.lane.b32.xlu0 %v312, 112
    %v327 = vpop.permute.xlu0 %326
    %328 = vrot.lane.b32.xlu0 %v317, 112
    %v329 = vpop.permute.xlu0 %328
    %330 = vrot.lane.b32.xlu0 %v312, 104
    %v331 = vpop.permute.xlu0 %330
    %332 = vrot.lane.b32.xlu0 %v317, 104
    %v333 = vpop.permute.xlu0 %332
    %334 = vrot.lane.b32.xlu0 %v312, 96
    %v335 = vpop.permute.xlu0 %334
    %vm336 = vcmask 64512
    %v337 = vsel %vm336, %v312, 0
    %v339 = vsel %vm336, %v335, 0
    %341 = vmatprep.subr.mxu0 0.0
    %342 = vmatpush1.xpose.msra.mxu0 %v339
    %343 = vmatprep.subr.mxu0 0.0
    %344 = vmatpush1.xpose.msra.mxu0 0.0
    %345 = vmatprep.subr.mxu0 0.0
    %346 = vmatpush1.xpose.msra.mxu0 0.0
    %347 = vmatprep.subr.mxu0 0.0
    %348 = vmatpush1.xpose.msra.mxu0 0.0
    %349 = vmatprep.subr.mxu0 0.0
    %350 = vmatpush1.xpose.msra.mxu0 0.0
    %351 = vmatprep.subr.mxu0 0.0
    %352 = vmatpush1.xpose.msra.mxu0 0.0
    %353 = vmatprep.subr.mxu0 0.0
    %354 = vmatpush1.xpose.msra.mxu0 0.0
    %355 = vmatprep.subr.mxu0 0.0
    %356 = vmatpush1.xpose.msra.mxu0 0.0
    %357 = vmatprep.subr.mxu0 0.0
    %358 = vmatpush1.xpose.msra.mxu0 0.0
    %359 = vmatprep.subr.mxu0 0.0
    %360 = vmatpush1.xpose.msra.mxu0 0.0
    %361 = vmatprep.subr.mxu0 0.0
    %362 = vmatpush1.xpose.msra.mxu0 0.0
    %363 = vmatprep.subr.mxu0 0.0
    %364 = vmatpush1.xpose.msra.mxu0 0.0
    %365 = vmatprep.subr.mxu0 0.0
    %366 = vmatpush1.xpose.msra.mxu0 0.0
    %367 = vmatprep.subr.mxu0 0.0
    %368 = vmatpush1.xpose.msra.mxu0 0.0
    %369 = vmatprep.subr.mxu0 0.0
    %370 = vmatpush1.xpose.msra.mxu0 0.0
    %371 = vmatprep.subr.mxu0 0.0
    %372 = vmatpush1.xpose.msra.mxu0 0.0
    %373 = vmatprep.subr.mxu0 0.0
    %374 = vmatpush1.xpose.msra.mxu0 0.0
    %375 = vmatprep.subr.mxu0 0.0
    %376 = vmatpush1.xpose.msra.mxu0 0.0
    %377 = vmatprep.subr.mxu0 0.0
    %378 = vmatpush1.xpose.msra.mxu0 0.0
    %379 = vmatprep.subr.mxu0 0.0
    %380 = vmatpush1.xpose.msra.mxu0 0.0
    %381 = vmatprep.subr.mxu0 0.0
    %382 = vmatpush1.xpose.msra.mxu0 0.0
    %383 = vmatprep.subr.mxu0 0.0
    %384 = vmatpush1.xpose.msra.mxu0 0.0
    %385 = vmatprep.subr.mxu0 0.0
    %386 = vmatpush1.xpose.msra.mxu0 0.0
    %387 = vmatprep.subr.mxu0 0.0
    %388 = vmatpush1.xpose.msra.mxu0 0.0
    %389 = vmatprep.subr.mxu0 0.0
    %390 = vmatpush1.xpose.msra.mxu0 0.0
    %391 = vmatprep.subr.mxu0 0.0
    %392 = vmatpush1.xpose.msra.mxu0 0.0
    %393 = vmatprep.subr.mxu0 0.0
    %394 = vmatpush1.xpose.msra.mxu0 0.0
    %395 = vmatprep.subr.mxu0 0.0
    %396 = vmatpush1.xpose.msra.mxu0 0.0
    %397 = vmatprep.subr.mxu0 0.0
    %398 = vmatpush1.xpose.msra.mxu0 0.0
    %399 = vmatprep.subr.mxu0 0.0
    %400 = vmatpush1.xpose.msra.mxu0 0.0
    %401 = vmatprep.subr.mxu0 0.0
    %402 = vmatpush1.xpose.msra.mxu0 0.0
    %403 = vmatprep.subr.mxu0 0.0
    %404 = vmatpush1.xpose.msra.mxu0 0.0
    %405 = vmatprep.mubr.f32.mxu0 0.0
    %406 = vmatmul.mubr.f32.gmra.mrb[0].mxu0 %v337
    %v407 = vpop.f32.mrb[0].mxu0
    %v408 = vadd.f32 0.0, %v407
    %v409 = vpop.f32.mrb[0].mxu0
    %410 = vdwg.mxu0
    %411 = vrot.lane.b32.xlu0 %v317, 96
    %v412 = vpop.permute.xlu0 %411
    %v413 = vsel %vm336, %v317, 0
    %v415 = vsel %vm336, %v412, 0
    %417 = vmatprep.subr.mxu0 0.0
    %418 = vmatpush1.xpose.msra.mxu0 %v415
    %419 = vmatprep.subr.mxu0 0.0
    %420 = vmatpush1.xpose.msra.mxu0 0.0
    %421 = vmatprep.subr.mxu0 0.0
    %422 = vmatpush1.xpose.msra.mxu0 0.0
    %423 = vmatprep.subr.mxu0 0.0
    %424 = vmatpush1.xpose.msra.mxu0 0.0
    %425 = vmatprep.subr.mxu0 0.0
    %426 = vmatpush1.xpose.msra.mxu0 0.0
    %427 = vmatprep.subr.mxu0 0.0
    %428 = vmatpush1.xpose.msra.mxu0 0.0
    %429 = vmatprep.subr.mxu0 0.0
    %430 = vmatpush1.xpose.msra.mxu0 0.0
    %431 = vmatprep.subr.mxu0 0.0
    %432 = vmatpush1.xpose.msra.mxu0 0.0
    %433 = vmatprep.subr.mxu0 0.0
    %434 = vmatpush1.xpose.msra.mxu0 0.0
    %435 = vmatprep.subr.mxu0 0.0
    %436 = vmatpush1.xpose.msra.mxu0 0.0
    %437 = vmatprep.subr.mxu0 0.0
    %438 = vmatpush1.xpose.msra.mxu0 0.0
    %439 = vmatprep.subr.mxu0 0.0
    %440 = vmatpush1.xpose.msra.mxu0 0.0
    %441 = vmatprep.subr.mxu0 0.0
    %442 = vmatpush1.xpose.msra.mxu0 0.0
    %443 = vmatprep.subr.mxu0 0.0
    %444 = vmatpush1.xpose.msra.mxu0 0.0
    %445 = vmatprep.subr.mxu0 0.0
    %446 = vmatpush1.xpose.msra.mxu0 0.0
    %447 = vmatprep.subr.mxu0 0.0
    %448 = vmatpush1.xpose.msra.mxu0 0.0
    %449 = vmatprep.subr.mxu0 0.0
    %450 = vmatpush1.xpose.msra.mxu0 0.0
    %451 = vmatprep.subr.mxu0 0.0
    %452 = vmatpush1.xpose.msra.mxu0 0.0
    %453 = vmatprep.subr.mxu0 0.0
    %454 = vmatpush1.xpose.msra.mxu0 0.0
    %455 = vmatprep.subr.mxu0 0.0
    %456 = vmatpush1.xpose.msra.mxu0 0.0
    %457 = vmatprep.subr.mxu0 0.0
    %458 = vmatpush1.xpose.msra.mxu0 0.0
    %459 = vmatprep.subr.mxu0 0.0
    %460 = vmatpush1.xpose.msra.mxu0 0.0
    %461 = vmatprep.subr.mxu0 0.0
    %462 = vmatpush1.xpose.msra.mxu0 0.0
    %463 = vmatprep.subr.mxu0 0.0
    %464 = vmatpush1.xpose.msra.mxu0 0.0
    %465 = vmatprep.subr.mxu0 0.0
    %466 = vmatpush1.xpose.msra.mxu0 0.0
    %467 = vmatprep.subr.mxu0 0.0
    %468 = vmatpush1.xpose.msra.mxu0 0.0
    %469 = vmatprep.subr.mxu0 0.0
    %470 = vmatpush1.xpose.msra.mxu0 0.0
    %471 = vmatprep.subr.mxu0 0.0
    %472 = vmatpush1.xpose.msra.mxu0 0.0
    %473 = vmatprep.subr.mxu0 0.0
    %474 = vmatpush1.xpose.msra.mxu0 0.0
    %475 = vmatprep.subr.mxu0 0.0
    %476 = vmatpush1.xpose.msra.mxu0 0.0
    %477 = vmatprep.subr.mxu0 0.0
    %478 = vmatpush1.xpose.msra.mxu0 0.0
    %479 = vmatprep.subr.mxu0 0.0
    %480 = vmatpush1.xpose.msra.mxu0 0.0
    %481 = vmatprep.mubr.f32.mxu0 0.0
    %482 = vmatmul.mubr.f32.gmra.mrb[0].mxu0 %v413
    %v483 = vpop.f32.mrb[0].mxu0
    %v484 = vadd.f32 0.0, %v483
    %v485 = vpop.f32.mrb[0].mxu0
    %486 = vdwg.mxu0
    %487 = vrot.lane.b32.xlu0 %v323, 96
    %v488 = vpop.permute.xlu0 %487
    %v489 = vsel %vm336, %v323, 0
    %v491 = vsel %vm336, %v488, 0
    %493 = vmatprep.subr.mxu0 0.0
    %494 = vmatpush1.xpose.msra.mxu0 %v491
    %495 = vmatprep.subr.mxu0 0.0
    %496 = vmatpush1.xpose.msra.mxu0 0.0
    %497 = vmatprep.subr.mxu0 0.0
    %498 = vmatpush1.xpose.msra.mxu0 0.0
    %499 = vmatprep.subr.mxu0 0.0
    %500 = vmatpush1.xpose.msra.mxu0 0.0
    %501 = vmatprep.subr.mxu0 0.0
    %502 = vmatpush1.xpose.msra.mxu0 0.0
    %503 = vmatprep.subr.mxu0 0.0
    %504 = vmatpush1.xpose.msra.mxu0 0.0
    %505 = vmatprep.subr.mxu0 0.0
    %506 = vmatpush1.xpose.msra.mxu0 0.0
    %507 = vmatprep.subr.mxu0 0.0
    %508 = vmatpush1.xpose.msra.mxu0 0.0
    %509 = vmatprep.subr.mxu0 0.0
    %510 = vmatpush1.xpose.msra.mxu0 0.0
    %511 = vmatprep.subr.mxu0 0.0
    %512 = vmatpush1.xpose.msra.mxu0 0.0
    %513 = vmatprep.subr.mxu0 0.0
    %514 = vmatpush1.xpose.msra.mxu0 0.0
    %515 = vmatprep.subr.mxu0 0.0
    %516 = vmatpush1.xpose.msra.mxu0 0.0
    %517 = vmatprep.subr.mxu0 0.0
    %518 = vmatpush1.xpose.msra.mxu0 0.0
    %519 = vmatprep.subr.mxu0 0.0
    %520 = vmatpush1.xpose.msra.mxu0 0.0
    %521 = vmatprep.subr.mxu0 0.0
    %522 = vmatpush1.xpose.msra.mxu0 0.0
    %523 = vmatprep.subr.mxu0 0.0
    %524 = vmatpush1.xpose.msra.mxu0 0.0
    %525 = vmatprep.subr.mxu0 0.0
    %526 = vmatpush1.xpose.msra.mxu0 0.0
    %527 = vmatprep.subr.mxu0 0.0
    %528 = vmatpush1.xpose.msra.mxu0 0.0
    %529 = vmatprep.subr.mxu0 0.0
    %530 = vmatpush1.xpose.msra.mxu0 0.0
    %531 = vmatprep.subr.mxu0 0.0
    %532 = vmatpush1.xpose.msra.mxu0 0.0
    %533 = vmatprep.subr.mxu0 0.0
    %534 = vmatpush1.xpose.msra.mxu0 0.0
    %535 = vmatprep.subr.mxu0 0.0
    %536 = vmatpush1.xpose.msra.mxu0 0.0
    %537 = vmatprep.subr.mxu0 0.0
    %538 = vmatpush1.xpose.msra.mxu0 0.0
    %539 = vmatprep.subr.mxu0 0.0
    %540 = vmatpush1.xpose.msra.mxu0 0.0
    %541 = vmatprep.subr.mxu0 0.0
    %542 = vmatpush1.xpose.msra.mxu0 0.0
    %543 = vmatprep.subr.mxu0 0.0
    %544 = vmatpush1.xpose.msra.mxu0 0.0
    %545 = vmatprep.subr.mxu0 0.0
    %546 = vmatpush1.xpose.msra.mxu0 0.0
    %547 = vmatprep.subr.mxu0 0.0
    %548 = vmatpush1.xpose.msra.mxu0 0.0
    %549 = vmatprep.subr.mxu0 0.0
    %550 = vmatpush1.xpose.msra.mxu0 0.0
    %551 = vmatprep.subr.mxu0 0.0
    %552 = vmatpush1.xpose.msra.mxu0 0.0
    %553 = vmatprep.subr.mxu0 0.0
    %554 = vmatpush1.xpose.msra.mxu0 0.0
    %555 = vmatprep.subr.mxu0 0.0
    %556 = vmatpush1.xpose.msra.mxu0 0.0
    %557 = vmatprep.mubr.f32.mxu0 0.0
    %558 = vmatmul.mubr.f32.gmra.mrb[0].mxu0 %v489
    %v559 = vpop.f32.mrb[0].mxu0
    %v560 = vadd.f32 0.0, %v559
    %v561 = vpop.f32.mrb[0].mxu0
    %562 = vdwg.mxu0
    %563 = vrot.lane.b32.xlu0 %v325, 96
    %v564 = vpop.permute.xlu0 %563
    %v565 = vsel %vm336, %v325, 0
    %v567 = vsel %vm336, %v564, 0
    %569 = vmatprep.subr.mxu0 0.0
    %570 = vmatpush1.xpose.msra.mxu0 %v567
    %571 = vmatprep.subr.mxu0 0.0
    %572 = vmatpush1.xpose.msra.mxu0 0.0
    %573 = vmatprep.subr.mxu0 0.0
    %574 = vmatpush1.xpose.msra.mxu0 0.0
    %575 = vmatprep.subr.mxu0 0.0
    %576 = vmatpush1.xpose.msra.mxu0 0.0
    %577 = vmatprep.subr.mxu0 0.0
    %578 = vmatpush1.xpose.msra.mxu0 0.0
    %579 = vmatprep.subr.mxu0 0.0
    %580 = vmatpush1.xpose.msra.mxu0 0.0
    %581 = vmatprep.subr.mxu0 0.0
    %582 = vmatpush1.xpose.msra.mxu0 0.0
    %583 = vmatprep.subr.mxu0 0.0
    %584 = vmatpush1.xpose.msra.mxu0 0.0
    %585 = vmatprep.subr.mxu0 0.0
    %586 = vmatpush1.xpose.msra.mxu0 0.0
    %587 = vmatprep.subr.mxu0 0.0
    %588 = vmatpush1.xpose.msra.mxu0 0.0
    %589 = vmatprep.subr.mxu0 0.0
    %590 = vmatpush1.xpose.msra.mxu0 0.0
    %591 = vmatprep.subr.mxu0 0.0
    %592 = vmatpush1.xpose.msra.mxu0 0.0
    %593 = vmatprep.subr.mxu0 0.0
    %594 = vmatpush1.xpose.msra.mxu0 0.0
    %595 = vmatprep.subr.mxu0 0.0
    %596 = vmatpush1.xpose.msra.mxu0 0.0
    %597 = vmatprep.subr.mxu0 0.0
    %598 = vmatpush1.xpose.msra.mxu0 0.0
    %599 = vmatprep.subr.mxu0 0.0
    %600 = vmatpush1.xpose.msra.mxu0 0.0
    %601 = vmatprep.subr.mxu0 0.0
    %602 = vmatpush1.xpose.msra.mxu0 0.0
    %603 = vmatprep.subr.mxu0 0.0
    %604 = vmatpush1.xpose.msra.mxu0 0.0
    %605 = vmatprep.subr.mxu0 0.0
    %606 = vmatpush1.xpose.msra.mxu0 0.0
    %607 = vmatprep.subr.mxu0 0.0
    %608 = vmatpush1.xpose.msra.mxu0 0.0
    %609 = vmatprep.subr.mxu0 0.0
    %610 = vmatpush1.xpose.msra.mxu0 0.0
    %611 = vmatprep.subr.mxu0 0.0
    %612 = vmatpush1.xpose.msra.mxu0 0.0
    %613 = vmatprep.subr.mxu0 0.0
    %614 = vmatpush1.xpose.msra.mxu0 0.0
    %615 = vmatprep.subr.mxu0 0.0
    %616 = vmatpush1.xpose.msra.mxu0 0.0
    %617 = vmatprep.subr.mxu0 0.0
    %618 = vmatpush1.xpose.msra.mxu0 0.0
    %619 = vmatprep.subr.mxu0 0.0
    %620 = vmatpush1.xpose.msra.mxu0 0.0
    %621 = vmatprep.subr.mxu0 0.0
    %622 = vmatpush1.xpose.msra.mxu0 0.0
    %623 = vmatprep.subr.mxu0 0.0
    %624 = vmatpush1.xpose.msra.mxu0 0.0
    %625 = vmatprep.subr.mxu0 0.0
    %626 = vmatpush1.xpose.msra.mxu0 0.0
    %627 = vmatprep.subr.mxu0 0.0
    %628 = vmatpush1.xpose.msra.mxu0 0.0
    %629 = vmatprep.subr.mxu0 0.0
    %630 = vmatpush1.xpose.msra.mxu0 0.0
    %631 = vmatprep.subr.mxu0 0.0
    %632 = vmatpush1.xpose.msra.mxu0 0.0
    %633 = vmatprep.mubr.f32.mxu0 0.0
    %634 = vmatmul.mubr.f32.gmra.mrb[0].mxu0 %v565
    %v635 = vpop.f32.mrb[0].mxu0
    %v636 = vadd.f32 0.0, %v635
    %v637 = vpop.f32.mrb[0].mxu0
    %638 = vdwg.mxu0
    %639 = vrot.lane.b32.xlu0 %v327, 96
    %v640 = vpop.permute.xlu0 %639
    %v641 = vsel %vm336, %v327, 0
    %v643 = vsel %vm336, %v640, 0
    %645 = vmatprep.subr.mxu0 0.0
    %646 = vmatpush1.xpose.msra.mxu0 %v643
    %647 = vmatprep.subr.mxu0 0.0
    %648 = vmatpush1.xpose.msra.mxu0 0.0
    %649 = vmatprep.subr.mxu0 0.0
    %650 = vmatpush1.xpose.msra.mxu0 0.0
    %651 = vmatprep.subr.mxu0 0.0
    %652 = vmatpush1.xpose.msra.mxu0 0.0
    %653 = vmatprep.subr.mxu0 0.0
    %654 = vmatpush1.xpose.msra.mxu0 0.0
    %655 = vmatprep.subr.mxu0 0.0
    %656 = vmatpush1.xpose.msra.mxu0 0.0
    %657 = vmatprep.subr.mxu0 0.0
    %658 = vmatpush1.xpose.msra.mxu0 0.0
    %659 = vmatprep.subr.mxu0 0.0
    %660 = vmatpush1.xpose.msra.mxu0 0.0
    %661 = vmatprep.subr.mxu0 0.0
    %662 = vmatpush1.xpose.msra.mxu0 0.0
    %663 = vmatprep.subr.mxu0 0.0
    %664 = vmatpush1.xpose.msra.mxu0 0.0
    %665 = vmatprep.subr.mxu0 0.0
    %666 = vmatpush1.xpose.msra.mxu0 0.0
    %667 = vmatprep.subr.mxu0 0.0
    %668 = vmatpush1.xpose.msra.mxu0 0.0
    %669 = vmatprep.subr.mxu0 0.0
    %670 = vmatpush1.xpose.msra.mxu0 0.0
    %671 = vmatprep.subr.mxu0 0.0
    %672 = vmatpush1.xpose.msra.mxu0 0.0
    %673 = vmatprep.subr.mxu0 0.0
    %674 = vmatpush1.xpose.msra.mxu0 0.0
    %675 = vmatprep.subr.mxu0 0.0
    %676 = vmatpush1.xpose.msra.mxu0 0.0
    %677 = vmatprep.subr.mxu0 0.0
    %678 = vmatpush1.xpose.msra.mxu0 0.0
    %679 = vmatprep.subr.mxu0 0.0
    %680 = vmatpush1.xpose.msra.mxu0 0.0
    %681 = vmatprep.subr.mxu0 0.0
    %682 = vmatpush1.xpose.msra.mxu0 0.0
    %683 = vmatprep.subr.mxu0 0.0
    %684 = vmatpush1.xpose.msra.mxu0 0.0
    %685 = vmatprep.subr.mxu0 0.0
    %686 = vmatpush1.xpose.msra.mxu0 0.0
    %687 = vmatprep.subr.mxu0 0.0
    %688 = vmatpush1.xpose.msra.mxu0 0.0
    %689 = vmatprep.subr.mxu0 0.0
    %690 = vmatpush1.xpose.msra.mxu0 0.0
    %691 = vmatprep.subr.mxu0 0.0
    %692 = vmatpush1.xpose.msra.mxu0 0.0
    %693 = vmatprep.subr.mxu0 0.0
    %694 = vmatpush1.xpose.msra.mxu0 0.0
    %695 = vmatprep.subr.mxu0 0.0
    %696 = vmatpush1.xpose.msra.mxu0 0.0
    %697 = vmatprep.subr.mxu0 0.0
    %698 = vmatpush1.xpose.msra.mxu0 0.0
    %699 = vmatprep.subr.mxu0 0.0
    %700 = vmatpush1.xpose.msra.mxu0 0.0
    %701 = vmatprep.subr.mxu0 0.0
    %702 = vmatpush1.xpose.msra.mxu0 0.0
    %703 = vmatprep.subr.mxu0 0.0
    %704 = vmatpush1.xpose.msra.mxu0 0.0
    %705 = vmatprep.subr.mxu0 0.0
    %706 = vmatpush1.xpose.msra.mxu0 0.0
    %707 = vmatprep.subr.mxu0 0.0
    %708 = vmatpush1.xpose.msra.mxu0 0.0
    %709 = vmatprep.mubr.f32.mxu0 0.0
    %710 = vmatmul.mubr.f32.gmra.mrb[0].mxu0 %v641
    %v711 = vpop.f32.mrb[0].mxu0
    %v712 = vadd.f32 0.0, %v711
    %v713 = vpop.f32.mrb[0].mxu0
    %714 = vdwg.mxu0
    %715 = vrot.lane.b32.xlu0 %v329, 96
    %v716 = vpop.permute.xlu0 %715
    %v717 = vsel %vm336, %v329, 0
    %v719 = vsel %vm336, %v716, 0
    %721 = vmatprep.subr.mxu0 0.0
    %722 = vmatpush1.xpose.msra.mxu0 %v719
    %723 = vmatprep.subr.mxu0 0.0
    %724 = vmatpush1.xpose.msra.mxu0 0.0
    %725 = vmatprep.subr.mxu0 0.0
    %726 = vmatpush1.xpose.msra.mxu0 0.0
    %727 = vmatprep.subr.mxu0 0.0
    %728 = vmatpush1.xpose.msra.mxu0 0.0
    %729 = vmatprep.subr.mxu0 0.0
    %730 = vmatpush1.xpose.msra.mxu0 0.0
    %731 = vmatprep.subr.mxu0 0.0
    %732 = vmatpush1.xpose.msra.mxu0 0.0
    %733 = vmatprep.subr.mxu0 0.0
    %734 = vmatpush1.xpose.msra.mxu0 0.0
    %735 = vmatprep.subr.mxu0 0.0
    %736 = vmatpush1.xpose.msra.mxu0 0.0
    %737 = vmatprep.subr.mxu0 0.0
    %738 = vmatpush1.xpose.msra.mxu0 0.0
    %739 = vmatprep.subr.mxu0 0.0
    %740 = vmatpush1.xpose.msra.mxu0 0.0
    %741 = vmatprep.subr.mxu0 0.0
    %742 = vmatpush1.xpose.msra.mxu0 0.0
    %743 = vmatprep.subr.mxu0 0.0
    %744 = vmatpush1.xpose.msra.mxu0 0.0
    %745 = vmatprep.subr.mxu0 0.0
    %746 = vmatpush1.xpose.msra.mxu0 0.0
    %747 = vmatprep.subr.mxu0 0.0
    %748 = vmatpush1.xpose.msra.mxu0 0.0
    %749 = vmatprep.subr.mxu0 0.0
    %750 = vmatpush1.xpose.msra.mxu0 0.0
    %751 = vmatprep.subr.mxu0 0.0
    %752 = vmatpush1.xpose.msra.mxu0 0.0
    %753 = vmatprep.subr.mxu0 0.0
    %754 = vmatpush1.xpose.msra.mxu0 0.0
    %755 = vmatprep.subr.mxu0 0.0
    %756 = vmatpush1.xpose.msra.mxu0 0.0
    %757 = vmatprep.subr.mxu0 0.0
    %758 = vmatpush1.xpose.msra.mxu0 0.0
    %759 = vmatprep.subr.mxu0 0.0
    %760 = vmatpush1.xpose.msra.mxu0 0.0
    %761 = vmatprep.subr.mxu0 0.0
    %762 = vmatpush1.xpose.msra.mxu0 0.0
    %763 = vmatprep.subr.mxu0 0.0
    %764 = vmatpush1.xpose.msra.mxu0 0.0
    %765 = vmatprep.subr.mxu0 0.0
    %766 = vmatpush1.xpose.msra.mxu0 0.0
    %767 = vmatprep.subr.mxu0 0.0
    %768 = vmatpush1.xpose.msra.mxu0 0.0
    %769 = vmatprep.subr.mxu0 0.0
    %770 = vmatpush1.xpose.msra.mxu0 0.0
    %771 = vmatprep.subr.mxu0 0.0
    %772 = vmatpush1.xpose.msra.mxu0 0.0
    %773 = vmatprep.subr.mxu0 0.0
    %774 = vmatpush1.xpose.msra.mxu0 0.0
    %775 = vmatprep.subr.mxu0 0.0
    %776 = vmatpush1.xpose.msra.mxu0 0.0
    %777 = vmatprep.subr.mxu0 0.0
    %778 = vmatpush1.xpose.msra.mxu0 0.0
    %779 = vmatprep.subr.mxu0 0.0
    %780 = vmatpush1.xpose.msra.mxu0 0.0
    %781 = vmatprep.subr.mxu0 0.0
    %782 = vmatpush1.xpose.msra.mxu0 0.0
    %783 = vmatprep.subr.mxu0 0.0
    %784 = vmatpush1.xpose.msra.mxu0 0.0
    %785 = vmatprep.mubr.f32.mxu0 0.0
    %786 = vmatmul.mubr.f32.gmra.mrb[0].mxu0 %v717
    %v787 = vpop.f32.mrb[0].mxu0
    %v788 = vadd.f32 0.0, %v787
    %v789 = vpop.f32.mrb[0].mxu0
    %790 = vdwg.mxu0
    %791 = vrot.lane.b32.xlu0 %v331, 96
    %v792 = vpop.permute.xlu0 %791
    %v793 = vsel %vm336, %v331, 0
    %v795 = vsel %vm336, %v792, 0
    %797 = vmatprep.subr.mxu0 0.0
    %798 = vmatpush1.xpose.msra.mxu0 %v795
    %799 = vmatprep.subr.mxu0 0.0
    %800 = vmatpush1.xpose.msra.mxu0 0.0
    %801 = vmatprep.subr.mxu0 0.0
    %802 = vmatpush1.xpose.msra.mxu0 0.0
    %803 = vmatprep.subr.mxu0 0.0
    %804 = vmatpush1.xpose.msra.mxu0 0.0
    %805 = vmatprep.subr.mxu0 0.0
    %806 = vmatpush1.xpose.msra.mxu0 0.0
    %807 = vmatprep.subr.mxu0 0.0
    %808 = vmatpush1.xpose.msra.mxu0 0.0
    %809 = vmatprep.subr.mxu0 0.0
    %810 = vmatpush1.xpose.msra.mxu0 0.0
    %811 = vmatprep.subr.mxu0 0.0
    %812 = vmatpush1.xpose.msra.mxu0 0.0
    %813 = vmatprep.subr.mxu0 0.0
    %814 = vmatpush1.xpose.msra.mxu0 0.0
    %815 = vmatprep.subr.mxu0 0.0
    %816 = vmatpush1.xpose.msra.mxu0 0.0
    %817 = vmatprep.subr.mxu0 0.0
    %818 = vmatpush1.xpose.msra.mxu0 0.0
    %819 = vmatprep.subr.mxu0 0.0
    %820 = vmatpush1.xpose.msra.mxu0 0.0
    %821 = vmatprep.subr.mxu0 0.0
    %822 = vmatpush1.xpose.msra.mxu0 0.0
    %823 = vmatprep.subr.mxu0 0.0
    %824 = vmatpush1.xpose.msra.mxu0 0.0
    %825 = vmatprep.subr.mxu0 0.0
    %826 = vmatpush1.xpose.msra.mxu0 0.0
    %827 = vmatprep.subr.mxu0 0.0
    %828 = vmatpush1.xpose.msra.mxu0 0.0
    %829 = vmatprep.subr.mxu0 0.0
    %830 = vmatpush1.xpose.msra.mxu0 0.0
    %831 = vmatprep.subr.mxu0 0.0
    %832 = vmatpush1.xpose.msra.mxu0 0.0
    %833 = vmatprep.subr.mxu0 0.0
    %834 = vmatpush1.xpose.msra.mxu0 0.0
    %835 = vmatprep.subr.mxu0 0.0
    %836 = vmatpush1.xpose.msra.mxu0 0.0
    %837 = vmatprep.subr.mxu0 0.0
    %838 = vmatpush1.xpose.msra.mxu0 0.0
    %839 = vmatprep.subr.mxu0 0.0
    %840 = vmatpush1.xpose.msra.mxu0 0.0
    %841 = vmatprep.subr.mxu0 0.0
    %842 = vmatpush1.xpose.msra.mxu0 0.0
    %843 = vmatprep.subr.mxu0 0.0
    %844 = vmatpush1.xpose.msra.mxu0 0.0
    %845 = vmatprep.subr.mxu0 0.0
    %846 = vmatpush1.xpose.msra.mxu0 0.0
    %847 = vmatprep.subr.mxu0 0.0
    %848 = vmatpush1.xpose.msra.mxu0 0.0
    %849 = vmatprep.subr.mxu0 0.0
    %850 = vmatpush1.xpose.msra.mxu0 0.0
    %851 = vmatprep.subr.mxu0 0.0
    %852 = vmatpush1.xpose.msra.mxu0 0.0
    %853 = vmatprep.subr.mxu0 0.0
    %854 = vmatpush1.xpose.msra.mxu0 0.0
    %855 = vmatprep.subr.mxu0 0.0
    %856 = vmatpush1.xpose.msra.mxu0 0.0
    %857 = vmatprep.subr.mxu0 0.0
    %858 = vmatpush1.xpose.msra.mxu0 0.0
    %859 = vmatprep.subr.mxu0 0.0
    %860 = vmatpush1.xpose.msra.mxu0 0.0
    %861 = vmatprep.mubr.f32.mxu0 0.0
    %862 = vmatmul.mubr.f32.gmra.mrb[0].mxu0 %v793
    %v863 = vpop.f32.mrb[0].mxu0
    %v864 = vadd.f32 0.0, %v863
    %v865 = vpop.f32.mrb[0].mxu0
    %866 = vdwg.mxu0
    %867 = vrot.lane.b32.xlu0 %v333, 96
    %v868 = vpop.permute.xlu0 %867
    %v869 = vsel %vm336, %v333, 0
    %v871 = vsel %vm336, %v868, 0
    %873 = vmatprep.subr.mxu0 0.0
    %874 = vmatpush1.xpose.msra.mxu0 %v871
    %875 = vmatprep.subr.mxu0 0.0
    %876 = vmatpush1.xpose.msra.mxu0 0.0
    %877 = vmatprep.subr.mxu0 0.0
    %878 = vmatpush1.xpose.msra.mxu0 0.0
    %879 = vmatprep.subr.mxu0 0.0
    %880 = vmatpush1.xpose.msra.mxu0 0.0
    %881 = vmatprep.subr.mxu0 0.0
    %882 = vmatpush1.xpose.msra.mxu0 0.0
    %883 = vmatprep.subr.mxu0 0.0
    %884 = vmatpush1.xpose.msra.mxu0 0.0
    %885 = vmatprep.subr.mxu0 0.0
    %886 = vmatpush1.xpose.msra.mxu0 0.0
    %887 = vmatprep.subr.mxu0 0.0
    %888 = vmatpush1.xpose.msra.mxu0 0.0
    %889 = vmatprep.subr.mxu0 0.0
    %890 = vmatpush1.xpose.msra.mxu0 0.0
    %891 = vmatprep.subr.mxu0 0.0
    %892 = vmatpush1.xpose.msra.mxu0 0.0
    %893 = vmatprep.subr.mxu0 0.0
    %894 = vmatpush1.xpose.msra.mxu0 0.0
    %895 = vmatprep.subr.mxu0 0.0
    %896 = vmatpush1.xpose.msra.mxu0 0.0
    %897 = vmatprep.subr.mxu0 0.0
    %898 = vmatpush1.xpose.msra.mxu0 0.0
    %899 = vmatprep.subr.mxu0 0.0
    %900 = vmatpush1.xpose.msra.mxu0 0.0
    %901 = vmatprep.subr.mxu0 0.0
    %902 = vmatpush1.xpose.msra.mxu0 0.0
    %903 = vmatprep.subr.mxu0 0.0
    %904 = vmatpush1.xpose.msra.mxu0 0.0
    %905 = vmatprep.subr.mxu0 0.0
    %906 = vmatpush1.xpose.msra.mxu0 0.0
    %907 = vmatprep.subr.mxu0 0.0
    %908 = vmatpush1.xpose.msra.mxu0 0.0
    %909 = vmatprep.subr.mxu0 0.0
    %910 = vmatpush1.xpose.msra.mxu0 0.0
    %911 = vmatprep.subr.mxu0 0.0
    %912 = vmatpush1.xpose.msra.mxu0 0.0
    %913 = vmatprep.subr.mxu0 0.0
    %914 = vmatpush1.xpose.msra.mxu0 0.0
    %915 = vmatprep.subr.mxu0 0.0
    %916 = vmatpush1.xpose.msra.mxu0 0.0
    %917 = vmatprep.subr.mxu0 0.0
    %918 = vmatpush1.xpose.msra.mxu0 0.0
    %919 = vmatprep.subr.mxu0 0.0
    %920 = vmatpush1.xpose.msra.mxu0 0.0
    %921 = vmatprep.subr.mxu0 0.0
    %922 = vmatpush1.xpose.msra.mxu0 0.0
    %923 = vmatprep.subr.mxu0 0.0
    %924 = vmatpush1.xpose.msra.mxu0 0.0
    %925 = vmatprep.subr.mxu0 0.0
    %926 = vmatpush1.xpose.msra.mxu0 0.0
    %927 = vmatprep.subr.mxu0 0.0
    %928 = vmatpush1.xpose.msra.mxu0 0.0
    %929 = vmatprep.subr.mxu0 0.0
    %930 = vmatpush1.xpose.msra.mxu0 0.0
    %931 = vmatprep.subr.mxu0 0.0
    %932 = vmatpush1.xpose.msra.mxu0 0.0
    %933 = vmatprep.subr.mxu0 0.0
    %934 = vmatpush1.xpose.msra.mxu0 0.0
    %935 = vmatprep.subr.mxu0 0.0
    %936 = vmatpush1.xpose.msra.mxu0 0.0
    %937 = vmatprep.mubr.f32.mxu0 0.0
    %938 = vmatmul.mubr.f32.gmra.mrb[0].mxu0 %v869
    %v939 = vpop.f32.mrb[0].mxu0
    %v940 = vadd.f32 0.0, %v939
    %v941 = vpop.f32.mrb[0].mxu0
    %942 = vdwg.mxu0
    %v943 = vmul.f32 %v408, 0.35355338
    %v944 = vmul.f32 %v484, 0.35355338
    %v945 = vmul.f32 %v560, 0.35355338
    %v946 = vmul.f32 %v636, 0.35355338
    %v947 = vmul.f32 %v712, 0.35355338
    %v948 = vmul.f32 %v788, 0.35355338
    %v949 = vmul.f32 %v864, 0.35355338
    %v950 = vmul.f32 %v940, 0.35355338
    %v951 = vsel %vm189, %v943, -1e+30
    %v952 = vsel %vm189, %v944, -1e+30
    %v953 = vsel %vm189, %v945, -1e+30
    %v954 = vsel %vm189, %v946, -1e+30
    %v955 = vsel %vm189, %v947, -1e+30
    %v956 = vsel %vm189, %v948, -1e+30
    %v957 = vsel %vm189, %v949, -1e+30
    %v958 = vsel %vm189, %v950, -1e+30
    %v959 = vsel %vm336, %v951, -inf
    %960 = vmax.xlane.f32.xlu0 %v959
    %v961 = vpop.xlane.xlu0 %960
    %v962 = vsel %vm336, %v952, -inf
    %963 = vmax.xlane.f32.xlu0 %v962
    %v964 = vpop.xlane.xlu0 %963
    %v965 = vsel %vm336, %v953, -inf
    %966 = vmax.xlane.f32.xlu0 %v965
    %v967 = vpop.xlane.xlu0 %966
    %v968 = vsel %vm336, %v954, -inf
    %969 = vmax.xlane.f32.xlu0 %v968
    %v970 = vpop.xlane.xlu0 %969
    %v971 = vsel %vm336, %v955, -inf
    %972 = vmax.xlane.f32.xlu0 %v971
    %v973 = vpop.xlane.xlu0 %972
    %v974 = vsel %vm336, %v956, -inf
    %975 = vmax.xlane.f32.xlu0 %v974
    %v976 = vpop.xlane.xlu0 %975
    %v977 = vsel %vm336, %v957, -inf
    %978 = vmax.xlane.f32.xlu0 %v977
    %v979 = vpop.xlane.xlu0 %978
    %v980 = vsel %vm336, %v958, -inf
    %981 = vmax.xlane.f32.xlu0 %v980
    %v982 = vpop.xlane.xlu0 %981
    %v983 = vsub.f32 %v951, %v961
    %v984 = vsub.f32 %v952, %v964
    %v985 = vsub.f32 %v953, %v967
    %v986 = vsub.f32 %v954, %v970
    %v987 = vsub.f32 %v955, %v973
    %v988 = vsub.f32 %v956, %v976
    %v989 = vsub.f32 %v957, %v979
    %v990 = vsub.f32 %v958, %v982
    %v991 = vmul.f32 %v983, 1.442695
    %v992 = vpow.pop %v991
    %v993 = vmul.f32 %v984, 1.442695
    %v994 = vpow.pop %v993
    %v995 = vmul.f32 %v985, 1.442695
    %v996 = vpow.pop %v995
    %v997 = vmul.f32 %v986, 1.442695
    %v998 = vpow.pop %v997
    %v999 = vmul.f32 %v987, 1.442695
    %v1000 = vpow.pop %v999
    %v1001 = vmul.f32 %v988, 1.442695
    %v1002 = vpow.pop %v1001
    %v1003 = vmul.f32 %v989, 1.442695
    %v1004 = vpow.pop %v1003
    %v1005 = vmul.f32 %v990, 1.442695
    %v1006 = vpow.pop %v1005
    %v1007 = vsel %vm336, %v992, 0.0
    %1008 = vadd.xlane.f32.xlu0 %v1007
    %v1009 = vpop.xlane.xlu0 %1008
    %v1010 = vsel %vm336, %v994, 0.0
    %1011 = vadd.xlane.f32.xlu0 %v1010
    %v1012 = vpop.xlane.xlu0 %1011
    %v1013 = vsel %vm336, %v996, 0.0
    %1014 = vadd.xlane.f32.xlu0 %v1013
    %v1015 = vpop.xlane.xlu0 %1014
    %v1016 = vsel %vm336, %v998, 0.0
    %1017 = vadd.xlane.f32.xlu0 %v1016
    %v1018 = vpop.xlane.xlu0 %1017
    %v1019 = vsel %vm336, %v1000, 0.0
    %1020 = vadd.xlane.f32.xlu0 %v1019
    %v1021 = vpop.xlane.xlu0 %1020
    %v1022 = vsel %vm336, %v1002, 0.0
    %1023 = vadd.xlane.f32.xlu0 %v1022
    %v1024 = vpop.xlane.xlu0 %1023
    %v1025 = vsel %vm336, %v1004, 0.0
    %1026 = vadd.xlane.f32.xlu0 %v1025
    %v1027 = vpop.xlane.xlu0 %1026
    %v1028 = vsel %vm336, %v1006, 0.0
    %1029 = vadd.xlane.f32.xlu0 %v1028
    %v1030 = vpop.xlane.xlu0 %1029
    %v1031 = vrcp.pop %v1009
    %v1032 = vrcp.pop %v1012
    %v1033 = vrcp.pop %v1015
    %v1034 = vrcp.pop %v1018
    %v1035 = vrcp.pop %v1021
    %v1036 = vrcp.pop %v1024
    %v1037 = vrcp.pop %v1027
    %v1038 = vrcp.pop %v1030
    %v1039 = vmul.f32 %v992, %v1031
    %v1040 = vmul.f32 %v994, %v1032
    %v1041 = vmul.f32 %v996, %v1033
    %v1042 = vmul.f32 %v998, %v1034
    %v1043 = vmul.f32 %v1000, %v1035
    %v1044 = vmul.f32 %v1002, %v1036
    %v1045 = vmul.f32 %v1004, %v1037
    %v1046 = vmul.f32 %v1006, %v1038
    %1047 = vrot.lane.b32.xlu0 %v312, 64
    %v1048 = vpop.permute.xlu0 %1047
    %v1051 = vsel %vm336, %v1039, 0
    %1053 = vmatprep.subr.mxu0 0.0
    %1054 = vmatpush1.msra.mxu0 %v1048
    %1055 = vmatprep.subr.mxu0 0.0
    %1056 = vmatpush1.msra.mxu0 0.0
    %1057 = vmatprep.subr.mxu0 0.0
    %1058 = vmatpush1.msra.mxu0 0.0
    %1059 = vmatprep.subr.mxu0 0.0
    %1060 = vmatpush1.msra.mxu0 0.0
    %1061 = vmatprep.subr.mxu0 0.0
    %1062 = vmatpush1.msra.mxu0 0.0
    %1063 = vmatprep.subr.mxu0 0.0
    %1064 = vmatpush1.msra.mxu0 0.0
    %1065 = vmatprep.subr.mxu0 0.0
    %1066 = vmatpush1.msra.mxu0 0.0
    %1067 = vmatprep.subr.mxu0 0.0
    %1068 = vmatpush1.msra.mxu0 0.0
    %1069 = vmatprep.subr.mxu0 0.0
    %1070 = vmatpush1.msra.mxu0 0.0
    %1071 = vmatprep.subr.mxu0 0.0
    %1072 = vmatpush1.msra.mxu0 0.0
    %1073 = vmatprep.subr.mxu0 0.0
    %1074 = vmatpush1.msra.mxu0 0.0
    %1075 = vmatprep.subr.mxu0 0.0
    %1076 = vmatpush1.msra.mxu0 0.0
    %1077 = vmatprep.subr.mxu0 0.0
    %1078 = vmatpush1.msra.mxu0 0.0
    %1079 = vmatprep.subr.mxu0 0.0
    %1080 = vmatpush1.msra.mxu0 0.0
    %1081 = vmatprep.subr.mxu0 0.0
    %1082 = vmatpush1.msra.mxu0 0.0
    %1083 = vmatprep.subr.mxu0 0.0
    %1084 = vmatpush1.msra.mxu0 0.0
    %1085 = vmatprep.subr.mxu0 0.0
    %1086 = vmatpush1.msra.mxu0 0.0
    %1087 = vmatprep.subr.mxu0 0.0
    %1088 = vmatpush1.msra.mxu0 0.0
    %1089 = vmatprep.subr.mxu0 0.0
    %1090 = vmatpush1.msra.mxu0 0.0
    %1091 = vmatprep.subr.mxu0 0.0
    %1092 = vmatpush1.msra.mxu0 0.0
    %1093 = vmatprep.subr.mxu0 0.0
    %1094 = vmatpush1.msra.mxu0 0.0
    %1095 = vmatprep.subr.mxu0 0.0
    %1096 = vmatpush1.msra.mxu0 0.0
    %1097 = vmatprep.subr.mxu0 0.0
    %1098 = vmatpush1.msra.mxu0 0.0
    %1099 = vmatprep.subr.mxu0 0.0
    %1100 = vmatpush1.msra.mxu0 0.0
    %1101 = vmatprep.subr.mxu0 0.0
    %1102 = vmatpush1.msra.mxu0 0.0
    %1103 = vmatprep.subr.mxu0 0.0
    %1104 = vmatpush1.msra.mxu0 0.0
    %1105 = vmatprep.subr.mxu0 0.0
    %1106 = vmatpush1.msra.mxu0 0.0
    %1107 = vmatprep.subr.mxu0 0.0
    %1108 = vmatpush1.msra.mxu0 0.0
    %1109 = vmatprep.subr.mxu0 0.0
    %1110 = vmatpush1.msra.mxu0 0.0
    %1111 = vmatprep.subr.mxu0 0.0
    %1112 = vmatpush1.msra.mxu0 0.0
    %1113 = vmatprep.subr.mxu0 0.0
    %1114 = vmatpush1.msra.mxu0 0.0
    %1115 = vmatprep.subr.mxu0 0.0
    %1116 = vmatpush1.msra.mxu0 0.0
    %1117 = vmatprep.mubr.f32.mxu0 0.0
    %1118 = vmatmul.mubr.f32.gmra.mrb[0].mxu0 %v1051
    %v1119 = vpop.f32.mrb[0].mxu0
    %v1120 = vadd.f32 0.0, %v1119
    %v1121 = vpop.f32.mrb[0].mxu0
    %1122 = vdwg.mxu0
    %1123 = vrot.lane.b32.xlu0 %v317, 64
    %v1124 = vpop.permute.xlu0 %1123
    %v1127 = vsel %vm336, %v1040, 0
    %1129 = vmatprep.subr.mxu0 0.0
    %1130 = vmatpush1.msra.mxu0 %v1124
    %1131 = vmatprep.subr.mxu0 0.0
    %1132 = vmatpush1.msra.mxu0 0.0
    %1133 = vmatprep.subr.mxu0 0.0
    %1134 = vmatpush1.msra.mxu0 0.0
    %1135 = vmatprep.subr.mxu0 0.0
    %1136 = vmatpush1.msra.mxu0 0.0
    %1137 = vmatprep.subr.mxu0 0.0
    %1138 = vmatpush1.msra.mxu0 0.0
    %1139 = vmatprep.subr.mxu0 0.0
    %1140 = vmatpush1.msra.mxu0 0.0
    %1141 = vmatprep.subr.mxu0 0.0
    %1142 = vmatpush1.msra.mxu0 0.0
    %1143 = vmatprep.subr.mxu0 0.0
    %1144 = vmatpush1.msra.mxu0 0.0
    %1145 = vmatprep.subr.mxu0 0.0
    %1146 = vmatpush1.msra.mxu0 0.0
    %1147 = vmatprep.subr.mxu0 0.0
    %1148 = vmatpush1.msra.mxu0 0.0
    %1149 = vmatprep.subr.mxu0 0.0
    %1150 = vmatpush1.msra.mxu0 0.0
    %1151 = vmatprep.subr.mxu0 0.0
    %1152 = vmatpush1.msra.mxu0 0.0
    %1153 = vmatprep.subr.mxu0 0.0
    %1154 = vmatpush1.msra.mxu0 0.0
    %1155 = vmatprep.subr.mxu0 0.0
    %1156 = vmatpush1.msra.mxu0 0.0
    %1157 = vmatprep.subr.mxu0 0.0
    %1158 = vmatpush1.msra.mxu0 0.0
    %1159 = vmatprep.subr.mxu0 0.0
    %1160 = vmatpush1.msra.mxu0 0.0
    %1161 = vmatprep.subr.mxu0 0.0
    %1162 = vmatpush1.msra.mxu0 0.0
    %1163 = vmatprep.subr.mxu0 0.0
    %1164 = vmatpush1.msra.mxu0 0.0
    %1165 = vmatprep.subr.mxu0 0.0
    %1166 = vmatpush1.msra.mxu0 0.0
    %1167 = vmatprep.subr.mxu0 0.0
    %1168 = vmatpush1.msra.mxu0 0.0
    %1169 = vmatprep.subr.mxu0 0.0
    %1170 = vmatpush1.msra.mxu0 0.0
    %1171 = vmatprep.subr.mxu0 0.0
    %1172 = vmatpush1.msra.mxu0 0.0
    %1173 = vmatprep.subr.mxu0 0.0
    %1174 = vmatpush1.msra.mxu0 0.0
    %1175 = vmatprep.subr.mxu0 0.0
    %1176 = vmatpush1.msra.mxu0 0.0
    %1177 = vmatprep.subr.mxu0 0.0
    %1178 = vmatpush1.msra.mxu0 0.0
    %1179 = vmatprep.subr.mxu0 0.0
    %1180 = vmatpush1.msra.mxu0 0.0
    %1181 = vmatprep.subr.mxu0 0.0
    %1182 = vmatpush1.msra.mxu0 0.0
    %1183 = vmatprep.subr.mxu0 0.0
    %1184 = vmatpush1.msra.mxu0 0.0
    %1185 = vmatprep.subr.mxu0 0.0
    %1186 = vmatpush1.msra.mxu0 0.0
    %1187 = vmatprep.subr.mxu0 0.0
    %1188 = vmatpush1.msra.mxu0 0.0
    %1189 = vmatprep.subr.mxu0 0.0
    %1190 = vmatpush1.msra.mxu0 0.0
    %1191 = vmatprep.subr.mxu0 0.0
    %1192 = vmatpush1.msra.mxu0 0.0
    %1193 = vmatprep.mubr.f32.mxu0 0.0
    %1194 = vmatmul.mubr.f32.gmra.mrb[0].mxu0 %v1127
    %v1195 = vpop.f32.mrb[0].mxu0
    %v1196 = vadd.f32 0.0, %v1195
    %v1197 = vpop.f32.mrb[0].mxu0
    %1198 = vdwg.mxu0
    %1199 = vrot.lane.b32.xlu0 %v323, 64
    %v1200 = vpop.permute.xlu0 %1199
    %v1203 = vsel %vm336, %v1041, 0
    %1205 = vmatprep.subr.mxu0 0.0
    %1206 = vmatpush1.msra.mxu0 %v1200
    %1207 = vmatprep.subr.mxu0 0.0
    %1208 = vmatpush1.msra.mxu0 0.0
    %1209 = vmatprep.subr.mxu0 0.0
    %1210 = vmatpush1.msra.mxu0 0.0
    %1211 = vmatprep.subr.mxu0 0.0
    %1212 = vmatpush1.msra.mxu0 0.0
    %1213 = vmatprep.subr.mxu0 0.0
    %1214 = vmatpush1.msra.mxu0 0.0
    %1215 = vmatprep.subr.mxu0 0.0
    %1216 = vmatpush1.msra.mxu0 0.0
    %1217 = vmatprep.subr.mxu0 0.0
    %1218 = vmatpush1.msra.mxu0 0.0
    %1219 = vmatprep.subr.mxu0 0.0
    %1220 = vmatpush1.msra.mxu0 0.0
    %1221 = vmatprep.subr.mxu0 0.0
    %1222 = vmatpush1.msra.mxu0 0.0
    %1223 = vmatprep.subr.mxu0 0.0
    %1224 = vmatpush1.msra.mxu0 0.0
    %1225 = vmatprep.subr.mxu0 0.0
    %1226 = vmatpush1.msra.mxu0 0.0
    %1227 = vmatprep.subr.mxu0 0.0
    %1228 = vmatpush1.msra.mxu0 0.0
    %1229 = vmatprep.subr.mxu0 0.0
    %1230 = vmatpush1.msra.mxu0 0.0
    %1231 = vmatprep.subr.mxu0 0.0
    %1232 = vmatpush1.msra.mxu0 0.0
    %1233 = vmatprep.subr.mxu0 0.0
    %1234 = vmatpush1.msra.mxu0 0.0
    %1235 = vmatprep.subr.mxu0 0.0
    %1236 = vmatpush1.msra.mxu0 0.0
    %1237 = vmatprep.subr.mxu0 0.0
    %1238 = vmatpush1.msra.mxu0 0.0
    %1239 = vmatprep.subr.mxu0 0.0
    %1240 = vmatpush1.msra.mxu0 0.0
    %1241 = vmatprep.subr.mxu0 0.0
    %1242 = vmatpush1.msra.mxu0 0.0
    %1243 = vmatprep.subr.mxu0 0.0
    %1244 = vmatpush1.msra.mxu0 0.0
    %1245 = vmatprep.subr.mxu0 0.0
    %1246 = vmatpush1.msra.mxu0 0.0
    %1247 = vmatprep.subr.mxu0 0.0
    %1248 = vmatpush1.msra.mxu0 0.0
    %1249 = vmatprep.subr.mxu0 0.0
    %1250 = vmatpush1.msra.mxu0 0.0
    %1251 = vmatprep.subr.mxu0 0.0
    %1252 = vmatpush1.msra.mxu0 0.0
    %1253 = vmatprep.subr.mxu0 0.0
    %1254 = vmatpush1.msra.mxu0 0.0
    %1255 = vmatprep.subr.mxu0 0.0
    %1256 = vmatpush1.msra.mxu0 0.0
    %1257 = vmatprep.subr.mxu0 0.0
    %1258 = vmatpush1.msra.mxu0 0.0
    %1259 = vmatprep.subr.mxu0 0.0
    %1260 = vmatpush1.msra.mxu0 0.0
    %1261 = vmatprep.subr.mxu0 0.0
    %1262 = vmatpush1.msra.mxu0 0.0
    %1263 = vmatprep.subr.mxu0 0.0
    %1264 = vmatpush1.msra.mxu0 0.0
    %1265 = vmatprep.subr.mxu0 0.0
    %1266 = vmatpush1.msra.mxu0 0.0
    %1267 = vmatprep.subr.mxu0 0.0
    %1268 = vmatpush1.msra.mxu0 0.0
    %1269 = vmatprep.mubr.f32.mxu0 0.0
    %1270 = vmatmul.mubr.f32.gmra.mrb[0].mxu0 %v1203
    %v1271 = vpop.f32.mrb[0].mxu0
    %v1272 = vadd.f32 0.0, %v1271
    %v1273 = vpop.f32.mrb[0].mxu0
    %1274 = vdwg.mxu0
    %1275 = vrot.lane.b32.xlu0 %v325, 64
    %v1276 = vpop.permute.xlu0 %1275
    %v1279 = vsel %vm336, %v1042, 0
    %1281 = vmatprep.subr.mxu0 0.0
    %1282 = vmatpush1.msra.mxu0 %v1276
    %1283 = vmatprep.subr.mxu0 0.0
    %1284 = vmatpush1.msra.mxu0 0.0
    %1285 = vmatprep.subr.mxu0 0.0
    %1286 = vmatpush1.msra.mxu0 0.0
    %1287 = vmatprep.subr.mxu0 0.0
    %1288 = vmatpush1.msra.mxu0 0.0
    %1289 = vmatprep.subr.mxu0 0.0
    %1290 = vmatpush1.msra.mxu0 0.0
    %1291 = vmatprep.subr.mxu0 0.0
    %1292 = vmatpush1.msra.mxu0 0.0
    %1293 = vmatprep.subr.mxu0 0.0
    %1294 = vmatpush1.msra.mxu0 0.0
    %1295 = vmatprep.subr.mxu0 0.0
    %1296 = vmatpush1.msra.mxu0 0.0
    %1297 = vmatprep.subr.mxu0 0.0
    %1298 = vmatpush1.msra.mxu0 0.0
    %1299 = vmatprep.subr.mxu0 0.0
    %1300 = vmatpush1.msra.mxu0 0.0
    %1301 = vmatprep.subr.mxu0 0.0
    %1302 = vmatpush1.msra.mxu0 0.0
    %1303 = vmatprep.subr.mxu0 0.0
    %1304 = vmatpush1.msra.mxu0 0.0
    %1305 = vmatprep.subr.mxu0 0.0
    %1306 = vmatpush1.msra.mxu0 0.0
    %1307 = vmatprep.subr.mxu0 0.0
    %1308 = vmatpush1.msra.mxu0 0.0
    %1309 = vmatprep.subr.mxu0 0.0
    %1310 = vmatpush1.msra.mxu0 0.0
    %1311 = vmatprep.subr.mxu0 0.0
    %1312 = vmatpush1.msra.mxu0 0.0
    %1313 = vmatprep.subr.mxu0 0.0
    %1314 = vmatpush1.msra.mxu0 0.0
    %1315 = vmatprep.subr.mxu0 0.0
    %1316 = vmatpush1.msra.mxu0 0.0
    %1317 = vmatprep.subr.mxu0 0.0
    %1318 = vmatpush1.msra.mxu0 0.0
    %1319 = vmatprep.subr.mxu0 0.0
    %1320 = vmatpush1.msra.mxu0 0.0
    %1321 = vmatprep.subr.mxu0 0.0
    %1322 = vmatpush1.msra.mxu0 0.0
    %1323 = vmatprep.subr.mxu0 0.0
    %1324 = vmatpush1.msra.mxu0 0.0
    %1325 = vmatprep.subr.mxu0 0.0
    %1326 = vmatpush1.msra.mxu0 0.0
    %1327 = vmatprep.subr.mxu0 0.0
    %1328 = vmatpush1.msra.mxu0 0.0
    %1329 = vmatprep.subr.mxu0 0.0
    %1330 = vmatpush1.msra.mxu0 0.0
    %1331 = vmatprep.subr.mxu0 0.0
    %1332 = vmatpush1.msra.mxu0 0.0
    %1333 = vmatprep.subr.mxu0 0.0
    %1334 = vmatpush1.msra.mxu0 0.0
    %1335 = vmatprep.subr.mxu0 0.0
    %1336 = vmatpush1.msra.mxu0 0.0
    %1337 = vmatprep.subr.mxu0 0.0
    %1338 = vmatpush1.msra.mxu0 0.0
    %1339 = vmatprep.subr.mxu0 0.0
    %1340 = vmatpush1.msra.mxu0 0.0
    %1341 = vmatprep.subr.mxu0 0.0
    %1342 = vmatpush1.msra.mxu0 0.0
    %1343 = vmatprep.subr.mxu0 0.0
    %1344 = vmatpush1.msra.mxu0 0.0
    %1345 = vmatprep.mubr.f32.mxu0 0.0
    %1346 = vmatmul.mubr.f32.gmra.mrb[0].mxu0 %v1279
    %v1347 = vpop.f32.mrb[0].mxu0
    %v1348 = vadd.f32 0.0, %v1347
    %v1349 = vpop.f32.mrb[0].mxu0
    %1350 = vdwg.mxu0
    %1351 = vrot.lane.b32.xlu0 %v327, 64
    %v1352 = vpop.permute.xlu0 %1351
    %v1355 = vsel %vm336, %v1043, 0
    %1357 = vmatprep.subr.mxu0 0.0
    %1358 = vmatpush1.msra.mxu0 %v1352
    %1359 = vmatprep.subr.mxu0 0.0
    %1360 = vmatpush1.msra.mxu0 0.0
    %1361 = vmatprep.subr.mxu0 0.0
    %1362 = vmatpush1.msra.mxu0 0.0
    %1363 = vmatprep.subr.mxu0 0.0
    %1364 = vmatpush1.msra.mxu0 0.0
    %1365 = vmatprep.subr.mxu0 0.0
    %1366 = vmatpush1.msra.mxu0 0.0
    %1367 = vmatprep.subr.mxu0 0.0
    %1368 = vmatpush1.msra.mxu0 0.0
    %1369 = vmatprep.subr.mxu0 0.0
    %1370 = vmatpush1.msra.mxu0 0.0
    %1371 = vmatprep.subr.mxu0 0.0
    %1372 = vmatpush1.msra.mxu0 0.0
    %1373 = vmatprep.subr.mxu0 0.0
    %1374 = vmatpush1.msra.mxu0 0.0
    %1375 = vmatprep.subr.mxu0 0.0
    %1376 = vmatpush1.msra.mxu0 0.0
    %1377 = vmatprep.subr.mxu0 0.0
    %1378 = vmatpush1.msra.mxu0 0.0
    %1379 = vmatprep.subr.mxu0 0.0
    %1380 = vmatpush1.msra.mxu0 0.0
    %1381 = vmatprep.subr.mxu0 0.0
    %1382 = vmatpush1.msra.mxu0 0.0
    %1383 = vmatprep.subr.mxu0 0.0
    %1384 = vmatpush1.msra.mxu0 0.0
    %1385 = vmatprep.subr.mxu0 0.0
    %1386 = vmatpush1.msra.mxu0 0.0
    %1387 = vmatprep.subr.mxu0 0.0
    %1388 = vmatpush1.msra.mxu0 0.0
    %1389 = vmatprep.subr.mxu0 0.0
    %1390 = vmatpush1.msra.mxu0 0.0
    %1391 = vmatprep.subr.mxu0 0.0
    %1392 = vmatpush1.msra.mxu0 0.0
    %1393 = vmatprep.subr.mxu0 0.0
    %1394 = vmatpush1.msra.mxu0 0.0
    %1395 = vmatprep.subr.mxu0 0.0
    %1396 = vmatpush1.msra.mxu0 0.0
    %1397 = vmatprep.subr.mxu0 0.0
    %1398 = vmatpush1.msra.mxu0 0.0
    %1399 = vmatprep.subr.mxu0 0.0
    %1400 = vmatpush1.msra.mxu0 0.0
    %1401 = vmatprep.subr.mxu0 0.0
    %1402 = vmatpush1.msra.mxu0 0.0
    %1403 = vmatprep.subr.mxu0 0.0
    %1404 = vmatpush1.msra.mxu0 0.0
    %1405 = vmatprep.subr.mxu0 0.0
    %1406 = vmatpush1.msra.mxu0 0.0
    %1407 = vmatprep.subr.mxu0 0.0
    %1408 = vmatpush1.msra.mxu0 0.0
    %1409 = vmatprep.subr.mxu0 0.0
    %1410 = vmatpush1.msra.mxu0 0.0
    %1411 = vmatprep.subr.mxu0 0.0
    %1412 = vmatpush1.msra.mxu0 0.0
    %1413 = vmatprep.subr.mxu0 0.0
    %1414 = vmatpush1.msra.mxu0 0.0
    %1415 = vmatprep.subr.mxu0 0.0
    %1416 = vmatpush1.msra.mxu0 0.0
    %1417 = vmatprep.subr.mxu0 0.0
    %1418 = vmatpush1.msra.mxu0 0.0
    %1419 = vmatprep.subr.mxu0 0.0
    %1420 = vmatpush1.msra.mxu0 0.0
    %1421 = vmatprep.mubr.f32.mxu0 0.0
    %1422 = vmatmul.mubr.f32.gmra.mrb[0].mxu0 %v1355
    %v1423 = vpop.f32.mrb[0].mxu0
    %v1424 = vadd.f32 0.0, %v1423
    %v1425 = vpop.f32.mrb[0].mxu0
    %1426 = vdwg.mxu0
    %1427 = vrot.lane.b32.xlu0 %v329, 64
    %v1428 = vpop.permute.xlu0 %1427
    %v1431 = vsel %vm336, %v1044, 0
    %1433 = vmatprep.subr.mxu0 0.0
    %1434 = vmatpush1.msra.mxu0 %v1428
    %1435 = vmatprep.subr.mxu0 0.0
    %1436 = vmatpush1.msra.mxu0 0.0
    %1437 = vmatprep.subr.mxu0 0.0
    %1438 = vmatpush1.msra.mxu0 0.0
    %1439 = vmatprep.subr.mxu0 0.0
    %1440 = vmatpush1.msra.mxu0 0.0
    %1441 = vmatprep.subr.mxu0 0.0
    %1442 = vmatpush1.msra.mxu0 0.0
    %1443 = vmatprep.subr.mxu0 0.0
    %1444 = vmatpush1.msra.mxu0 0.0
    %1445 = vmatprep.subr.mxu0 0.0
    %1446 = vmatpush1.msra.mxu0 0.0
    %1447 = vmatprep.subr.mxu0 0.0
    %1448 = vmatpush1.msra.mxu0 0.0
    %1449 = vmatprep.subr.mxu0 0.0
    %1450 = vmatpush1.msra.mxu0 0.0
    %1451 = vmatprep.subr.mxu0 0.0
    %1452 = vmatpush1.msra.mxu0 0.0
    %1453 = vmatprep.subr.mxu0 0.0
    %1454 = vmatpush1.msra.mxu0 0.0
    %1455 = vmatprep.subr.mxu0 0.0
    %1456 = vmatpush1.msra.mxu0 0.0
    %1457 = vmatprep.subr.mxu0 0.0
    %1458 = vmatpush1.msra.mxu0 0.0
    %1459 = vmatprep.subr.mxu0 0.0
    %1460 = vmatpush1.msra.mxu0 0.0
    %1461 = vmatprep.subr.mxu0 0.0
    %1462 = vmatpush1.msra.mxu0 0.0
    %1463 = vmatprep.subr.mxu0 0.0
    %1464 = vmatpush1.msra.mxu0 0.0
    %1465 = vmatprep.subr.mxu0 0.0
    %1466 = vmatpush1.msra.mxu0 0.0
    %1467 = vmatprep.subr.mxu0 0.0
    %1468 = vmatpush1.msra.mxu0 0.0
    %1469 = vmatprep.subr.mxu0 0.0
    %1470 = vmatpush1.msra.mxu0 0.0
    %1471 = vmatprep.subr.mxu0 0.0
    %1472 = vmatpush1.msra.mxu0 0.0
    %1473 = vmatprep.subr.mxu0 0.0
    %1474 = vmatpush1.msra.mxu0 0.0
    %1475 = vmatprep.subr.mxu0 0.0
    %1476 = vmatpush1.msra.mxu0 0.0
    %1477 = vmatprep.subr.mxu0 0.0
    %1478 = vmatpush1.msra.mxu0 0.0
    %1479 = vmatprep.subr.mxu0 0.0
    %1480 = vmatpush1.msra.mxu0 0.0
    %1481 = vmatprep.subr.mxu0 0.0
    %1482 = vmatpush1.msra.mxu0 0.0
    %1483 = vmatprep.subr.mxu0 0.0
    %1484 = vmatpush1.msra.mxu0 0.0
    %1485 = vmatprep.subr.mxu0 0.0
    %1486 = vmatpush1.msra.mxu0 0.0
    %1487 = vmatprep.subr.mxu0 0.0
    %1488 = vmatpush1.msra.mxu0 0.0
    %1489 = vmatprep.subr.mxu0 0.0
    %1490 = vmatpush1.msra.mxu0 0.0
    %1491 = vmatprep.subr.mxu0 0.0
    %1492 = vmatpush1.msra.mxu0 0.0
    %1493 = vmatprep.subr.mxu0 0.0
    %1494 = vmatpush1.msra.mxu0 0.0
    %1495 = vmatprep.subr.mxu0 0.0
    %1496 = vmatpush1.msra.mxu0 0.0
    %1497 = vmatprep.mubr.f32.mxu0 0.0
    %1498 = vmatmul.mubr.f32.gmra.mrb[0].mxu0 %v1431
    %v1499 = vpop.f32.mrb[0].mxu0
    %v1500 = vadd.f32 0.0, %v1499
    %v1501 = vpop.f32.mrb[0].mxu0
    %1502 = vdwg.mxu0
    %1503 = vrot.lane.b32.xlu0 %v331, 64
    %v1504 = vpop.permute.xlu0 %1503
    %v1507 = vsel %vm336, %v1045, 0
    %1509 = vmatprep.subr.mxu0 0.0
    %1510 = vmatpush1.msra.mxu0 %v1504
    %1511 = vmatprep.subr.mxu0 0.0
    %1512 = vmatpush1.msra.mxu0 0.0
    %1513 = vmatprep.subr.mxu0 0.0
    %1514 = vmatpush1.msra.mxu0 0.0
    %1515 = vmatprep.subr.mxu0 0.0
    %1516 = vmatpush1.msra.mxu0 0.0
    %1517 = vmatprep.subr.mxu0 0.0
    %1518 = vmatpush1.msra.mxu0 0.0
    %1519 = vmatprep.subr.mxu0 0.0
    %1520 = vmatpush1.msra.mxu0 0.0
    %1521 = vmatprep.subr.mxu0 0.0
    %1522 = vmatpush1.msra.mxu0 0.0
    %1523 = vmatprep.subr.mxu0 0.0
    %1524 = vmatpush1.msra.mxu0 0.0
    %1525 = vmatprep.subr.mxu0 0.0
    %1526 = vmatpush1.msra.mxu0 0.0
    %1527 = vmatprep.subr.mxu0 0.0
    %1528 = vmatpush1.msra.mxu0 0.0
    %1529 = vmatprep.subr.mxu0 0.0
    %1530 = vmatpush1.msra.mxu0 0.0
    %1531 = vmatprep.subr.mxu0 0.0
    %1532 = vmatpush1.msra.mxu0 0.0
    %1533 = vmatprep.subr.mxu0 0.0
    %1534 = vmatpush1.msra.mxu0 0.0
    %1535 = vmatprep.subr.mxu0 0.0
    %1536 = vmatpush1.msra.mxu0 0.0
    %1537 = vmatprep.subr.mxu0 0.0
    %1538 = vmatpush1.msra.mxu0 0.0
    %1539 = vmatprep.subr.mxu0 0.0
    %1540 = vmatpush1.msra.mxu0 0.0
    %1541 = vmatprep.subr.mxu0 0.0
    %1542 = vmatpush1.msra.mxu0 0.0
    %1543 = vmatprep.subr.mxu0 0.0
    %1544 = vmatpush1.msra.mxu0 0.0
    %1545 = vmatprep.subr.mxu0 0.0
    %1546 = vmatpush1.msra.mxu0 0.0
    %1547 = vmatprep.subr.mxu0 0.0
    %1548 = vmatpush1.msra.mxu0 0.0
    %1549 = vmatprep.subr.mxu0 0.0
    %1550 = vmatpush1.msra.mxu0 0.0
    %1551 = vmatprep.subr.mxu0 0.0
    %1552 = vmatpush1.msra.mxu0 0.0
    %1553 = vmatprep.subr.mxu0 0.0
    %1554 = vmatpush1.msra.mxu0 0.0
    %1555 = vmatprep.subr.mxu0 0.0
    %1556 = vmatpush1.msra.mxu0 0.0
    %1557 = vmatprep.subr.mxu0 0.0
    %1558 = vmatpush1.msra.mxu0 0.0
    %1559 = vmatprep.subr.mxu0 0.0
    %1560 = vmatpush1.msra.mxu0 0.0
    %1561 = vmatprep.subr.mxu0 0.0
    %1562 = vmatpush1.msra.mxu0 0.0
    %1563 = vmatprep.subr.mxu0 0.0
    %1564 = vmatpush1.msra.mxu0 0.0
    %1565 = vmatprep.subr.mxu0 0.0
    %1566 = vmatpush1.msra.mxu0 0.0
    %1567 = vmatprep.subr.mxu0 0.0
    %1568 = vmatpush1.msra.mxu0 0.0
    %1569 = vmatprep.subr.mxu0 0.0
    %1570 = vmatpush1.msra.mxu0 0.0
    %1571 = vmatprep.subr.mxu0 0.0
    %1572 = vmatpush1.msra.mxu0 0.0
    %1573 = vmatprep.mubr.f32.mxu0 0.0
    %1574 = vmatmul.mubr.f32.gmra.mrb[0].mxu0 %v1507
    %v1575 = vpop.f32.mrb[0].mxu0
    %v1576 = vadd.f32 0.0, %v1575
    %v1577 = vpop.f32.mrb[0].mxu0
    %1578 = vdwg.mxu0
    %1579 = vrot.lane.b32.xlu0 %v333, 64
    %v1580 = vpop.permute.xlu0 %1579
    %v1583 = vsel %vm336, %v1046, 0
    %1585 = vmatprep.subr.mxu0 0.0
    %1586 = vmatpush1.msra.mxu0 %v1580
    %1587 = vmatprep.subr.mxu0 0.0
    %1588 = vmatpush1.msra.mxu0 0.0
    %1589 = vmatprep.subr.mxu0 0.0
    %1590 = vmatpush1.msra.mxu0 0.0
    %1591 = vmatprep.subr.mxu0 0.0
    %1592 = vmatpush1.msra.mxu0 0.0
    %1593 = vmatprep.subr.mxu0 0.0
    %1594 = vmatpush1.msra.mxu0 0.0
    %1595 = vmatprep.subr.mxu0 0.0
    %1596 = vmatpush1.msra.mxu0 0.0
    %1597 = vmatprep.subr.mxu0 0.0
    %1598 = vmatpush1.msra.mxu0 0.0
    %1599 = vmatprep.subr.mxu0 0.0
    %1600 = vmatpush1.msra.mxu0 0.0
    %1601 = vmatprep.subr.mxu0 0.0
    %1602 = vmatpush1.msra.mxu0 0.0
    %1603 = vmatprep.subr.mxu0 0.0
    %1604 = vmatpush1.msra.mxu0 0.0
    %1605 = vmatprep.subr.mxu0 0.0
    %1606 = vmatpush1.msra.mxu0 0.0
    %1607 = vmatprep.subr.mxu0 0.0
    %1608 = vmatpush1.msra.mxu0 0.0
    %1609 = vmatprep.subr.mxu0 0.0
    %1610 = vmatpush1.msra.mxu0 0.0
    %1611 = vmatprep.subr.mxu0 0.0
    %1612 = vmatpush1.msra.mxu0 0.0
    %1613 = vmatprep.subr.mxu0 0.0
    %1614 = vmatpush1.msra.mxu0 0.0
    %1615 = vmatprep.subr.mxu0 0.0
    %1616 = vmatpush1.msra.mxu0 0.0
    %1617 = vmatprep.subr.mxu0 0.0
    %1618 = vmatpush1.msra.mxu0 0.0
    %1619 = vmatprep.subr.mxu0 0.0
    %1620 = vmatpush1.msra.mxu0 0.0
    %1621 = vmatprep.subr.mxu0 0.0
    %1622 = vmatpush1.msra.mxu0 0.0
    %1623 = vmatprep.subr.mxu0 0.0
    %1624 = vmatpush1.msra.mxu0 0.0
    %1625 = vmatprep.subr.mxu0 0.0
    %1626 = vmatpush1.msra.mxu0 0.0
    %1627 = vmatprep.subr.mxu0 0.0
    %1628 = vmatpush1.msra.mxu0 0.0
    %1629 = vmatprep.subr.mxu0 0.0
    %1630 = vmatpush1.msra.mxu0 0.0
    %1631 = vmatprep.subr.mxu0 0.0
    %1632 = vmatpush1.msra.mxu0 0.0
    %1633 = vmatprep.subr.mxu0 0.0
    %1634 = vmatpush1.msra.mxu0 0.0
    %1635 = vmatprep.subr.mxu0 0.0
    %1636 = vmatpush1.msra.mxu0 0.0
    %1637 = vmatprep.subr.mxu0 0.0
    %1638 = vmatpush1.msra.mxu0 0.0
    %1639 = vmatprep.subr.mxu0 0.0
    %1640 = vmatpush1.msra.mxu0 0.0
    %1641 = vmatprep.subr.mxu0 0.0
    %1642 = vmatpush1.msra.mxu0 0.0
    %1643 = vmatprep.subr.mxu0 0.0
    %1644 = vmatpush1.msra.mxu0 0.0
    %1645 = vmatprep.subr.mxu0 0.0
    %1646 = vmatpush1.msra.mxu0 0.0
    %1647 = vmatprep.subr.mxu0 0.0
    %1648 = vmatpush1.msra.mxu0 0.0
    %1649 = vmatprep.mubr.f32.mxu0 0.0
    %1650 = vmatmul.mubr.f32.gmra.mrb[0].mxu0 %v1583
    %v1651 = vpop.f32.mrb[0].mxu0
    %v1652 = vadd.f32 0.0, %v1651
    %v1653 = vpop.f32.mrb[0].mxu0
    %1654 = vdwg.mxu0
    %1657 = vrot.lane.b32.xlu0 %v1272, 8
    %v1658 = vpop.permute.xlu0 %1657
    %1659 = vrot.lane.b32.xlu0 %v1348, 8
    %v1660 = vpop.permute.xlu0 %1659
    %1665 = vrot.lane.b32.xlu0 %v1424, 16
    %v1666 = vpop.permute.xlu0 %1665
    %1667 = vrot.lane.b32.xlu0 %v1500, 16
    %v1668 = vpop.permute.xlu0 %1667
    %1673 = vrot.lane.b32.xlu0 %v1576, 24
    %v1674 = vpop.permute.xlu0 %1673
    %1675 = vrot.lane.b32.xlu0 %v1652, 24
    %v1676 = vpop.permute.xlu0 %1675
    %v1679 = vsel %vm336, %v1120, %v1658
    %v1680 = vsel %vm336, %v1196, %v1660
    %vm1681 = vcmask 130048
    %v1682 = vsel %vm1681, %v1679, %v1666
    %v1683 = vsel %vm1681, %v1680, %v1668
    %vm1684 = vcmask 195584
    %v1685 = vsel %vm1684, %v1682, %v1674
    %v1686 = vsel %vm1684, %v1683, %v1676
    %v1687 = vld [vmem:[%s8] sm:$0xff]
    %v1688 = vld [vmem:[%s8 + $0x8] sm:$0xff]
    %v1689 = vld [vmem:[%s8 + $0x10] sm:$0xff]
    %v1690 = vld [vmem:[%s8 + $0x18] sm:$0xff]
    %v1692 = vsel %vm170, %v1685, 0
    %v1695 = vsel %vm170, %v1686, 0
    %1697 = vmatprep.subr.mxu0 0.0
    %1698 = vmatpush1.msra.mxu0 %v1687
    %1699 = vmatprep.subr.mxu0 0.0
    %1700 = vmatpush1.msra.mxu0 %v1688
    %1701 = vmatprep.subr.mxu0 0.0
    %1702 = vmatpush1.msra.mxu0 %v1689
    %1703 = vmatprep.subr.mxu0 0.0
    %1704 = vmatpush1.msra.mxu0 %v1690
    %1705 = vmatprep.subr.mxu0 0.0
    %1706 = vmatpush1.msra.mxu0 0.0
    %1707 = vmatprep.subr.mxu0 0.0
    %1708 = vmatpush1.msra.mxu0 0.0
    %1709 = vmatprep.subr.mxu0 0.0
    %1710 = vmatpush1.msra.mxu0 0.0
    %1711 = vmatprep.subr.mxu0 0.0
    %1712 = vmatpush1.msra.mxu0 0.0
    %1713 = vmatprep.subr.mxu0 0.0
    %1714 = vmatpush1.msra.mxu0 0.0
    %1715 = vmatprep.subr.mxu0 0.0
    %1716 = vmatpush1.msra.mxu0 0.0
    %1717 = vmatprep.subr.mxu0 0.0
    %1718 = vmatpush1.msra.mxu0 0.0
    %1719 = vmatprep.subr.mxu0 0.0
    %1720 = vmatpush1.msra.mxu0 0.0
    %1721 = vmatprep.subr.mxu0 0.0
    %1722 = vmatpush1.msra.mxu0 0.0
    %1723 = vmatprep.subr.mxu0 0.0
    %1724 = vmatpush1.msra.mxu0 0.0
    %1725 = vmatprep.subr.mxu0 0.0
    %1726 = vmatpush1.msra.mxu0 0.0
    %1727 = vmatprep.subr.mxu0 0.0
    %1728 = vmatpush1.msra.mxu0 0.0
    %1729 = vmatprep.subr.mxu0 0.0
    %1730 = vmatpush1.msra.mxu0 0.0
    %1731 = vmatprep.subr.mxu0 0.0
    %1732 = vmatpush1.msra.mxu0 0.0
    %1733 = vmatprep.subr.mxu0 0.0
    %1734 = vmatpush1.msra.mxu0 0.0
    %1735 = vmatprep.subr.mxu0 0.0
    %1736 = vmatpush1.msra.mxu0 0.0
    %1737 = vmatprep.subr.mxu0 0.0
    %1738 = vmatpush1.msra.mxu0 0.0
    %1739 = vmatprep.subr.mxu0 0.0
    %1740 = vmatpush1.msra.mxu0 0.0
    %1741 = vmatprep.subr.mxu0 0.0
    %1742 = vmatpush1.msra.mxu0 0.0
    %1743 = vmatprep.subr.mxu0 0.0
    %1744 = vmatpush1.msra.mxu0 0.0
    %1745 = vmatprep.subr.mxu0 0.0
    %1746 = vmatpush1.msra.mxu0 0.0
    %1747 = vmatprep.subr.mxu0 0.0
    %1748 = vmatpush1.msra.mxu0 0.0
    %1749 = vmatprep.subr.mxu0 0.0
    %1750 = vmatpush1.msra.mxu0 0.0
    %1751 = vmatprep.subr.mxu0 0.0
    %1752 = vmatpush1.msra.mxu0 0.0
    %1753 = vmatprep.subr.mxu0 0.0
    %1754 = vmatpush1.msra.mxu0 0.0
    %1755 = vmatprep.subr.mxu0 0.0
    %1756 = vmatpush1.msra.mxu0 0.0
    %1757 = vmatprep.subr.mxu0 0.0
    %1758 = vmatpush1.msra.mxu0 0.0
    %1759 = vmatprep.subr.mxu0 0.0
    %1760 = vmatpush1.msra.mxu0 0.0
    %1761 = vmatprep.mubr.f32.mxu0 0.0
    %1762 = vmatmul.mubr.f32.gmra.mrb[0].mxu0 %v1692
    %v1763 = vpop.f32.mrb[0].mxu0
    %v1764 = vadd.f32 0.0, %v1763
    %v1765 = vpop.f32.mrb[0].mxu0
    %1766 = vmatprep.mubr.f32.mxu0 0.0
    %1767 = vmatmul.mubr.f32.gmra.mrb[0].mxu0 %v1695
    %v1768 = vpop.f32.mrb[0].mxu0
    %v1769 = vadd.f32 0.0, %v1768
    %v1770 = vpop.f32.mrb[0].mxu0
    %1771 = vdwg.mxu0
    %v1772 = vadd.f32 %v185, %v1764
    %v1773 = vadd.f32 %v186, %v1769
    %v1774 = vld [vmem:[%s9] sm:$0x1]
    %v1775 = vld [vmem:[%s10] sm:$0x1]
    %v1776 = vsel %vm170, %v1772, 0.0
    %1777 = vadd.xlane.f32.xlu0 %v1776
    %v1778 = vpop.xlane.xlu0 %1777
    %v1779 = vsel %vm170, %v1773, 0.0
    %1780 = vadd.xlane.f32.xlu0 %v1779
    %v1781 = vpop.xlane.xlu0 %1780
    %v1782 = vmul.f32 %v1778, %v198
    %v1783 = vmul.f32 %v1781, %v198
    %v1784 = vsub.f32 %v1772, %v1782
    %v1785 = vsub.f32 %v1773, %v1783
    %v1786 = vmul.f32 %v1784, %v1784
    %v1787 = vmul.f32 %v1785, %v1785
    %v1788 = vsel %vm170, %v1786, 0.0
    %1789 = vadd.xlane.f32.xlu0 %v1788
    %v1790 = vpop.xlane.xlu0 %1789
    %v1791 = vsel %vm170, %v1787, 0.0
    %1792 = vadd.xlane.f32.xlu0 %v1791
    %v1793 = vpop.xlane.xlu0 %1792
    %v1794 = vmul.f32 %v1790, %v198
    %v1795 = vmul.f32 %v1793, %v198
    %v1796 = vadd.f32 %v1794, 1e-05
    %v1797 = vadd.f32 %v1795, 1e-05
    %v1798 = vrsqrt.pop %v1796
    %v1799 = vrsqrt.pop %v1797
    %v1800 = vmul.f32 %v1784, %v1798
    %v1801 = vmul.f32 %v1785, %v1799
    %v1803 = vlaneseq
    %v1804 = vshrl.u32 %v1803, 7
    %v1805 = vsub.s32 0, %v1804
    %v1806 = vrot.slane %v1774, %v1805
    %v1808 = vmul.f32 %v1800, %v1806
    %v1809 = vmul.f32 %v1801, %v1806
    %v1811 = vlaneseq
    %v1812 = vshrl.u32 %v1811, 7
    %v1813 = vsub.s32 0, %v1812
    %v1814 = vrot.slane %v1775, %v1813
    %v1816 = vadd.f32 %v1808, %v1814
    %v1817 = vadd.f32 %v1809, %v1814
    %v1818 = vld [vmem:[%s11] sm:$0xff]
    %v1819 = vld [vmem:[%s11 + $0x8] sm:$0xff]
    %v1820 = vld [vmem:[%s11 + $0x10] sm:$0xff]
    %v1821 = vld [vmem:[%s11 + $0x18] sm:$0xff]
    %v1822 = vld [vmem:[%s12] sm:$0x1]
    %v1824 = vlaneseq
    %v1825 = vshrl.u32 %v1824, 7
    %v1826 = vsub.s32 0, %v1825
    %v1827 = vrot.slane %v1822, %v1826
    %v1830 = vsel %vm170, %v1816, 0
    %v1833 = vsel %vm170, %v1817, 0
    %1835 = vmatprep.subr.mxu0 0.0
    %1836 = vmatpush1.msra.mxu0 %v1818
    %1837 = vmatprep.subr.mxu0 0.0
    %1838 = vmatpush1.msra.mxu0 %v1819
    %1839 = vmatprep.subr.mxu0 0.0
    %1840 = vmatpush1.msra.mxu0 %v1820
    %1841 = vmatprep.subr.mxu0 0.0
    %1842 = vmatpush1.msra.mxu0 %v1821
    %1843 = vmatprep.subr.mxu0 0.0
    %1844 = vmatpush1.msra.mxu0 0.0
    %1845 = vmatprep.subr.mxu0 0.0
    %1846 = vmatpush1.msra.mxu0 0.0
    %1847 = vmatprep.subr.mxu0 0.0
    %1848 = vmatpush1.msra.mxu0 0.0
    %1849 = vmatprep.subr.mxu0 0.0
    %1850 = vmatpush1.msra.mxu0 0.0
    %1851 = vmatprep.subr.mxu0 0.0
    %1852 = vmatpush1.msra.mxu0 0.0
    %1853 = vmatprep.subr.mxu0 0.0
    %1854 = vmatpush1.msra.mxu0 0.0
    %1855 = vmatprep.subr.mxu0 0.0
    %1856 = vmatpush1.msra.mxu0 0.0
    %1857 = vmatprep.subr.mxu0 0.0
    %1858 = vmatpush1.msra.mxu0 0.0
    %1859 = vmatprep.subr.mxu0 0.0
    %1860 = vmatpush1.msra.mxu0 0.0
    %1861 = vmatprep.subr.mxu0 0.0
    %1862 = vmatpush1.msra.mxu0 0.0
    %1863 = vmatprep.subr.mxu0 0.0
    %1864 = vmatpush1.msra.mxu0 0.0
    %1865 = vmatprep.subr.mxu0 0.0
    %1866 = vmatpush1.msra.mxu0 0.0
    %1867 = vmatprep.subr.mxu0 0.0
    %1868 = vmatpush1.msra.mxu0 0.0
    %1869 = vmatprep.subr.mxu0 0.0
    %1870 = vmatpush1.msra.mxu0 0.0
    %1871 = vmatprep.subr.mxu0 0.0
    %1872 = vmatpush1.msra.mxu0 0.0
    %1873 = vmatprep.subr.mxu0 0.0
    %1874 = vmatpush1.msra.mxu0 0.0
    %1875 = vmatprep.subr.mxu0 0.0
    %1876 = vmatpush1.msra.mxu0 0.0
    %1877 = vmatprep.subr.mxu0 0.0
    %1878 = vmatpush1.msra.mxu0 0.0
    %1879 = vmatprep.subr.mxu0 0.0
    %1880 = vmatpush1.msra.mxu0 0.0
    %1881 = vmatprep.subr.mxu0 0.0
    %1882 = vmatpush1.msra.mxu0 0.0
    %1883 = vmatprep.subr.mxu0 0.0
    %1884 = vmatpush1.msra.mxu0 0.0
    %1885 = vmatprep.subr.mxu0 0.0
    %1886 = vmatpush1.msra.mxu0 0.0
    %1887 = vmatprep.subr.mxu0 0.0
    %1888 = vmatpush1.msra.mxu0 0.0
    %1889 = vmatprep.subr.mxu0 0.0
    %1890 = vmatpush1.msra.mxu0 0.0
    %1891 = vmatprep.subr.mxu0 0.0
    %1892 = vmatpush1.msra.mxu0 0.0
    %1893 = vmatprep.subr.mxu0 0.0
    %1894 = vmatpush1.msra.mxu0 0.0
    %1895 = vmatprep.subr.mxu0 0.0
    %1896 = vmatpush1.msra.mxu0 0.0
    %1897 = vmatprep.subr.mxu0 0.0
    %1898 = vmatpush1.msra.mxu0 0.0
    %1899 = vmatprep.mubr.f32.mxu0 0.0
    %1900 = vmatmul.mubr.f32.gmra.mrb[0].mxu0 %v1830
    %v1901 = vpop.f32.mrb[0].mxu0
    %v1902 = vadd.f32 %v1827, %v1901
    %v1903 = vpop.f32.mrb[0].mxu0
    %1904 = vmatprep.mubr.f32.mxu0 0.0
    %1905 = vmatmul.mubr.f32.gmra.mrb[0].mxu0 %v1833
    %v1906 = vpop.f32.mrb[0].mxu0
    %v1907 = vadd.f32 %v1827, %v1906
    %v1908 = vpop.f32.mrb[0].mxu0
    %1909 = vdwg.mxu0
    %v1910 = vmul.f32 %v1902, %v1902
    %v1911 = vmul.f32 %v1907, %v1907
    %v1912 = vmul.f32 %v1902, %v1910
    %v1913 = vmul.f32 %v1907, %v1911
    %v1914 = vmul.f32 %v1912, 0.044715
    %v1915 = vmul.f32 %v1913, 0.044715
    %v1916 = vadd.f32 %v1902, %v1914
    %v1917 = vadd.f32 %v1907, %v1915
    %v1918 = vmul.f32 %v1916, 0.7978846
    %v1919 = vmul.f32 %v1917, 0.7978846
    %v1920 = vtanh.pop %v1918
    %v1921 = vtanh.pop %v1919
    %v1922 = vadd.f32 %v1920, 1.0
    %v1923 = vadd.f32 %v1921, 1.0
    %v1924 = vmul.f32 %v1922, 0.5
    %v1925 = vmul.f32 %v1923, 0.5
    %v1926 = vmul.f32 %v1902, %v1924
    %v1927 = vmul.f32 %v1907, %v1925
    %v1928 = vld [vmem:[%s13] sm:$0xff]
    %v1929 = vld [vmem:[%s13 + $0x8] sm:$0xff]
    %v1930 = vld [vmem:[%s13 + $0x10] sm:$0xff]
    %v1931 = vld [vmem:[%s13 + $0x18] sm:$0xff]
    %v1932 = vld [vmem:[%s13 + $0x20] sm:$0xff]
    %v1933 = vld [vmem:[%s13 + $0x28] sm:$0xff]
    %v1934 = vld [vmem:[%s13 + $0x30] sm:$0xff]
    %v1935 = vld [vmem:[%s13 + $0x38] sm:$0xff]
    %v1937 = vsel %vm96, %v1926, 0
    %v1940 = vsel %vm96, %v1927, 0
    %1942 = vmatprep.subr.mxu0 0.0
    %1943 = vmatpush1.msra.mxu0 %v1928
    %1944 = vmatprep.subr.mxu0 0.0
    %1945 = vmatpush1.msra.mxu0 %v1929
    %1946 = vmatprep.subr.mxu0 0.0
    %1947 = vmatpush1.msra.mxu0 %v1930
    %1948 = vmatprep.subr.mxu0 0.0
    %1949 = vmatpush1.msra.mxu0 %v1931
    %1950 = vmatprep.subr.mxu0 0.0
    %1951 = vmatpush1.msra.mxu0 %v1932
    %1952 = vmatprep.subr.mxu0 0.0
    %1953 = vmatpush1.msra.mxu0 %v1933
    %1954 = vmatprep.subr.mxu0 0.0
    %1955 = vmatpush1.msra.mxu0 %v1934
    %1956 = vmatprep.subr.mxu0 0.0
    %1957 = vmatpush1.msra.mxu0 %v1935
    %1958 = vmatprep.subr.mxu0 0.0
    %1959 = vmatpush1.msra.mxu0 0.0
    %1960 = vmatprep.subr.mxu0 0.0
    %1961 = vmatpush1.msra.mxu0 0.0
    %1962 = vmatprep.subr.mxu0 0.0
    %1963 = vmatpush1.msra.mxu0 0.0
    %1964 = vmatprep.subr.mxu0 0.0
    %1965 = vmatpush1.msra.mxu0 0.0
    %1966 = vmatprep.subr.mxu0 0.0
    %1967 = vmatpush1.msra.mxu0 0.0
    %1968 = vmatprep.subr.mxu0 0.0
    %1969 = vmatpush1.msra.mxu0 0.0
    %1970 = vmatprep.subr.mxu0 0.0
    %1971 = vmatpush1.msra.mxu0 0.0
    %1972 = vmatprep.subr.mxu0 0.0
    %1973 = vmatpush1.msra.mxu0 0.0
    %1974 = vmatprep.subr.mxu0 0.0
    %1975 = vmatpush1.msra.mxu0 0.0
    %1976 = vmatprep.subr.mxu0 0.0
    %1977 = vmatpush1.msra.mxu0 0.0
    %1978 = vmatprep.subr.mxu0 0.0
    %1979 = vmatpush1.msra.mxu0 0.0
    %1980 = vmatprep.subr.mxu0 0.0
    %1981 = vmatpush1.msra.mxu0 0.0
    %1982 = vmatprep.subr.mxu0 0.0
    %1983 = vmatpush1.msra.mxu0 0.0
    %1984 = vmatprep.subr.mxu0 0.0
    %1985 = vmatpush1.msra.mxu0 0.0
    %1986 = vmatprep.subr.mxu0 0.0
    %1987 = vmatpush1.msra.mxu0 0.0
    %1988 = vmatprep.subr.mxu0 0.0
    %1989 = vmatpush1.msra.mxu0 0.0
    %1990 = vmatprep.subr.mxu0 0.0
    %1991 = vmatpush1.msra.mxu0 0.0
    %1992 = vmatprep.subr.mxu0 0.0
    %1993 = vmatpush1.msra.mxu0 0.0
    %1994 = vmatprep.subr.mxu0 0.0
    %1995 = vmatpush1.msra.mxu0 0.0
    %1996 = vmatprep.subr.mxu0 0.0
    %1997 = vmatpush1.msra.mxu0 0.0
    %1998 = vmatprep.subr.mxu0 0.0
    %1999 = vmatpush1.msra.mxu0 0.0
    %2000 = vmatprep.subr.mxu0 0.0
    %2001 = vmatpush1.msra.mxu0 0.0
    %2002 = vmatprep.subr.mxu0 0.0
    %2003 = vmatpush1.msra.mxu0 0.0
    %2004 = vmatprep.subr.mxu0 0.0
    %2005 = vmatpush1.msra.mxu0 0.0
    %2006 = vmatprep.mubr.f32.mxu0 0.0
    %2007 = vmatmul.mubr.f32.gmra.mrb[0].mxu0 %v1937
    %v2008 = vpop.f32.mrb[0].mxu0
    %v2009 = vadd.f32 0.0, %v2008
    %v2010 = vpop.f32.mrb[0].mxu0
    %2011 = vmatprep.mubr.f32.mxu0 0.0
    %2012 = vmatmul.mubr.f32.gmra.mrb[0].mxu0 %v1940
    %v2013 = vpop.f32.mrb[0].mxu0
    %v2014 = vadd.f32 0.0, %v2013
    %v2015 = vpop.f32.mrb[0].mxu0
    %2016 = vdwg.mxu0
    %v2017 = vadd.f32 %v1772, %v2009
    %v2018 = vadd.f32 %v1773, %v2014
    %v2019 = vld [vmem:[%s14] sm:$0x1]
    %v2021 = vlaneseq
    %v2022 = vshrl.u32 %v2021, 7
    %v2023 = vsub.s32 0, %v2022
    %v2024 = vrot.slane %v2019, %v2023
    %v2026 = vadd.f32 %v2017, %v2024
    %v2027 = vadd.f32 %v2018, %v2024
    %s2028 = scalar_lea.vmem %s5, 1
    %v2029 = vld [vmem:[%s2028] sm:$0x1]
    %s2030 = scalar_lea.vmem %s6, 1
    %v2031 = vld [vmem:[%s2030] sm:$0x1]
    %v2032 = vsel %vm170, %v2026, 0.0
    %2033 = vadd.xlane.f32.xlu0 %v2032
    %v2034 = vpop.xlane.xlu0 %2033
    %v2035 = vsel %vm170, %v2027, 0.0
    %2036 = vadd.xlane.f32.xlu0 %v2035
    %v2037 = vpop.xlane.xlu0 %2036
    %v2038 = vmul.f32 %v2034, %v198
    %v2039 = vmul.f32 %v2037, %v198
    %v2040 = vsub.f32 %v2026, %v2038
    %v2041 = vsub.f32 %v2027, %v2039
    %v2042 = vmul.f32 %v2040, %v2040
    %v2043 = vmul.f32 %v2041, %v2041
    %v2044 = vsel %vm170, %v2042, 0.0
    %2045 = vadd.xlane.f32.xlu0 %v2044
    %v2046 = vpop.xlane.xlu0 %2045
    %v2047 = vsel %vm170, %v2043, 0.0
    %2048 = vadd.xlane.f32.xlu0 %v2047
    %v2049 = vpop.xlane.xlu0 %2048
    %v2050 = vmul.f32 %v2046, %v198
    %v2051 = vmul.f32 %v2049, %v198
    %v2052 = vadd.f32 %v2050, 1e-05
    %v2053 = vadd.f32 %v2051, 1e-05
    %v2054 = vrsqrt.pop %v2052
    %v2055 = vrsqrt.pop %v2053
    %v2056 = vmul.f32 %v2040, %v2054
    %v2057 = vmul.f32 %v2041, %v2055
    %v2059 = vlaneseq
    %v2060 = vshrl.u32 %v2059, 7
    %v2061 = vsub.s32 0, %v2060
    %v2062 = vrot.slane %v2029, %v2061
    %v2064 = vmul.f32 %v2056, %v2062
    %v2065 = vmul.f32 %v2057, %v2062
    %v2067 = vlaneseq
    %v2068 = vshrl.u32 %v2067, 7
    %v2069 = vsub.s32 0, %v2068
    %v2070 = vrot.slane %v2031, %v2069
    %v2072 = vadd.f32 %v2064, %v2070
    %v2073 = vadd.f32 %v2065, %v2070
    %s2074 = scalar_lea.vmem %s7, 32
    %v2075 = vld [vmem:[%s2074] sm:$0xff]
    %v2076 = vld [vmem:[%s2074 + $0x8] sm:$0xff]
    %v2077 = vld [vmem:[%s2074 + $0x10] sm:$0xff]
    %v2078 = vld [vmem:[%s2074 + $0x18] sm:$0xff]
    %v2080 = vsel %vm170, %v2072, 0
    %v2083 = vsel %vm170, %v2073, 0
    %2085 = vmatprep.subr.mxu0 0.0
    %2086 = vmatpush1.msra.mxu0 %v2075
    %2087 = vmatprep.subr.mxu0 0.0
    %2088 = vmatpush1.msra.mxu0 %v2076
    %2089 = vmatprep.subr.mxu0 0.0
    %2090 = vmatpush1.msra.mxu0 %v2077
    %2091 = vmatprep.subr.mxu0 0.0
    %2092 = vmatpush1.msra.mxu0 %v2078
    %2093 = vmatprep.subr.mxu0 0.0
    %2094 = vmatpush1.msra.mxu0 0.0
    %2095 = vmatprep.subr.mxu0 0.0
    %2096 = vmatpush1.msra.mxu0 0.0
    %2097 = vmatprep.subr.mxu0 0.0
    %2098 = vmatpush1.msra.mxu0 0.0
    %2099 = vmatprep.subr.mxu0 0.0
    %2100 = vmatpush1.msra.mxu0 0.0
    %2101 = vmatprep.subr.mxu0 0.0
    %2102 = vmatpush1.msra.mxu0 0.0
    %2103 = vmatprep.subr.mxu0 0.0
    %2104 = vmatpush1.msra.mxu0 0.0
    %2105 = vmatprep.subr.mxu0 0.0
    %2106 = vmatpush1.msra.mxu0 0.0
    %2107 = vmatprep.subr.mxu0 0.0
    %2108 = vmatpush1.msra.mxu0 0.0
    %2109 = vmatprep.subr.mxu0 0.0
    %2110 = vmatpush1.msra.mxu0 0.0
    %2111 = vmatprep.subr.mxu0 0.0
    %2112 = vmatpush1.msra.mxu0 0.0
    %2113 = vmatprep.subr.mxu0 0.0
    %2114 = vmatpush1.msra.mxu0 0.0
    %2115 = vmatprep.subr.mxu0 0.0
    %2116 = vmatpush1.msra.mxu0 0.0
    %2117 = vmatprep.subr.mxu0 0.0
    %2118 = vmatpush1.msra.mxu0 0.0
    %2119 = vmatprep.subr.mxu0 0.0
    %2120 = vmatpush1.msra.mxu0 0.0
    %2121 = vmatprep.subr.mxu0 0.0
    %2122 = vmatpush1.msra.mxu0 0.0
    %2123 = vmatprep.subr.mxu0 0.0
    %2124 = vmatpush1.msra.mxu0 0.0
    %2125 = vmatprep.subr.mxu0 0.0
    %2126 = vmatpush1.msra.mxu0 0.0
    %2127 = vmatprep.subr.mxu0 0.0
    %2128 = vmatpush1.msra.mxu0 0.0
    %2129 = vmatprep.subr.mxu0 0.0
    %2130 = vmatpush1.msra.mxu0 0.0
    %2131 = vmatprep.subr.mxu0 0.0
    %2132 = vmatpush1.msra.mxu0 0.0
    %2133 = vmatprep.subr.mxu0 0.0
    %2134 = vmatpush1.msra.mxu0 0.0
    %2135 = vmatprep.subr.mxu0 0.0
    %2136 = vmatpush1.msra.mxu0 0.0
    %2137 = vmatprep.subr.mxu0 0.0
    %2138 = vmatpush1.msra.mxu0 0.0
    %2139 = vmatprep.subr.mxu0 0.0
    %2140 = vmatpush1.msra.mxu0 0.0
    %2141 = vmatprep.subr.mxu0 0.0
    %2142 = vmatpush1.msra.mxu0 0.0
    %2143 = vmatprep.subr.mxu0 0.0
    %2144 = vmatpush1.msra.mxu0 0.0
    %2145 = vmatprep.subr.mxu0 0.0
    %2146 = vmatpush1.msra.mxu0 0.0
    %2147 = vmatprep.subr.mxu0 0.0
    %2148 = vmatpush1.msra.mxu0 0.0
    %2149 = vmatprep.mubr.f32.mxu0 0.0
    %2150 = vmatmul.mubr.f32.gmra.mrb[0].mxu0 %v2080
    %v2151 = vpop.f32.mrb[0].mxu0
    %v2152 = vadd.f32 0.0, %v2151
    %v2153 = vpop.f32.mrb[0].mxu0
    %2154 = vmatprep.mubr.f32.mxu0 0.0
    %2155 = vmatmul.mubr.f32.gmra.mrb[0].mxu0 %v2083
    %v2156 = vpop.f32.mrb[0].mxu0
    %v2157 = vadd.f32 0.0, %v2156
    %v2158 = vpop.f32.mrb[0].mxu0
    %2159 = vdwg.mxu0
    %2162 = vrot.lane.b32.xlu0 %v2152, 120
    %v2163 = vpop.permute.xlu0 %2162
    %2164 = vrot.lane.b32.xlu0 %v2157, 120
    %v2165 = vpop.permute.xlu0 %2164
    %2166 = vrot.lane.b32.xlu0 %v2152, 112
    %v2167 = vpop.permute.xlu0 %2166
    %2168 = vrot.lane.b32.xlu0 %v2157, 112
    %v2169 = vpop.permute.xlu0 %2168
    %2170 = vrot.lane.b32.xlu0 %v2152, 104
    %v2171 = vpop.permute.xlu0 %2170
    %2172 = vrot.lane.b32.xlu0 %v2157, 104
    %v2173 = vpop.permute.xlu0 %2172
    %2174 = vrot.lane.b32.xlu0 %v2152, 96
    %v2175 = vpop.permute.xlu0 %2174
    %v2176 = vsel %vm336, %v2152, 0
    %v2178 = vsel %vm336, %v2175, 0
    %2180 = vmatprep.subr.mxu0 0.0
    %2181 = vmatpush1.xpose.msra.mxu0 %v2178
    %2182 = vmatprep.subr.mxu0 0.0
    %2183 = vmatpush1.xpose.msra.mxu0 0.0
    %2184 = vmatprep.subr.mxu0 0.0
    %2185 = vmatpush1.xpose.msra.mxu0 0.0
    %2186 = vmatprep.subr.mxu0 0.0
    %2187 = vmatpush1.xpose.msra.mxu0 0.0
    %2188 = vmatprep.subr.mxu0 0.0
    %2189 = vmatpush1.xpose.msra.mxu0 0.0
    %2190 = vmatprep.subr.mxu0 0.0
    %2191 = vmatpush1.xpose.msra.mxu0 0.0
    %2192 = vmatprep.subr.mxu0 0.0
    %2193 = vmatpush1.xpose.msra.mxu0 0.0
    %2194 = vmatprep.subr.mxu0 0.0
    %2195 = vmatpush1.xpose.msra.mxu0 0.0
    %2196 = vmatprep.subr.mxu0 0.0
    %2197 = vmatpush1.xpose.msra.mxu0 0.0
    %2198 = vmatprep.subr.mxu0 0.0
    %2199 = vmatpush1.xpose.msra.mxu0 0.0
    %2200 = vmatprep.subr.mxu0 0.0
    %2201 = vmatpush1.xpose.msra.mxu0 0.0
    %2202 = vmatprep.subr.mxu0 0.0
    %2203 = vmatpush1.xpose.msra.mxu0 0.0
    %2204 = vmatprep.subr.mxu0 0.0
    %2205 = vmatpush1.xpose.msra.mxu0 0.0
    %2206 = vmatprep.subr.mxu0 0.0
    %2207 = vmatpush1.xpose.msra.mxu0 0.0
    %2208 = vmatprep.subr.mxu0 0.0
    %2209 = vmatpush1.xpose.msra.mxu0 0.0
    %2210 = vmatprep.subr.mxu0 0.0
    %2211 = vmatpush1.xpose.msra.mxu0 0.0
    %2212 = vmatprep.subr.mxu0 0.0
    %2213 = vmatpush1.xpose.msra.mxu0 0.0
    %2214 = vmatprep.subr.mxu0 0.0
    %2215 = vmatpush1.xpose.msra.mxu0 0.0
    %2216 = vmatprep.subr.mxu0 0.0
    %2217 = vmatpush1.xpose.msra.mxu0 0.0
    %2218 = vmatprep.subr.mxu0 0.0
    %2219 = vmatpush1.xpose.msra.mxu0 0.0
    %2220 = vmatprep.subr.mxu0 0.0
    %2221 = vmatpush1.xpose.msra.mxu0 0.0
    %2222 = vmatprep.subr.mxu0 0.0
    %2223 = vmatpush1.xpose.msra.mxu0 0.0
    %2224 = vmatprep.subr.mxu0 0.0
    %2225 = vmatpush1.xpose.msra.mxu0 0.0
    %2226 = vmatprep.subr.mxu0 0.0
    %2227 = vmatpush1.xpose.msra.mxu0 0.0
    %2228 = vmatprep.subr.mxu0 0.0
    %2229 = vmatpush1.xpose.msra.mxu0 0.0
    %2230 = vmatprep.subr.mxu0 0.0
    %2231 = vmatpush1.xpose.msra.mxu0 0.0
    %2232 = vmatprep.subr.mxu0 0.0
    %2233 = vmatpush1.xpose.msra.mxu0 0.0
    %2234 = vmatprep.subr.mxu0 0.0
    %2235 = vmatpush1.xpose.msra.mxu0 0.0
    %2236 = vmatprep.subr.mxu0 0.0
    %2237 = vmatpush1.xpose.msra.mxu0 0.0
    %2238 = vmatprep.subr.mxu0 0.0
    %2239 = vmatpush1.xpose.msra.mxu0 0.0
    %2240 = vmatprep.subr.mxu0 0.0
    %2241 = vmatpush1.xpose.msra.mxu0 0.0
    %2242 = vmatprep.subr.mxu0 0.0
    %2243 = vmatpush1.xpose.msra.mxu0 0.0
    %2244 = vmatprep.mubr.f32.mxu0 0.0
    %2245 = vmatmul.mubr.f32.gmra.mrb[0].mxu0 %v2176
    %v2246 = vpop.f32.mrb[0].mxu0
    %v2247 = vadd.f32 0.0, %v2246
    %v2248 = vpop.f32.mrb[0].mxu0
    %2249 = vdwg.mxu0
    %2250 = vrot.lane.b32.xlu0 %v2157, 96
    %v2251 = vpop.permute.xlu0 %2250
    %v2252 = vsel %vm336, %v2157, 0
    %v2254 = vsel %vm336, %v2251, 0
    %2256 = vmatprep.subr.mxu0 0.0
    %2257 = vmatpush1.xpose.msra.mxu0 %v2254
    %2258 = vmatprep.subr.mxu0 0.0
    %2259 = vmatpush1.xpose.msra.mxu0 0.0
    %2260 = vmatprep.subr.mxu0 0.0
    %2261 = vmatpush1.xpose.msra.mxu0 0.0
    %2262 = vmatprep.subr.mxu0 0.0
    %2263 = vmatpush1.xpose.msra.mxu0 0.0
    %2264 = vmatprep.subr.mxu0 0.0
    %2265 = vmatpush1.xpose.msra.mxu0 0.0
    %2266 = vmatprep.subr.mxu0 0.0
    %2267 = vmatpush1.xpose.msra.mxu0 0.0
    %2268 = vmatprep.subr.mxu0 0.0
    %2269 = vmatpush1.xpose.msra.mxu0 0.0
    %2270 = vmatprep.subr.mxu0 0.0
    %2271 = vmatpush1.xpose.msra.mxu0 0.0
    %2272 = vmatprep.subr.mxu0 0.0
    %2273 = vmatpush1.xpose.msra.mxu0 0.0
    %2274 = vmatprep.subr.mxu0 0.0
    %2275 = vmatpush1.xpose.msra.mxu0 0.0
    %2276 = vmatprep.subr.mxu0 0.0
    %2277 = vmatpush1.xpose.msra.mxu0 0.0
    %2278 = vmatprep.subr.mxu0 0.0
    %2279 = vmatpush1.xpose.msra.mxu0 0.0
    %2280 = vmatprep.subr.mxu0 0.0
    %2281 = vmatpush1.xpose.msra.mxu0 0.0
    %2282 = vmatprep.subr.mxu0 0.0
    %2283 = vmatpush1.xpose.msra.mxu0 0.0
    %2284 = vmatprep.subr.mxu0 0.0
    %2285 = vmatpush1.xpose.msra.mxu0 0.0
    %2286 = vmatprep.subr.mxu0 0.0
    %2287 = vmatpush1.xpose.msra.mxu0 0.0
    %2288 = vmatprep.subr.mxu0 0.0
    %2289 = vmatpush1.xpose.msra.mxu0 0.0
    %2290 = vmatprep.subr.mxu0 0.0
    %2291 = vmatpush1.xpose.msra.mxu0 0.0
    %2292 = vmatprep.subr.mxu0 0.0
    %2293 = vmatpush1.xpose.msra.mxu0 0.0
    %2294 = vmatprep.subr.mxu0 0.0
    %2295 = vmatpush1.xpose.msra.mxu0 0.0
    %2296 = vmatprep.subr.mxu0 0.0
    %2297 = vmatpush1.xpose.msra.mxu0 0.0
    %2298 = vmatprep.subr.mxu0 0.0
    %2299 = vmatpush1.xpose.msra.mxu0 0.0
    %2300 = vmatprep.subr.mxu0 0.0
    %2301 = vmatpush1.xpose.msra.mxu0 0.0
    %2302 = vmatprep.subr.mxu0 0.0
    %2303 = vmatpush1.xpose.msra.mxu0 0.0
    %2304 = vmatprep.subr.mxu0 0.0
    %2305 = vmatpush1.xpose.msra.mxu0 0.0
    %2306 = vmatprep.subr.mxu0 0.0
    %2307 = vmatpush1.xpose.msra.mxu0 0.0
    %2308 = vmatprep.subr.mxu0 0.0
    %2309 = vmatpush1.xpose.msra.mxu0 0.0
    %2310 = vmatprep.subr.mxu0 0.0
    %2311 = vmatpush1.xpose.msra.mxu0 0.0
    %2312 = vmatprep.subr.mxu0 0.0
    %2313 = vmatpush1.xpose.msra.mxu0 0.0
    %2314 = vmatprep.subr.mxu0 0.0
    %2315 = vmatpush1.xpose.msra.mxu0 0.0
    %2316 = vmatprep.subr.mxu0 0.0
    %2317 = vmatpush1.xpose.msra.mxu0 0.0
    %2318 = vmatprep.subr.mxu0 0.0
    %2319 = vmatpush1.xpose.msra.mxu0 0.0
    %2320 = vmatprep.mubr.f32.mxu0 0.0
    %2321 = vmatmul.mubr.f32.gmra.mrb[0].mxu0 %v2252
    %v2322 = vpop.f32.mrb[0].mxu0
    %v2323 = vadd.f32 0.0, %v2322
    %v2324 = vpop.f32.mrb[0].mxu0
    %2325 = vdwg.mxu0
    %2326 = vrot.lane.b32.xlu0 %v2163, 96
    %v2327 = vpop.permute.xlu0 %2326
    %v2328 = vsel %vm336, %v2163, 0
    %v2330 = vsel %vm336, %v2327, 0
    %2332 = vmatprep.subr.mxu0 0.0
    %2333 = vmatpush1.xpose.msra.mxu0 %v2330
    %2334 = vmatprep.subr.mxu0 0.0
    %2335 = vmatpush1.xpose.msra.mxu0 0.0
    %2336 = vmatprep.subr.mxu0 0.0
    %2337 = vmatpush1.xpose.msra.mxu0 0.0
    %2338 = vmatprep.subr.mxu0 0.0
    %2339 = vmatpush1.xpose.msra.mxu0 0.0
    %2340 = vmatprep.subr.mxu0 0.0
    %2341 = vmatpush1.xpose.msra.mxu0 0.0
    %2342 = vmatprep.subr.mxu0 0.0
    %2343 = vmatpush1.xpose.msra.mxu0 0.0
    %2344 = vmatprep.subr.mxu0 0.0
    %2345 = vmatpush1.xpose.msra.mxu0 0.0
    %2346 = vmatprep.subr.mxu0 0.0
    %2347 = vmatpush1.xpose.msra.mxu0 0.0
    %2348 = vmatprep.subr.mxu0 0.0
    %2349 = vmatpush1.xpose.msra.mxu0 0.0
    %2350 = vmatprep.subr.mxu0 0.0
    %2351 = vmatpush1.xpose.msra.mxu0 0.0
    %2352 = vmatprep.subr.mxu0 0.0
    %2353 = vmatpush1.xpose.msra.mxu0 0.0
    %2354 = vmatprep.subr.mxu0 0.0
    %2355 = vmatpush1.xpose.msra.mxu0 0.0
    %2356 = vmatprep.subr.mxu0 0.0
    %2357 = vmatpush1.xpose.msra.mxu0 0.0
    %2358 = vmatprep.subr.mxu0 0.0
    %2359 = vmatpush1.xpose.msra.mxu0 0.0
    %2360 = vmatprep.subr.mxu0 0.0
    %2361 = vmatpush1.xpose.msra.mxu0 0.0
    %2362 = vmatprep.subr.mxu0 0.0
    %2363 = vmatpush1.xpose.msra.mxu0 0.0
    %2364 = vmatprep.subr.mxu0 0.0
    %2365 = vmatpush1.xpose.msra.mxu0 0.0
    %2366 = vmatprep.subr.mxu0 0.0
    %2367 = vmatpush1.xpose.msra.mxu0 0.0
    %2368 = vmatprep.subr.mxu0 0.0
    %2369 = vmatpush1.xpose.msra.mxu0 0.0
    %2370 = vmatprep.subr.mxu0 0.0
    %2371 = vmatpush1.xpose.msra.mxu0 0.0
    %2372 = vmatprep.subr.mxu0 0.0
    %2373 = vmatpush1.xpose.msra.mxu0 0.0
    %2374 = vmatprep.subr.mxu0 0.0
    %2375 = vmatpush1.xpose.msra.mxu0 0.0
    %2376 = vmatprep.subr.mxu0 0.0
    %2377 = vmatpush1.xpose.msra.mxu0 0.0
    %2378 = vmatprep.subr.mxu0 0.0
    %2379 = vmatpush1.xpose.msra.mxu0 0.0
    %2380 = vmatprep.subr.mxu0 0.0
    %2381 = vmatpush1.xpose.msra.mxu0 0.0
    %2382 = vmatprep.subr.mxu0 0.0
    %2383 = vmatpush1.xpose.msra.mxu0 0.0
    %2384 = vmatprep.subr.mxu0 0.0
    %2385 = vmatpush1.xpose.msra.mxu0 0.0
    %2386 = vmatprep.subr.mxu0 0.0
    %2387 = vmatpush1.xpose.msra.mxu0 0.0
    %2388 = vmatprep.subr.mxu0 0.0
    %2389 = vmatpush1.xpose.msra.mxu0 0.0
    %2390 = vmatprep.subr.mxu0 0.0
    %2391 = vmatpush1.xpose.msra.mxu0 0.0
    %2392 = vmatprep.subr.mxu0 0.0
    %2393 = vmatpush1.xpose.msra.mxu0 0.0
    %2394 = vmatprep.subr.mxu0 0.0
    %2395 = vmatpush1.xpose.msra.mxu0 0.0
    %2396 = vmatprep.mubr.f32.mxu0 0.0
    %2397 = vmatmul.mubr.f32.gmra.mrb[0].mxu0 %v2328
    %v2398 = vpop.f32.mrb[0].mxu0
    %v2399 = vadd.f32 0.0, %v2398
    %v2400 = vpop.f32.mrb[0].mxu0
    %2401 = vdwg.mxu0
    %2402 = vrot.lane.b32.xlu0 %v2165, 96
    %v2403 = vpop.permute.xlu0 %2402
    %v2404 = vsel %vm336, %v2165, 0
    %v2406 = vsel %vm336, %v2403, 0
    %2408 = vmatprep.subr.mxu0 0.0
    %2409 = vmatpush1.xpose.msra.mxu0 %v2406
    %2410 = vmatprep.subr.mxu0 0.0
    %2411 = vmatpush1.xpose.msra.mxu0 0.0
    %2412 = vmatprep.subr.mxu0 0.0
    %2413 = vmatpush1.xpose.msra.mxu0 0.0
    %2414 = vmatprep.subr.mxu0 0.0
    %2415 = vmatpush1.xpose.msra.mxu0 0.0
    %2416 = vmatprep.subr.mxu0 0.0
    %2417 = vmatpush1.xpose.msra.mxu0 0.0
    %2418 = vmatprep.subr.mxu0 0.0
    %2419 = vmatpush1.xpose.msra.mxu0 0.0
    %2420 = vmatprep.subr.mxu0 0.0
    %2421 = vmatpush1.xpose.msra.mxu0 0.0
    %2422 = vmatprep.subr.mxu0 0.0
    %2423 = vmatpush1.xpose.msra.mxu0 0.0
    %2424 = vmatprep.subr.mxu0 0.0
    %2425 = vmatpush1.xpose.msra.mxu0 0.0
    %2426 = vmatprep.subr.mxu0 0.0
    %2427 = vmatpush1.xpose.msra.mxu0 0.0
    %2428 = vmatprep.subr.mxu0 0.0
    %2429 = vmatpush1.xpose.msra.mxu0 0.0
    %2430 = vmatprep.subr.mxu0 0.0
    %2431 = vmatpush1.xpose.msra.mxu0 0.0
    %2432 = vmatprep.subr.mxu0 0.0
    %2433 = vmatpush1.xpose.msra.mxu0 0.0
    %2434 = vmatprep.subr.mxu0 0.0
    %2435 = vmatpush1.xpose.msra.mxu0 0.0
    %2436 = vmatprep.subr.mxu0 0.0
    %2437 = vmatpush1.xpose.msra.mxu0 0.0
    %2438 = vmatprep.subr.mxu0 0.0
    %2439 = vmatpush1.xpose.msra.mxu0 0.0
    %2440 = vmatprep.subr.mxu0 0.0
    %2441 = vmatpush1.xpose.msra.mxu0 0.0
    %2442 = vmatprep.subr.mxu0 0.0
    %2443 = vmatpush1.xpose.msra.mxu0 0.0
    %2444 = vmatprep.subr.mxu0 0.0
    %2445 = vmatpush1.xpose.msra.mxu0 0.0
    %2446 = vmatprep.subr.mxu0 0.0
    %2447 = vmatpush1.xpose.msra.mxu0 0.0
    %2448 = vmatprep.subr.mxu0 0.0
    %2449 = vmatpush1.xpose.msra.mxu0 0.0
    %2450 = vmatprep.subr.mxu0 0.0
    %2451 = vmatpush1.xpose.msra.mxu0 0.0
    %2452 = vmatprep.subr.mxu0 0.0
    %2453 = vmatpush1.xpose.msra.mxu0 0.0
    %2454 = vmatprep.subr.mxu0 0.0
    %2455 = vmatpush1.xpose.msra.mxu0 0.0
    %2456 = vmatprep.subr.mxu0 0.0
    %2457 = vmatpush1.xpose.msra.mxu0 0.0
    %2458 = vmatprep.subr.mxu0 0.0
    %2459 = vmatpush1.xpose.msra.mxu0 0.0
    %2460 = vmatprep.subr.mxu0 0.0
    %2461 = vmatpush1.xpose.msra.mxu0 0.0
    %2462 = vmatprep.subr.mxu0 0.0
    %2463 = vmatpush1.xpose.msra.mxu0 0.0
    %2464 = vmatprep.subr.mxu0 0.0
    %2465 = vmatpush1.xpose.msra.mxu0 0.0
    %2466 = vmatprep.subr.mxu0 0.0
    %2467 = vmatpush1.xpose.msra.mxu0 0.0
    %2468 = vmatprep.subr.mxu0 0.0
    %2469 = vmatpush1.xpose.msra.mxu0 0.0
    %2470 = vmatprep.subr.mxu0 0.0
    %2471 = vmatpush1.xpose.msra.mxu0 0.0
    %2472 = vmatprep.mubr.f32.mxu0 0.0
    %2473 = vmatmul.mubr.f32.gmra.mrb[0].mxu0 %v2404
    %v2474 = vpop.f32.mrb[0].mxu0
    %v2475 = vadd.f32 0.0, %v2474
    %v2476 = vpop.f32.mrb[0].mxu0
    %2477 = vdwg.mxu0
    %2478 = vrot.lane.b32.xlu0 %v2167, 96
    %v2479 = vpop.permute.xlu0 %2478
    %v2480 = vsel %vm336, %v2167, 0
    %v2482 = vsel %vm336, %v2479, 0
    %2484 = vmatprep.subr.mxu0 0.0
    %2485 = vmatpush1.xpose.msra.mxu0 %v2482
    %2486 = vmatprep.subr.mxu0 0.0
    %2487 = vmatpush1.xpose.msra.mxu0 0.0
    %2488 = vmatprep.subr.mxu0 0.0
    %2489 = vmatpush1.xpose.msra.mxu0 0.0
    %2490 = vmatprep.subr.mxu0 0.0
    %2491 = vmatpush1.xpose.msra.mxu0 0.0
    %2492 = vmatprep.subr.mxu0 0.0
    %2493 = vmatpush1.xpose.msra.mxu0 0.0
    %2494 = vmatprep.subr.mxu0 0.0
    %2495 = vmatpush1.xpose.msra.mxu0 0.0
    %2496 = vmatprep.subr.mxu0 0.0
    %2497 = vmatpush1.xpose.msra.mxu0 0.0
    %2498 = vmatprep.subr.mxu0 0.0
    %2499 = vmatpush1.xpose.msra.mxu0 0.0
    %2500 = vmatprep.subr.mxu0 0.0
    %2501 = vmatpush1.xpose.msra.mxu0 0.0
    %2502 = vmatprep.subr.mxu0 0.0
    %2503 = vmatpush1.xpose.msra.mxu0 0.0
    %2504 = vmatprep.subr.mxu0 0.0
    %2505 = vmatpush1.xpose.msra.mxu0 0.0
    %2506 = vmatprep.subr.mxu0 0.0
    %2507 = vmatpush1.xpose.msra.mxu0 0.0
    %2508 = vmatprep.subr.mxu0 0.0
    %2509 = vmatpush1.xpose.msra.mxu0 0.0
    %2510 = vmatprep.subr.mxu0 0.0
    %2511 = vmatpush1.xpose.msra.mxu0 0.0
    %2512 = vmatprep.subr.mxu0 0.0
    %2513 = vmatpush1.xpose.msra.mxu0 0.0
    %2514 = vmatprep.subr.mxu0 0.0
    %2515 = vmatpush1.xpose.msra.mxu0 0.0
    %2516 = vmatprep.subr.mxu0 0.0
    %2517 = vmatpush1.xpose.msra.mxu0 0.0
    %2518 = vmatprep.subr.mxu0 0.0
    %2519 = vmatpush1.xpose.msra.mxu0 0.0
    %2520 = vmatprep.subr.mxu0 0.0
    %2521 = vmatpush1.xpose.msra.mxu0 0.0
    %2522 = vmatprep.subr.mxu0 0.0
    %2523 = vmatpush1.xpose.msra.mxu0 0.0
    %2524 = vmatprep.subr.mxu0 0.0
    %2525 = vmatpush1.xpose.msra.mxu0 0.0
    %2526 = vmatprep.subr.mxu0 0.0
    %2527 = vmatpush1.xpose.msra.mxu0 0.0
    %2528 = vmatprep.subr.mxu0 0.0
    %2529 = vmatpush1.xpose.msra.mxu0 0.0
    %2530 = vmatprep.subr.mxu0 0.0
    %2531 = vmatpush1.xpose.msra.mxu0 0.0
    %2532 = vmatprep.subr.mxu0 0.0
    %2533 = vmatpush1.xpose.msra.mxu0 0.0
    %2534 = vmatprep.subr.mxu0 0.0
    %2535 = vmatpush1.xpose.msra.mxu0 0.0
    %2536 = vmatprep.subr.mxu0 0.0
    %2537 = vmatpush1.xpose.msra.mxu0 0.0
    %2538 = vmatprep.subr.mxu0 0.0
    %2539 = vmatpush1.xpose.msra.mxu0 0.0
    %2540 = vmatprep.subr.mxu0 0.0
    %2541 = vmatpush1.xpose.msra.mxu0 0.0
    %2542 = vmatprep.subr.mxu0 0.0
    %2543 = vmatpush1.xpose.msra.mxu0 0.0
    %2544 = vmatprep.subr.mxu0 0.0
    %2545 = vmatpush1.xpose.msra.mxu0 0.0
    %2546 = vmatprep.subr.mxu0 0.0
    %2547 = vmatpush1.xpose.msra.mxu0 0.0
    %2548 = vmatprep.mubr.f32.mxu0 0.0
    %2549 = vmatmul.mubr.f32.gmra.mrb[0].mxu0 %v2480
    %v2550 = vpop.f32.mrb[0].mxu0
    %v2551 = vadd.f32 0.0, %v2550
    %v2552 = vpop.f32.mrb[0].mxu0
    %2553 = vdwg.mxu0
    %2554 = vrot.lane.b32.xlu0 %v2169, 96
    %v2555 = vpop.permute.xlu0 %2554
    %v2556 = vsel %vm336, %v2169, 0
    %v2558 = vsel %vm336, %v2555, 0
    %2560 = vmatprep.subr.mxu0 0.0
    %2561 = vmatpush1.xpose.msra.mxu0 %v2558
    %2562 = vmatprep.subr.mxu0 0.0
    %2563 = vmatpush1.xpose.msra.mxu0 0.0
    %2564 = vmatprep.subr.mxu0 0.0
    %2565 = vmatpush1.xpose.msra.mxu0 0.0
    %2566 = vmatprep.subr.mxu0 0.0
    %2567 = vmatpush1.xpose.msra.mxu0 0.0
    %2568 = vmatprep.subr.mxu0 0.0
    %2569 = vmatpush1.xpose.msra.mxu0 0.0
    %2570 = vmatprep.subr.mxu0 0.0
    %2571 = vmatpush1.xpose.msra.mxu0 0.0
    %2572 = vmatprep.subr.mxu0 0.0
    %2573 = vmatpush1.xpose.msra.mxu0 0.0
    %2574 = vmatprep.subr.mxu0 0.0
    %2575 = vmatpush1.xpose.msra.mxu0 0.0
    %2576 = vmatprep.subr.mxu0 0.0
    %2577 = vmatpush1.xpose.msra.mxu0 0.0
    %2578 = vmatprep.subr.mxu0 0.0
    %2579 = vmatpush1.xpose.msra.mxu0 0.0
    %2580 = vmatprep.subr.mxu0 0.0
    %2581 = vmatpush1.xpose.msra.mxu0 0.0
    %2582 = vmatprep.subr.mxu0 0.0
    %2583 = vmatpush1.xpose.msra.mxu0 0.0
    %2584 = vmatprep.subr.mxu0 0.0
    %2585 = vmatpush1.xpose.msra.mxu0 0.0
    %2586 = vmatprep.subr.mxu0 0.0
    %2587 = vmatpush1.xpose.msra.mxu0 0.0
    %2588 = vmatprep.subr.mxu0 0.0
    %2589 = vmatpush1.xpose.msra.mxu0 0.0
    %2590 = vmatprep.subr.mxu0 0.0
    %2591 = vmatpush1.xpose.msra.mxu0 0.0
    %2592 = vmatprep.subr.mxu0 0.0
    %2593 = vmatpush1.xpose.msra.mxu0 0.0
    %2594 = vmatprep.subr.mxu0 0.0
    %2595 = vmatpush1.xpose.msra.mxu0 0.0
    %2596 = vmatprep.subr.mxu0 0.0
    %2597 = vmatpush1.xpose.msra.mxu0 0.0
    %2598 = vmatprep.subr.mxu0 0.0
    %2599 = vmatpush1.xpose.msra.mxu0 0.0
    %2600 = vmatprep.subr.mxu0 0.0
    %2601 = vmatpush1.xpose.msra.mxu0 0.0
    %2602 = vmatprep.subr.mxu0 0.0
    %2603 = vmatpush1.xpose.msra.mxu0 0.0
    %2604 = vmatprep.subr.mxu0 0.0
    %2605 = vmatpush1.xpose.msra.mxu0 0.0
    %2606 = vmatprep.subr.mxu0 0.0
    %2607 = vmatpush1.xpose.msra.mxu0 0.0
    %2608 = vmatprep.subr.mxu0 0.0
    %2609 = vmatpush1.xpose.msra.mxu0 0.0
    %2610 = vmatprep.subr.mxu0 0.0
    %2611 = vmatpush1.xpose.msra.mxu0 0.0
    %2612 = vmatprep.subr.mxu0 0.0
    %2613 = vmatpush1.xpose.msra.mxu0 0.0
    %2614 = vmatprep.subr.mxu0 0.0
    %2615 = vmatpush1.xpose.msra.mxu0 0.0
    %2616 = vmatprep.subr.mxu0 0.0
    %2617 = vmatpush1.xpose.msra.mxu0 0.0
    %2618 = vmatprep.subr.mxu0 0.0
    %2619 = vmatpush1.xpose.msra.mxu0 0.0
    %2620 = vmatprep.subr.mxu0 0.0
    %2621 = vmatpush1.xpose.msra.mxu0 0.0
    %2622 = vmatprep.subr.mxu0 0.0
    %2623 = vmatpush1.xpose.msra.mxu0 0.0
    %2624 = vmatprep.mubr.f32.mxu0 0.0
    %2625 = vmatmul.mubr.f32.gmra.mrb[0].mxu0 %v2556
    %v2626 = vpop.f32.mrb[0].mxu0
    %v2627 = vadd.f32 0.0, %v2626
    %v2628 = vpop.f32.mrb[0].mxu0
    %2629 = vdwg.mxu0
    %2630 = vrot.lane.b32.xlu0 %v2171, 96
    %v2631 = vpop.permute.xlu0 %2630
    %v2632 = vsel %vm336, %v2171, 0
    %v2634 = vsel %vm336, %v2631, 0
    %2636 = vmatprep.subr.mxu0 0.0
    %2637 = vmatpush1.xpose.msra.mxu0 %v2634
    %2638 = vmatprep.subr.mxu0 0.0
    %2639 = vmatpush1.xpose.msra.mxu0 0.0
    %2640 = vmatprep.subr.mxu0 0.0
    %2641 = vmatpush1.xpose.msra.mxu0 0.0
    %2642 = vmatprep.subr.mxu0 0.0
    %2643 = vmatpush1.xpose.msra.mxu0 0.0
    %2644 = vmatprep.subr.mxu0 0.0
    %2645 = vmatpush1.xpose.msra.mxu0 0.0
    %2646 = vmatprep.subr.mxu0 0.0
    %2647 = vmatpush1.xpose.msra.mxu0 0.0
    %2648 = vmatprep.subr.mxu0 0.0
    %2649 = vmatpush1.xpose.msra.mxu0 0.0
    %2650 = vmatprep.subr.mxu0 0.0
    %2651 = vmatpush1.xpose.msra.mxu0 0.0
    %2652 = vmatprep.subr.mxu0 0.0
    %2653 = vmatpush1.xpose.msra.mxu0 0.0
    %2654 = vmatprep.subr.mxu0 0.0
    %2655 = vmatpush1.xpose.msra.mxu0 0.0
    %2656 = vmatprep.subr.mxu0 0.0
    %2657 = vmatpush1.xpose.msra.mxu0 0.0
    %2658 = vmatprep.subr.mxu0 0.0
    %2659 = vmatpush1.xpose.msra.mxu0 0.0
    %2660 = vmatprep.subr.mxu0 0.0
    %2661 = vmatpush1.xpose.msra.mxu0 0.0
    %2662 = vmatprep.subr.mxu0 0.0
    %2663 = vmatpush1.xpose.msra.mxu0 0.0
    %2664 = vmatprep.subr.mxu0 0.0
    %2665 = vmatpush1.xpose.msra.mxu0 0.0
    %2666 = vmatprep.subr.mxu0 0.0
    %2667 = vmatpush1.xpose.msra.mxu0 0.0
    %2668 = vmatprep.subr.mxu0 0.0
    %2669 = vmatpush1.xpose.msra.mxu0 0.0
    %2670 = vmatprep.subr.mxu0 0.0
    %2671 = vmatpush1.xpose.msra.mxu0 0.0
    %2672 = vmatprep.subr.mxu0 0.0
    %2673 = vmatpush1.xpose.msra.mxu0 0.0
    %2674 = vmatprep.subr.mxu0 0.0
    %2675 = vmatpush1.xpose.msra.mxu0 0.0
    %2676 = vmatprep.subr.mxu0 0.0
    %2677 = vmatpush1.xpose.msra.mxu0 0.0
    %2678 = vmatprep.subr.mxu0 0.0
    %2679 = vmatpush1.xpose.msra.mxu0 0.0
    %2680 = vmatprep.subr.mxu0 0.0
    %2681 = vmatpush1.xpose.msra.mxu0 0.0
    %2682 = vmatprep.subr.mxu0 0.0
    %2683 = vmatpush1.xpose.msra.mxu0 0.0
    %2684 = vmatprep.subr.mxu0 0.0
    %2685 = vmatpush1.xpose.msra.mxu0 0.0
    %2686 = vmatprep.subr.mxu0 0.0
    %2687 = vmatpush1.xpose.msra.mxu0 0.0
    %2688 = vmatprep.subr.mxu0 0.0
    %2689 = vmatpush1.xpose.msra.mxu0 0.0
    %2690 = vmatprep.subr.mxu0 0.0
    %2691 = vmatpush1.xpose.msra.mxu0 0.0
    %2692 = vmatprep.subr.mxu0 0.0
    %2693 = vmatpush1.xpose.msra.mxu0 0.0
    %2694 = vmatprep.subr.mxu0 0.0
    %2695 = vmatpush1.xpose.msra.mxu0 0.0
    %2696 = vmatprep.subr.mxu0 0.0
    %2697 = vmatpush1.xpose.msra.mxu0 0.0
    %2698 = vmatprep.subr.mxu0 0.0
    %2699 = vmatpush1.xpose.msra.mxu0 0.0
    %2700 = vmatprep.mubr.f32.mxu0 0.0
    %2701 = vmatmul.mubr.f32.gmra.mrb[0].mxu0 %v2632
    %v2702 = vpop.f32.mrb[0].mxu0
    %v2703 = vadd.f32 0.0, %v2702
    %v2704 = vpop.f32.mrb[0].mxu0
    %2705 = vdwg.mxu0
    %2706 = vrot.lane.b32.xlu0 %v2173, 96
    %v2707 = vpop.permute.xlu0 %2706
    %v2708 = vsel %vm336, %v2173, 0
    %v2710 = vsel %vm336, %v2707, 0
    %2712 = vmatprep.subr.mxu0 0.0
    %2713 = vmatpush1.xpose.msra.mxu0 %v2710
    %2714 = vmatprep.subr.mxu0 0.0
    %2715 = vmatpush1.xpose.msra.mxu0 0.0
    %2716 = vmatprep.subr.mxu0 0.0
    %2717 = vmatpush1.xpose.msra.mxu0 0.0
    %2718 = vmatprep.subr.mxu0 0.0
    %2719 = vmatpush1.xpose.msra.mxu0 0.0
    %2720 = vmatprep.subr.mxu0 0.0
    %2721 = vmatpush1.xpose.msra.mxu0 0.0
    %2722 = vmatprep.subr.mxu0 0.0
    %2723 = vmatpush1.xpose.msra.mxu0 0.0
    %2724 = vmatprep.subr.mxu0 0.0
    %2725 = vmatpush1.xpose.msra.mxu0 0.0
    %2726 = vmatprep.subr.mxu0 0.0
    %2727 = vmatpush1.xpose.msra.mxu0 0.0
    %2728 = vmatprep.subr.mxu0 0.0
    %2729 = vmatpush1.xpose.msra.mxu0 0.0
    %2730 = vmatprep.subr.mxu0 0.0
    %2731 = vmatpush1.xpose.msra.mxu0 0.0
    %2732 = vmatprep.subr.mxu0 0.0
    %2733 = vmatpush1.xpose.msra.mxu0 0.0
    %2734 = vmatprep.subr.mxu0 0.0
    %2735 = vmatpush1.xpose.msra.mxu0 0.0
    %2736 = vmatprep.subr.mxu0 0.0
    %2737 = vmatpush1.xpose.msra.mxu0 0.0
    %2738 = vmatprep.subr.mxu0 0.0
    %2739 = vmatpush1.xpose.msra.mxu0 0.0
    %2740 = vmatprep.subr.mxu0 0.0
    %2741 = vmatpush1.xpose.msra.mxu0 0.0
    %2742 = vmatprep.subr.mxu0 0.0
    %2743 = vmatpush1.xpose.msra.mxu0 0.0
    %2744 = vmatprep.subr.mxu0 0.0
    %2745 = vmatpush1.xpose.msra.mxu0 0.0
    %2746 = vmatprep.subr.mxu0 0.0
    %2747 = vmatpush1.xpose.msra.mxu0 0.0
    %2748 = vmatprep.subr.mxu0 0.0
    %2749 = vmatpush1.xpose.msra.mxu0 0.0
    %2750 = vmatprep.subr.mxu0 0.0
    %2751 = vmatpush1.xpose.msra.mxu0 0.0
    %2752 = vmatprep.subr.mxu0 0.0
    %2753 = vmatpush1.xpose.msra.mxu0 0.0
    %2754 = vmatprep.subr.mxu0 0.0
    %2755 = vmatpush1.xpose.msra.mxu0 0.0
    %2756 = vmatprep.subr.mxu0 0.0
    %2757 = vmatpush1.xpose.msra.mxu0 0.0
    %2758 = vmatprep.subr.mxu0 0.0
    %2759 = vmatpush1.xpose.msra.mxu0 0.0
    %2760 = vmatprep.subr.mxu0 0.0
    %2761 = vmatpush1.xpose.msra.mxu0 0.0
    %2762 = vmatprep.subr.mxu0 0.0
    %2763 = vmatpush1.xpose.msra.mxu0 0.0
    %2764 = vmatprep.subr.mxu0 0.0
    %2765 = vmatpush1.xpose.msra.mxu0 0.0
    %2766 = vmatprep.subr.mxu0 0.0
    %2767 = vmatpush1.xpose.msra.mxu0 0.0
    %2768 = vmatprep.subr.mxu0 0.0
    %2769 = vmatpush1.xpose.msra.mxu0 0.0
    %2770 = vmatprep.subr.mxu0 0.0
    %2771 = vmatpush1.xpose.msra.mxu0 0.0
    %2772 = vmatprep.subr.mxu0 0.0
    %2773 = vmatpush1.xpose.msra.mxu0 0.0
    %2774 = vmatprep.subr.mxu0 0.0
    %2775 = vmatpush1.xpose.msra.mxu0 0.0
    %2776 = vmatprep.mubr.f32.mxu0 0.0
    %2777 = vmatmul.mubr.f32.gmra.mrb[0].mxu0 %v2708
    %v2778 = vpop.f32.mrb[0].mxu0
    %v2779 = vadd.f32 0.0, %v2778
    %v2780 = vpop.f32.mrb[0].mxu0
    %2781 = vdwg.mxu0
    %v2782 = vmul.f32 %v2247, 0.35355338
    %v2783 = vmul.f32 %v2323, 0.35355338
    %v2784 = vmul.f32 %v2399, 0.35355338
    %v2785 = vmul.f32 %v2475, 0.35355338
    %v2786 = vmul.f32 %v2551, 0.35355338
    %v2787 = vmul.f32 %v2627, 0.35355338
    %v2788 = vmul.f32 %v2703, 0.35355338
    %v2789 = vmul.f32 %v2779, 0.35355338
    %v2790 = vsel %vm189, %v2782, -1e+30
    %v2791 = vsel %vm189, %v2783, -1e+30
    %v2792 = vsel %vm189, %v2784, -1e+30
    %v2793 = vsel %vm189, %v2785, -1e+30
    %v2794 = vsel %vm189, %v2786, -1e+30
    %v2795 = vsel %vm189, %v2787, -1e+30
    %v2796 = vsel %vm189, %v2788, -1e+30
    %v2797 = vsel %vm189, %v2789, -1e+30
    %v2798 = vsel %vm336, %v2790, -inf
    %2799 = vmax.xlane.f32.xlu0 %v2798
    %v2800 = vpop.xlane.xlu0 %2799
    %v2801 = vsel %vm336, %v2791, -inf
    %2802 = vmax.xlane.f32.xlu0 %v2801
    %v2803 = vpop.xlane.xlu0 %2802
    %v2804 = vsel %vm336, %v2792, -inf
    %2805 = vmax.xlane.f32.xlu0 %v2804
    %v2806 = vpop.xlane.xlu0 %2805
    %v2807 = vsel %vm336, %v2793, -inf
    %2808 = vmax.xlane.f32.xlu0 %v2807
    %v2809 = vpop.xlane.xlu0 %2808
    %v2810 = vsel %vm336, %v2794, -inf
    %2811 = vmax.xlane.f32.xlu0 %v2810
    %v2812 = vpop.xlane.xlu0 %2811
    %v2813 = vsel %vm336, %v2795, -inf
    %2814 = vmax.xlane.f32.xlu0 %v2813
    %v2815 = vpop.xlane.xlu0 %2814
    %v2816 = vsel %vm336, %v2796, -inf
    %2817 = vmax.xlane.f32.xlu0 %v2816
    %v2818 = vpop.xlane.xlu0 %2817
    %v2819 = vsel %vm336, %v2797, -inf
    %2820 = vmax.xlane.f32.xlu0 %v2819
    %v2821 = vpop.xlane.xlu0 %2820
    %v2822 = vsub.f32 %v2790, %v2800
    %v2823 = vsub.f32 %v2791, %v2803
    %v2824 = vsub.f32 %v2792, %v2806
    %v2825 = vsub.f32 %v2793, %v2809
    %v2826 = vsub.f32 %v2794, %v2812
    %v2827 = vsub.f32 %v2795, %v2815
    %v2828 = vsub.f32 %v2796, %v2818
    %v2829 = vsub.f32 %v2797, %v2821
    %v2830 = vmul.f32 %v2822, 1.442695
    %v2831 = vpow.pop %v2830
    %v2832 = vmul.f32 %v2823, 1.442695
    %v2833 = vpow.pop %v2832
    %v2834 = vmul.f32 %v2824, 1.442695
    %v2835 = vpow.pop %v2834
    %v2836 = vmul.f32 %v2825, 1.442695
    %v2837 = vpow.pop %v2836
    %v2838 = vmul.f32 %v2826, 1.442695
    %v2839 = vpow.pop %v2838
    %v2840 = vmul.f32 %v2827, 1.442695
    %v2841 = vpow.pop %v2840
    %v2842 = vmul.f32 %v2828, 1.442695
    %v2843 = vpow.pop %v2842
    %v2844 = vmul.f32 %v2829, 1.442695
    %v2845 = vpow.pop %v2844
    %v2846 = vsel %vm336, %v2831, 0.0
    %2847 = vadd.xlane.f32.xlu0 %v2846
    %v2848 = vpop.xlane.xlu0 %2847
    %v2849 = vsel %vm336, %v2833, 0.0
    %2850 = vadd.xlane.f32.xlu0 %v2849
    %v2851 = vpop.xlane.xlu0 %2850
    %v2852 = vsel %vm336, %v2835, 0.0
    %2853 = vadd.xlane.f32.xlu0 %v2852
    %v2854 = vpop.xlane.xlu0 %2853
    %v2855 = vsel %vm336, %v2837, 0.0
    %2856 = vadd.xlane.f32.xlu0 %v2855
    %v2857 = vpop.xlane.xlu0 %2856
    %v2858 = vsel %vm336, %v2839, 0.0
    %2859 = vadd.xlane.f32.xlu0 %v2858
    %v2860 = vpop.xlane.xlu0 %2859
    %v2861 = vsel %vm336, %v2841, 0.0
    %2862 = vadd.xlane.f32.xlu0 %v2861
    %v2863 = vpop.xlane.xlu0 %2862
    %v2864 = vsel %vm336, %v2843, 0.0
    %2865 = vadd.xlane.f32.xlu0 %v2864
    %v2866 = vpop.xlane.xlu0 %2865
    %v2867 = vsel %vm336, %v2845, 0.0
    %2868 = vadd.xlane.f32.xlu0 %v2867
    %v2869 = vpop.xlane.xlu0 %2868
    %v2870 = vrcp.pop %v2848
    %v2871 = vrcp.pop %v2851
    %v2872 = vrcp.pop %v2854
    %v2873 = vrcp.pop %v2857
    %v2874 = vrcp.pop %v2860
    %v2875 = vrcp.pop %v2863
    %v2876 = vrcp.pop %v2866
    %v2877 = vrcp.pop %v2869
    %v2878 = vmul.f32 %v2831, %v2870
    %v2879 = vmul.f32 %v2833, %v2871
    %v2880 = vmul.f32 %v2835, %v2872
    %v2881 = vmul.f32 %v2837, %v2873
    %v2882 = vmul.f32 %v2839, %v2874
    %v2883 = vmul.f32 %v2841, %v2875
    %v2884 = vmul.f32 %v2843, %v2876
    %v2885 = vmul.f32 %v2845, %v2877
    %2886 = vrot.lane.b32.xlu0 %v2152, 64
    %v2887 = vpop.permute.xlu0 %2886
    %v2890 = vsel %vm336, %v2878, 0
    %2892 = vmatprep.subr.mxu0 0.0
    %2893 = vmatpush1.msra.mxu0 %v2887
    %2894 = vmatprep.subr.mxu0 0.0
    %2895 = vmatpush1.msra.mxu0 0.0
    %2896 = vmatprep.subr.mxu0 0.0
    %2897 = vmatpush1.msra.mxu0 0.0
    %2898 = vmatprep.subr.mxu0 0.0
    %2899 = vmatpush1.msra.mxu0 0.0
    %2900 = vmatprep.subr.mxu0 0.0
    %2901 = vmatpush1.msra.mxu0 0.0
    %2902 = vmatprep.subr.mxu0 0.0
    %2903 = vmatpush1.msra.mxu0 0.0
    %2904 = vmatprep.subr.mxu0 0.0
    %2905 = vmatpush1.msra.mxu0 0.0
    %2906 = vmatprep.subr.mxu0 0.0
    %2907 = vmatpush1.msra.mxu0 0.0
    %2908 = vmatprep.subr.mxu0 0.0
    %2909 = vmatpush1.msra.mxu0 0.0
    %2910 = vmatprep.subr.mxu0 0.0
    %2911 = vmatpush1.msra.mxu0 0.0
    %2912 = vmatprep.subr.mxu0 0.0
    %2913 = vmatpush1.msra.mxu0 0.0
    %2914 = vmatprep.subr.mxu0 0.0
    %2915 = vmatpush1.msra.mxu0 0.0
    %2916 = vmatprep.subr.mxu0 0.0
    %2917 = vmatpush1.msra.mxu0 0.0
    %2918 = vmatprep.subr.mxu0 0.0
    %2919 = vmatpush1.msra.mxu0 0.0
    %2920 = vmatprep.subr.mxu0 0.0
    %2921 = vmatpush1.msra.mxu0 0.0
    %2922 = vmatprep.subr.mxu0 0.0
    %2923 = vmatpush1.msra.mxu0 0.0
    %2924 = vmatprep.subr.mxu0 0.0
    %2925 = vmatpush1.msra.mxu0 0.0
    %2926 = vmatprep.subr.mxu0 0.0
    %2927 = vmatpush1.msra.mxu0 0.0
    %2928 = vmatprep.subr.mxu0 0.0
    %2929 = vmatpush1.msra.mxu0 0.0
    %2930 = vmatprep.subr.mxu0 0.0
    %2931 = vmatpush1.msra.mxu0 0.0
    %2932 = vmatprep.subr.mxu0 0.0
    %2933 = vmatpush1.msra.mxu0 0.0
    %2934 = vmatprep.subr.mxu0 0.0
    %2935 = vmatpush1.msra.mxu0 0.0
    %2936 = vmatprep.subr.mxu0 0.0
    %2937 = vmatpush1.msra.mxu0 0.0
    %2938 = vmatprep.subr.mxu0 0.0
    %2939 = vmatpush1.msra.mxu0 0.0
    %2940 = vmatprep.subr.mxu0 0.0
    %2941 = vmatpush1.msra.mxu0 0.0
    %2942 = vmatprep.subr.mxu0 0.0
    %2943 = vmatpush1.msra.mxu0 0.0
    %2944 = vmatprep.subr.mxu0 0.0
    %2945 = vmatpush1.msra.mxu0 0.0
    %2946 = vmatprep.subr.mxu0 0.0
    %2947 = vmatpush1.msra.mxu0 0.0
    %2948 = vmatprep.subr.mxu0 0.0
    %2949 = vmatpush1.msra.mxu0 0.0
    %2950 = vmatprep.subr.mxu0 0.0
    %2951 = vmatpush1.msra.mxu0 0.0
    %2952 = vmatprep.subr.mxu0 0.0
    %2953 = vmatpush1.msra.mxu0 0.0
    %2954 = vmatprep.subr.mxu0 0.0
    %2955 = vmatpush1.msra.mxu0 0.0
    %2956 = vmatprep.mubr.f32.mxu0 0.0
    %2957 = vmatmul.mubr.f32.gmra.mrb[0].mxu0 %v2890
    %v2958 = vpop.f32.mrb[0].mxu0
    %v2959 = vadd.f32 0.0, %v2958
    %v2960 = vpop.f32.mrb[0].mxu0
    %2961 = vdwg.mxu0
    %2962 = vrot.lane.b32.xlu0 %v2157, 64
    %v2963 = vpop.permute.xlu0 %2962
    %v2966 = vsel %vm336, %v2879, 0
    %2968 = vmatprep.subr.mxu0 0.0
    %2969 = vmatpush1.msra.mxu0 %v2963
    %2970 = vmatprep.subr.mxu0 0.0
    %2971 = vmatpush1.msra.mxu0 0.0
    %2972 = vmatprep.subr.mxu0 0.0
    %2973 = vmatpush1.msra.mxu0 0.0
    %2974 = vmatprep.subr.mxu0 0.0
    %2975 = vmatpush1.msra.mxu0 0.0
    %2976 = vmatprep.subr.mxu0 0.0
    %2977 = vmatpush1.msra.mxu0 0.0
    %2978 = vmatprep.subr.mxu0 0.0
    %2979 = vmatpush1.msra.mxu0 0.0
    %2980 = vmatprep.subr.mxu0 0.0
    %2981 = vmatpush1.msra.mxu0 0.0
    %2982 = vmatprep.subr.mxu0 0.0
    %2983 = vmatpush1.msra.mxu0 0.0
    %2984 = vmatprep.subr.mxu0 0.0
    %2985 = vmatpush1.msra.mxu0 0.0
    %2986 = vmatprep.subr.mxu0 0.0
    %2987 = vmatpush1.msra.mxu0 0.0
    %2988 = vmatprep.subr.mxu0 0.0
    %2989 = vmatpush1.msra.mxu0 0.0
    %2990 = vmatprep.subr.mxu0 0.0
    %2991 = vmatpush1.msra.mxu0 0.0
    %2992 = vmatprep.subr.mxu0 0.0
    %2993 = vmatpush1.msra.mxu0 0.0
    %2994 = vmatprep.subr.mxu0 0.0
    %2995 = vmatpush1.msra.mxu0 0.0
    %2996 = vmatprep.subr.mxu0 0.0
    %2997 = vmatpush1.msra.mxu0 0.0
    %2998 = vmatprep.subr.mxu0 0.0
    %2999 = vmatpush1.msra.mxu0 0.0
    %3000 = vmatprep.subr.mxu0 0.0
    %3001 = vmatpush1.msra.mxu0 0.0
    %3002 = vmatprep.subr.mxu0 0.0
    %3003 = vmatpush1.msra.mxu0 0.0
    %3004 = vmatprep.subr.mxu0 0.0
    %3005 = vmatpush1.msra.mxu0 0.0
    %3006 = vmatprep.subr.mxu0 0.0
    %3007 = vmatpush1.msra.mxu0 0.0
    %3008 = vmatprep.subr.mxu0 0.0
    %3009 = vmatpush1.msra.mxu0 0.0
    %3010 = vmatprep.subr.mxu0 0.0
    %3011 = vmatpush1.msra.mxu0 0.0
    %3012 = vmatprep.subr.mxu0 0.0
    %3013 = vmatpush1.msra.mxu0 0.0
    %3014 = vmatprep.subr.mxu0 0.0
    %3015 = vmatpush1.msra.mxu0 0.0
    %3016 = vmatprep.subr.mxu0 0.0
    %3017 = vmatpush1.msra.mxu0 0.0
    %3018 = vmatprep.subr.mxu0 0.0
    %3019 = vmatpush1.msra.mxu0 0.0
    %3020 = vmatprep.subr.mxu0 0.0
    %3021 = vmatpush1.msra.mxu0 0.0
    %3022 = vmatprep.subr.mxu0 0.0
    %3023 = vmatpush1.msra.mxu0 0.0
    %3024 = vmatprep.subr.mxu0 0.0
    %3025 = vmatpush1.msra.mxu0 0.0
    %3026 = vmatprep.subr.mxu0 0.0
    %3027 = vmatpush1.msra.mxu0 0.0
    %3028 = vmatprep.subr.mxu0 0.0
    %3029 = vmatpush1.msra.mxu0 0.0
    %3030 = vmatprep.subr.mxu0 0.0
    %3031 = vmatpush1.msra.mxu0 0.0
    %3032 = vmatprep.mubr.f32.mxu0 0.0
    %3033 = vmatmul.mubr.f32.gmra.mrb[0].mxu0 %v2966
    %v3034 = vpop.f32.mrb[0].mxu0
    %v3035 = vadd.f32 0.0, %v3034
    %v3036 = vpop.f32.mrb[0].mxu0
    %3037 = vdwg.mxu0
    %3038 = vrot.lane.b32.xlu0 %v2163, 64
    %v3039 = vpop.permute.xlu0 %3038
    %v3042 = vsel %vm336, %v2880, 0
    %3044 = vmatprep.subr.mxu0 0.0
    %3045 = vmatpush1.msra.mxu0 %v3039
    %3046 = vmatprep.subr.mxu0 0.0
    %3047 = vmatpush1.msra.mxu0 0.0
    %3048 = vmatprep.subr.mxu0 0.0
    %3049 = vmatpush1.msra.mxu0 0.0
    %3050 = vmatprep.subr.mxu0 0.0
    %3051 = vmatpush1.msra.mxu0 0.0
    %3052 = vmatprep.subr.mxu0 0.0
    %3053 = vmatpush1.msra.mxu0 0.0
    %3054 = vmatprep.subr.mxu0 0.0
    %3055 = vmatpush1.msra.mxu0 0.0
    %3056 = vmatprep.subr.mxu0 0.0
    %3057 = vmatpush1.msra.mxu0 0.0
    %3058 = vmatprep.subr.mxu0 0.0
    %3059 = vmatpush1.msra.mxu0 0.0
    %3060 = vmatprep.subr.mxu0 0.0
    %3061 = vmatpush1.msra.mxu0 0.0
    %3062 = vmatprep.subr.mxu0 0.0
    %3063 = vmatpush1.msra.mxu0 0.0
    %3064 = vmatprep.subr.mxu0 0.0
    %3065 = vmatpush1.msra.mxu0 0.0
    %3066 = vmatprep.subr.mxu0 0.0
    %3067 = vmatpush1.msra.mxu0 0.0
    %3068 = vmatprep.subr.mxu0 0.0
    %3069 = vmatpush1.msra.mxu0 0.0
    %3070 = vmatprep.subr.mxu0 0.0
    %3071 = vmatpush1.msra.mxu0 0.0
    %3072 = vmatprep.subr.mxu0 0.0
    %3073 = vmatpush1.msra.mxu0 0.0
    %3074 = vmatprep.subr.mxu0 0.0
    %3075 = vmatpush1.msra.mxu0 0.0
    %3076 = vmatprep.subr.mxu0 0.0
    %3077 = vmatpush1.msra.mxu0 0.0
    %3078 = vmatprep.subr.mxu0 0.0
    %3079 = vmatpush1.msra.mxu0 0.0
    %3080 = vmatprep.subr.mxu0 0.0
    %3081 = vmatpush1.msra.mxu0 0.0
    %3082 = vmatprep.subr.mxu0 0.0
    %3083 = vmatpush1.msra.mxu0 0.0
    %3084 = vmatprep.subr.mxu0 0.0
    %3085 = vmatpush1.msra.mxu0 0.0
    %3086 = vmatprep.subr.mxu0 0.0
    %3087 = vmatpush1.msra.mxu0 0.0
    %3088 = vmatprep.subr.mxu0 0.0
    %3089 = vmatpush1.msra.mxu0 0.0
    %3090 = vmatprep.subr.mxu0 0.0
    %3091 = vmatpush1.msra.mxu0 0.0
    %3092 = vmatprep.subr.mxu0 0.0
    %3093 = vmatpush1.msra.mxu0 0.0
    %3094 = vmatprep.subr.mxu0 0.0
    %3095 = vmatpush1.msra.mxu0 0.0
    %3096 = vmatprep.subr.mxu0 0.0
    %3097 = vmatpush1.msra.mxu0 0.0
    %3098 = vmatprep.subr.mxu0 0.0
    %3099 = vmatpush1.msra.mxu0 0.0
    %3100 = vmatprep.subr.mxu0 0.0
    %3101 = vmatpush1.msra.mxu0 0.0
    %3102 = vmatprep.subr.mxu0 0.0
    %3103 = vmatpush1.msra.mxu0 0.0
    %3104 = vmatprep.subr.mxu0 0.0
    %3105 = vmatpush1.msra.mxu0 0.0
    %3106 = vmatprep.subr.mxu0 0.0
    %3107 = vmatpush1.msra.mxu0 0.0
    %3108 = vmatprep.mubr.f32.mxu0 0.0
    %3109 = vmatmul.mubr.f32.gmra.mrb[0].mxu0 %v3042
    %v3110 = vpop.f32.mrb[0].mxu0
    %v3111 = vadd.f32 0.0, %v3110
    %v3112 = vpop.f32.mrb[0].mxu0
    %3113 = vdwg.mxu0
    %3114 = vrot.lane.b32.xlu0 %v2165, 64
    %v3115 = vpop.permute.xlu0 %3114
    %v3118 = vsel %vm336, %v2881, 0
    %3120 = vmatprep.subr.mxu0 0.0
    %3121 = vmatpush1.msra.mxu0 %v3115
    %3122 = vmatprep.subr.mxu0 0.0
    %3123 = vmatpush1.msra.mxu0 0.0
    %3124 = vmatprep.subr.mxu0 0.0
    %3125 = vmatpush1.msra.mxu0 0.0
    %3126 = vmatprep.subr.mxu0 0.0
    %3127 = vmatpush1.msra.mxu0 0.0
    %3128 = vmatprep.subr.mxu0 0.0
    %3129 = vmatpush1.msra.mxu0 0.0
    %3130 = vmatprep.subr.mxu0 0.0
    %3131 = vmatpush1.msra.mxu0 0.0
    %3132 = vmatprep.subr.mxu0 0.0
    %3133 = vmatpush1.msra.mxu0 0.0
    %3134 = vmatprep.subr.mxu0 0.0
    %3135 = vmatpush1.msra.mxu0 0.0
    %3136 = vmatprep.subr.mxu0 0.0
    %3137 = vmatpush1.msra.mxu0 0.0
    %3138 = vmatprep.subr.mxu0 0.0
    %3139 = vmatpush1.msra.mxu0 0.0
    %3140 = vmatprep.subr.mxu0 0.0
    %3141 = vmatpush1.msra.mxu0 0.0
    %3142 = vmatprep.subr.mxu0 0.0
    %3143 = vmatpush1.msra.mxu0 0.0
    %3144 = vmatprep.subr.mxu0 0.0
    %3145 = vmatpush1.msra.mxu0 0.0
    %3146 = vmatprep.subr.mxu0 0.0
    %3147 = vmatpush1.msra.mxu0 0.0
    %3148 = vmatprep.subr.mxu0 0.0
    %3149 = vmatpush1.msra.mxu0 0.0
    %3150 = vmatprep.subr.mxu0 0.0
    %3151 = vmatpush1.msra.mxu0 0.0
    %3152 = vmatprep.subr.mxu0 0.0
    %3153 = vmatpush1.msra.mxu0 0.0
    %3154 = vmatprep.subr.mxu0 0.0
    %3155 = vmatpush1.msra.mxu0 0.0
    %3156 = vmatprep.subr.mxu0 0.0
    %3157 = vmatpush1.msra.mxu0 0.0
    %3158 = vmatprep.subr.mxu0 0.0
    %3159 = vmatpush1.msra.mxu0 0.0
    %3160 = vmatprep.subr.mxu0 0.0
    %3161 = vmatpush1.msra.mxu0 0.0
    %3162 = vmatprep.subr.mxu0 0.0
    %3163 = vmatpush1.msra.mxu0 0.0
    %3164 = vmatprep.subr.mxu0 0.0
    %3165 = vmatpush1.msra.mxu0 0.0
    %3166 = vmatprep.subr.mxu0 0.0
    %3167 = vmatpush1.msra.mxu0 0.0
    %3168 = vmatprep.subr.mxu0 0.0
    %3169 = vmatpush1.msra.mxu0 0.0
    %3170 = vmatprep.subr.mxu0 0.0
    %3171 = vmatpush1.msra.mxu0 0.0
    %3172 = vmatprep.subr.mxu0 0.0
    %3173 = vmatpush1.msra.mxu0 0.0
    %3174 = vmatprep.subr.mxu0 0.0
    %3175 = vmatpush1.msra.mxu0 0.0
    %3176 = vmatprep.subr.mxu0 0.0
    %3177 = vmatpush1.msra.mxu0 0.0
    %3178 = vmatprep.subr.mxu0 0.0
    %3179 = vmatpush1.msra.mxu0 0.0
    %3180 = vmatprep.subr.mxu0 0.0
    %3181 = vmatpush1.msra.mxu0 0.0
    %3182 = vmatprep.subr.mxu0 0.0
    %3183 = vmatpush1.msra.mxu0 0.0
    %3184 = vmatprep.mubr.f32.mxu0 0.0
    %3185 = vmatmul.mubr.f32.gmra.mrb[0].mxu0 %v3118
    %v3186 = vpop.f32.mrb[0].mxu0
    %v3187 = vadd.f32 0.0, %v3186
    %v3188 = vpop.f32.mrb[0].mxu0
    %3189 = vdwg.mxu0
    %3190 = vrot.lane.b32.xlu0 %v2167, 64
    %v3191 = vpop.permute.xlu0 %3190
    %v3194 = vsel %vm336, %v2882, 0
    %3196 = vmatprep.subr.mxu0 0.0
    %3197 = vmatpush1.msra.mxu0 %v3191
    %3198 = vmatprep.subr.mxu0 0.0
    %3199 = vmatpush1.msra.mxu0 0.0
    %3200 = vmatprep.subr.mxu0 0.0
    %3201 = vmatpush1.msra.mxu0 0.0
    %3202 = vmatprep.subr.mxu0 0.0
    %3203 = vmatpush1.msra.mxu0 0.0
    %3204 = vmatprep.subr.mxu0 0.0
    %3205 = vmatpush1.msra.mxu0 0.0
    %3206 = vmatprep.subr.mxu0 0.0
    %3207 = vmatpush1.msra.mxu0 0.0
    %3208 = vmatprep.subr.mxu0 0.0
    %3209 = vmatpush1.msra.mxu0 0.0
    %3210 = vmatprep.subr.mxu0 0.0
    %3211 = vmatpush1.msra.mxu0 0.0
    %3212 = vmatprep.subr.mxu0 0.0
    %3213 = vmatpush1.msra.mxu0 0.0
    %3214 = vmatprep.subr.mxu0 0.0
    %3215 = vmatpush1.msra.mxu0 0.0
    %3216 = vmatprep.subr.mxu0 0.0
    %3217 = vmatpush1.msra.mxu0 0.0
    %3218 = vmatprep.subr.mxu0 0.0
    %3219 = vmatpush1.msra.mxu0 0.0
    %3220 = vmatprep.subr.mxu0 0.0
    %3221 = vmatpush1.msra.mxu0 0.0
    %3222 = vmatprep.subr.mxu0 0.0
    %3223 = vmatpush1.msra.mxu0 0.0
    %3224 = vmatprep.subr.mxu0 0.0
    %3225 = vmatpush1.msra.mxu0 0.0
    %3226 = vmatprep.subr.mxu0 0.0
    %3227 = vmatpush1.msra.mxu0 0.0
    %3228 = vmatprep.subr.mxu0 0.0
    %3229 = vmatpush1.msra.mxu0 0.0
    %3230 = vmatprep.subr.mxu0 0.0
    %3231 = vmatpush1.msra.mxu0 0.0
    %3232 = vmatprep.subr.mxu0 0.0
    %3233 = vmatpush1.msra.mxu0 0.0
    %3234 = vmatprep.subr.mxu0 0.0
    %3235 = vmatpush1.msra.mxu0 0.0
    %3236 = vmatprep.subr.mxu0 0.0
    %3237 = vmatpush1.msra.mxu0 0.0
    %3238 = vmatprep.subr.mxu0 0.0
    %3239 = vmatpush1.msra.mxu0 0.0
    %3240 = vmatprep.subr.mxu0 0.0
    %3241 = vmatpush1.msra.mxu0 0.0
    %3242 = vmatprep.subr.mxu0 0.0
    %3243 = vmatpush1.msra.mxu0 0.0
    %3244 = vmatprep.subr.mxu0 0.0
    %3245 = vmatpush1.msra.mxu0 0.0
    %3246 = vmatprep.subr.mxu0 0.0
    %3247 = vmatpush1.msra.mxu0 0.0
    %3248 = vmatprep.subr.mxu0 0.0
    %3249 = vmatpush1.msra.mxu0 0.0
    %3250 = vmatprep.subr.mxu0 0.0
    %3251 = vmatpush1.msra.mxu0 0.0
    %3252 = vmatprep.subr.mxu0 0.0
    %3253 = vmatpush1.msra.mxu0 0.0
    %3254 = vmatprep.subr.mxu0 0.0
    %3255 = vmatpush1.msra.mxu0 0.0
    %3256 = vmatprep.subr.mxu0 0.0
    %3257 = vmatpush1.msra.mxu0 0.0
    %3258 = vmatprep.subr.mxu0 0.0
    %3259 = vmatpush1.msra.mxu0 0.0
    %3260 = vmatprep.mubr.f32.mxu0 0.0
    %3261 = vmatmul.mubr.f32.gmra.mrb[0].mxu0 %v3194
    %v3262 = vpop.f32.mrb[0].mxu0
    %v3263 = vadd.f32 0.0, %v3262
    %v3264 = vpop.f32.mrb[0].mxu0
    %3265 = vdwg.mxu0
    %3266 = vrot.lane.b32.xlu0 %v2169, 64
    %v3267 = vpop.permute.xlu0 %3266
    %v3270 = vsel %vm336, %v2883, 0
    %3272 = vmatprep.subr.mxu0 0.0
    %3273 = vmatpush1.msra.mxu0 %v3267
    %3274 = vmatprep.subr.mxu0 0.0
    %3275 = vmatpush1.msra.mxu0 0.0
    %3276 = vmatprep.subr.mxu0 0.0
    %3277 = vmatpush1.msra.mxu0 0.0
    %3278 = vmatprep.subr.mxu0 0.0
    %3279 = vmatpush1.msra.mxu0 0.0
    %3280 = vmatprep.subr.mxu0 0.0
    %3281 = vmatpush1.msra.mxu0 0.0
    %3282 = vmatprep.subr.mxu0 0.0
    %3283 = vmatpush1.msra.mxu0 0.0
    %3284 = vmatprep.subr.mxu0 0.0
    %3285 = vmatpush1.msra.mxu0 0.0
    %3286 = vmatprep.subr.mxu0 0.0
    %3287 = vmatpush1.msra.mxu0 0.0
    %3288 = vmatprep.subr.mxu0 0.0
    %3289 = vmatpush1.msra.mxu0 0.0
    %3290 = vmatprep.subr.mxu0 0.0
    %3291 = vmatpush1.msra.mxu0 0.0
    %3292 = vmatprep.subr.mxu0 0.0
    %3293 = vmatpush1.msra.mxu0 0.0
    %3294 = vmatprep.subr.mxu0 0.0
    %3295 = vmatpush1.msra.mxu0 0.0
    %3296 = vmatprep.subr.mxu0 0.0
    %3297 = vmatpush1.msra.mxu0 0.0
    %3298 = vmatprep.subr.mxu0 0.0
    %3299 = vmatpush1.msra.mxu0 0.0
    %3300 = vmatprep.subr.mxu0 0.0
    %3301 = vmatpush1.msra.mxu0 0.0
    %3302 = vmatprep.subr.mxu0 0.0
    %3303 = vmatpush1.msra.mxu0 0.0
    %3304 = vmatprep.subr.mxu0 0.0
    %3305 = vmatpush1.msra.mxu0 0.0
    %3306 = vmatprep.subr.mxu0 0.0
    %3307 = vmatpush1.msra.mxu0 0.0
    %3308 = vmatprep.subr.mxu0 0.0
    %3309 = vmatpush1.msra.mxu0 0.0
    %3310 = vmatprep.subr.mxu0 0.0
    %3311 = vmatpush1.msra.mxu0 0.0
    %3312 = vmatprep.subr.mxu0 0.0
    %3313 = vmatpush1.msra.mxu0 0.0
    %3314 = vmatprep.subr.mxu0 0.0
    %3315 = vmatpush1.msra.mxu0 0.0
    %3316 = vmatprep.subr.mxu0 0.0
    %3317 = vmatpush1.msra.mxu0 0.0
    %3318 = vmatprep.subr.mxu0 0.0
    %3319 = vmatpush1.msra.mxu0 0.0
    %3320 = vmatprep.subr.mxu0 0.0
    %3321 = vmatpush1.msra.mxu0 0.0
    %3322 = vmatprep.subr.mxu0 0.0
    %3323 = vmatpush1.msra.mxu0 0.0
    %3324 = vmatprep.subr.mxu0 0.0
    %3325 = vmatpush1.msra.mxu0 0.0
    %3326 = vmatprep.subr.mxu0 0.0
    %3327 = vmatpush1.msra.mxu0 0.0
    %3328 = vmatprep.subr.mxu0 0.0
    %3329 = vmatpush1.msra.mxu0 0.0
    %3330 = vmatprep.subr.mxu0 0.0
    %3331 = vmatpush1.msra.mxu0 0.0
    %3332 = vmatprep.subr.mxu0 0.0
    %3333 = vmatpush1.msra.mxu0 0.0
    %3334 = vmatprep.subr.mxu0 0.0
    %3335 = vmatpush1.msra.mxu0 0.0
    %3336 = vmatprep.mubr.f32.mxu0 0.0
    %3337 = vmatmul.mubr.f32.gmra.mrb[0].mxu0 %v3270
    %v3338 = vpop.f32.mrb[0].mxu0
    %v3339 = vadd.f32 0.0, %v3338
    %v3340 = vpop.f32.mrb[0].mxu0
    %3341 = vdwg.mxu0
    %3342 = vrot.lane.b32.xlu0 %v2171, 64
    %v3343 = vpop.permute.xlu0 %3342
    %v3346 = vsel %vm336, %v2884, 0
    %3348 = vmatprep.subr.mxu0 0.0
    %3349 = vmatpush1.msra.mxu0 %v3343
    %3350 = vmatprep.subr.mxu0 0.0
    %3351 = vmatpush1.msra.mxu0 0.0
    %3352 = vmatprep.subr.mxu0 0.0
    %3353 = vmatpush1.msra.mxu0 0.0
    %3354 = vmatprep.subr.mxu0 0.0
    %3355 = vmatpush1.msra.mxu0 0.0
    %3356 = vmatprep.subr.mxu0 0.0
    %3357 = vmatpush1.msra.mxu0 0.0
    %3358 = vmatprep.subr.mxu0 0.0
    %3359 = vmatpush1.msra.mxu0 0.0
    %3360 = vmatprep.subr.mxu0 0.0
    %3361 = vmatpush1.msra.mxu0 0.0
    %3362 = vmatprep.subr.mxu0 0.0
    %3363 = vmatpush1.msra.mxu0 0.0
    %3364 = vmatprep.subr.mxu0 0.0
    %3365 = vmatpush1.msra.mxu0 0.0
    %3366 = vmatprep.subr.mxu0 0.0
    %3367 = vmatpush1.msra.mxu0 0.0
    %3368 = vmatprep.subr.mxu0 0.0
    %3369 = vmatpush1.msra.mxu0 0.0
    %3370 = vmatprep.subr.mxu0 0.0
    %3371 = vmatpush1.msra.mxu0 0.0
    %3372 = vmatprep.subr.mxu0 0.0
    %3373 = vmatpush1.msra.mxu0 0.0
    %3374 = vmatprep.subr.mxu0 0.0
    %3375 = vmatpush1.msra.mxu0 0.0
    %3376 = vmatprep.subr.mxu0 0.0
    %3377 = vmatpush1.msra.mxu0 0.0
    %3378 = vmatprep.subr.mxu0 0.0
    %3379 = vmatpush1.msra.mxu0 0.0
    %3380 = vmatprep.subr.mxu0 0.0
    %3381 = vmatpush1.msra.mxu0 0.0
    %3382 = vmatprep.subr.mxu0 0.0
    %3383 = vmatpush1.msra.mxu0 0.0
    %3384 = vmatprep.subr.mxu0 0.0
    %3385 = vmatpush1.msra.mxu0 0.0
    %3386 = vmatprep.subr.mxu0 0.0
    %3387 = vmatpush1.msra.mxu0 0.0
    %3388 = vmatprep.subr.mxu0 0.0
    %3389 = vmatpush1.msra.mxu0 0.0
    %3390 = vmatprep.subr.mxu0 0.0
    %3391 = vmatpush1.msra.mxu0 0.0
    %3392 = vmatprep.subr.mxu0 0.0
    %3393 = vmatpush1.msra.mxu0 0.0
    %3394 = vmatprep.subr.mxu0 0.0
    %3395 = vmatpush1.msra.mxu0 0.0
    %3396 = vmatprep.subr.mxu0 0.0
    %3397 = vmatpush1.msra.mxu0 0.0
    %3398 = vmatprep.subr.mxu0 0.0
    %3399 = vmatpush1.msra.mxu0 0.0
    %3400 = vmatprep.subr.mxu0 0.0
    %3401 = vmatpush1.msra.mxu0 0.0
    %3402 = vmatprep.subr.mxu0 0.0
    %3403 = vmatpush1.msra.mxu0 0.0
    %3404 = vmatprep.subr.mxu0 0.0
    %3405 = vmatpush1.msra.mxu0 0.0
    %3406 = vmatprep.subr.mxu0 0.0
    %3407 = vmatpush1.msra.mxu0 0.0
    %3408 = vmatprep.subr.mxu0 0.0
    %3409 = vmatpush1.msra.mxu0 0.0
    %3410 = vmatprep.subr.mxu0 0.0
    %3411 = vmatpush1.msra.mxu0 0.0
    %3412 = vmatprep.mubr.f32.mxu0 0.0
    %3413 = vmatmul.mubr.f32.gmra.mrb[0].mxu0 %v3346
    %v3414 = vpop.f32.mrb[0].mxu0
    %v3415 = vadd.f32 0.0, %v3414
    %v3416 = vpop.f32.mrb[0].mxu0
    %3417 = vdwg.mxu0
    %3418 = vrot.lane.b32.xlu0 %v2173, 64
    %v3419 = vpop.permute.xlu0 %3418
    %v3422 = vsel %vm336, %v2885, 0
    %3424 = vmatprep.subr.mxu0 0.0
    %3425 = vmatpush1.msra.mxu0 %v3419
    %3426 = vmatprep.subr.mxu0 0.0
    %3427 = vmatpush1.msra.mxu0 0.0
    %3428 = vmatprep.subr.mxu0 0.0
    %3429 = vmatpush1.msra.mxu0 0.0
    %3430 = vmatprep.subr.mxu0 0.0
    %3431 = vmatpush1.msra.mxu0 0.0
    %3432 = vmatprep.subr.mxu0 0.0
    %3433 = vmatpush1.msra.mxu0 0.0
    %3434 = vmatprep.subr.mxu0 0.0
    %3435 = vmatpush1.msra.mxu0 0.0
    %3436 = vmatprep.subr.mxu0 0.0
    %3437 = vmatpush1.msra.mxu0 0.0
    %3438 = vmatprep.subr.mxu0 0.0
    %3439 = vmatpush1.msra.mxu0 0.0
    %3440 = vmatprep.subr.mxu0 0.0
    %3441 = vmatpush1.msra.mxu0 0.0
    %3442 = vmatprep.subr.mxu0 0.0
    %3443 = vmatpush1.msra.mxu0 0.0
    %3444 = vmatprep.subr.mxu0 0.0
    %3445 = vmatpush1.msra.mxu0 0.0
    %3446 = vmatprep.subr.mxu0 0.0
    %3447 = vmatpush1.msra.mxu0 0.0
    %3448 = vmatprep.subr.mxu0 0.0
    %3449 = vmatpush1.msra.mxu0 0.0
    %3450 = vmatprep.subr.mxu0 0.0
    %3451 = vmatpush1.msra.mxu0 0.0
    %3452 = vmatprep.subr.mxu0 0.0
    %3453 = vmatpush1.msra.mxu0 0.0
    %3454 = vmatprep.subr.mxu0 0.0
    %3455 = vmatpush1.msra.mxu0 0.0
    %3456 = vmatprep.subr.mxu0 0.0
    %3457 = vmatpush1.msra.mxu0 0.0
    %3458 = vmatprep.subr.mxu0 0.0
    %3459 = vmatpush1.msra.mxu0 0.0
    %3460 = vmatprep.subr.mxu0 0.0
    %3461 = vmatpush1.msra.mxu0 0.0
    %3462 = vmatprep.subr.mxu0 0.0
    %3463 = vmatpush1.msra.mxu0 0.0
    %3464 = vmatprep.subr.mxu0 0.0
    %3465 = vmatpush1.msra.mxu0 0.0
    %3466 = vmatprep.subr.mxu0 0.0
    %3467 = vmatpush1.msra.mxu0 0.0
    %3468 = vmatprep.subr.mxu0 0.0
    %3469 = vmatpush1.msra.mxu0 0.0
    %3470 = vmatprep.subr.mxu0 0.0
    %3471 = vmatpush1.msra.mxu0 0.0
    %3472 = vmatprep.subr.mxu0 0.0
    %3473 = vmatpush1.msra.mxu0 0.0
    %3474 = vmatprep.subr.mxu0 0.0
    %3475 = vmatpush1.msra.mxu0 0.0
    %3476 = vmatprep.subr.mxu0 0.0
    %3477 = vmatpush1.msra.mxu0 0.0
    %3478 = vmatprep.subr.mxu0 0.0
    %3479 = vmatpush1.msra.mxu0 0.0
    %3480 = vmatprep.subr.mxu0 0.0
    %3481 = vmatpush1.msra.mxu0 0.0
    %3482 = vmatprep.subr.mxu0 0.0
    %3483 = vmatpush1.msra.mxu0 0.0
    %3484 = vmatprep.subr.mxu0 0.0
    %3485 = vmatpush1.msra.mxu0 0.0
    %3486 = vmatprep.subr.mxu0 0.0
    %3487 = vmatpush1.msra.mxu0 0.0
    %3488 = vmatprep.mubr.f32.mxu0 0.0
    %3489 = vmatmul.mubr.f32.gmra.mrb[0].mxu0 %v3422
    %v3490 = vpop.f32.mrb[0].mxu0
    %v3491 = vadd.f32 0.0, %v3490
    %v3492 = vpop.f32.mrb[0].mxu0
    %3493 = vdwg.mxu0
    %3496 = vrot.lane.b32.xlu0 %v3111, 8
    %v3497 = vpop.permute.xlu0 %3496
    %3498 = vrot.lane.b32.xlu0 %v3187, 8
    %v3499 = vpop.permute.xlu0 %3498
    %3504 = vrot.lane.b32.xlu0 %v3263, 16
    %v3505 = vpop.permute.xlu0 %3504
    %3506 = vrot.lane.b32.xlu0 %v3339, 16
    %v3507 = vpop.permute.xlu0 %3506
    %3512 = vrot.lane.b32.xlu0 %v3415, 24
    %v3513 = vpop.permute.xlu0 %3512
    %3514 = vrot.lane.b32.xlu0 %v3491, 24
    %v3515 = vpop.permute.xlu0 %3514
    %v3518 = vsel %vm336, %v2959, %v3497
    %v3519 = vsel %vm336, %v3035, %v3499
    %v3520 = vsel %vm1681, %v3518, %v3505
    %v3521 = vsel %vm1681, %v3519, %v3507
    %v3522 = vsel %vm1684, %v3520, %v3513
    %v3523 = vsel %vm1684, %v3521, %v3515
    %s3524 = scalar_lea.vmem %s8, 32
    %v3525 = vld [vmem:[%s3524] sm:$0xff]
    %v3526 = vld [vmem:[%s3524 + $0x8] sm:$0xff]
    %v3527 = vld [vmem:[%s3524 + $0x10] sm:$0xff]
    %v3528 = vld [vmem:[%s3524 + $0x18] sm:$0xff]
    %v3530 = vsel %vm170, %v3522, 0
    %v3533 = vsel %vm170, %v3523, 0
    %3535 = vmatprep.subr.mxu0 0.0
    %3536 = vmatpush1.msra.mxu0 %v3525
    %3537 = vmatprep.subr.mxu0 0.0
    %3538 = vmatpush1.msra.mxu0 %v3526
    %3539 = vmatprep.subr.mxu0 0.0
    %3540 = vmatpush1.msra.mxu0 %v3527
    %3541 = vmatprep.subr.mxu0 0.0
    %3542 = vmatpush1.msra.mxu0 %v3528
    %3543 = vmatprep.subr.mxu0 0.0
    %3544 = vmatpush1.msra.mxu0 0.0
    %3545 = vmatprep.subr.mxu0 0.0
    %3546 = vmatpush1.msra.mxu0 0.0
    %3547 = vmatprep.subr.mxu0 0.0
    %3548 = vmatpush1.msra.mxu0 0.0
    %3549 = vmatprep.subr.mxu0 0.0
    %3550 = vmatpush1.msra.mxu0 0.0
    %3551 = vmatprep.subr.mxu0 0.0
    %3552 = vmatpush1.msra.mxu0 0.0
    %3553 = vmatprep.subr.mxu0 0.0
    %3554 = vmatpush1.msra.mxu0 0.0
    %3555 = vmatprep.subr.mxu0 0.0
    %3556 = vmatpush1.msra.mxu0 0.0
    %3557 = vmatprep.subr.mxu0 0.0
    %3558 = vmatpush1.msra.mxu0 0.0
    %3559 = vmatprep.subr.mxu0 0.0
    %3560 = vmatpush1.msra.mxu0 0.0
    %3561 = vmatprep.subr.mxu0 0.0
    %3562 = vmatpush1.msra.mxu0 0.0
    %3563 = vmatprep.subr.mxu0 0.0
    %3564 = vmatpush1.msra.mxu0 0.0
    %3565 = vmatprep.subr.mxu0 0.0
    %3566 = vmatpush1.msra.mxu0 0.0
    %3567 = vmatprep.subr.mxu0 0.0
    %3568 = vmatpush1.msra.mxu0 0.0
    %3569 = vmatprep.subr.mxu0 0.0
    %3570 = vmatpush1.msra.mxu0 0.0
    %3571 = vmatprep.subr.mxu0 0.0
    %3572 = vmatpush1.msra.mxu0 0.0
    %3573 = vmatprep.subr.mxu0 0.0
    %3574 = vmatpush1.msra.mxu0 0.0
    %3575 = vmatprep.subr.mxu0 0.0
    %3576 = vmatpush1.msra.mxu0 0.0
    %3577 = vmatprep.subr.mxu0 0.0
    %3578 = vmatpush1.msra.mxu0 0.0
    %3579 = vmatprep.subr.mxu0 0.0
    %3580 = vmatpush1.msra.mxu0 0.0
    %3581 = vmatprep.subr.mxu0 0.0
    %3582 = vmatpush1.msra.mxu0 0.0
    %3583 = vmatprep.subr.mxu0 0.0
    %3584 = vmatpush1.msra.mxu0 0.0
    %3585 = vmatprep.subr.mxu0 0.0
    %3586 = vmatpush1.msra.mxu0 0.0
    %3587 = vmatprep.subr.mxu0 0.0
    %3588 = vmatpush1.msra.mxu0 0.0
    %3589 = vmatprep.subr.mxu0 0.0
    %3590 = vmatpush1.msra.mxu0 0.0
    %3591 = vmatprep.subr.mxu0 0.0
    %3592 = vmatpush1.msra.mxu0 0.0
    %3593 = vmatprep.subr.mxu0 0.0
    %3594 = vmatpush1.msra.mxu0 0.0
    %3595 = vmatprep.subr.mxu0 0.0
    %3596 = vmatpush1.msra.mxu0 0.0
    %3597 = vmatprep.subr.mxu0 0.0
    %3598 = vmatpush1.msra.mxu0 0.0
    %3599 = vmatprep.mubr.f32.mxu0 0.0
    %3600 = vmatmul.mubr.f32.gmra.mrb[0].mxu0 %v3530
    %v3601 = vpop.f32.mrb[0].mxu0
    %v3602 = vadd.f32 0.0, %v3601
    %v3603 = vpop.f32.mrb[0].mxu0
    %3604 = vmatprep.mubr.f32.mxu0 0.0
    %3605 = vmatmul.mubr.f32.gmra.mrb[0].mxu0 %v3533
    %v3606 = vpop.f32.mrb[0].mxu0
    %v3607 = vadd.f32 0.0, %v3606
    %v3608 = vpop.f32.mrb[0].mxu0
    %3609 = vdwg.mxu0
    %v3610 = vadd.f32 %v2026, %v3602
    %v3611 = vadd.f32 %v2027, %v3607
    %s3612 = scalar_lea.vmem %s9, 1
    %v3613 = vld [vmem:[%s3612] sm:$0x1]
    %s3614 = scalar_lea.vmem %s10, 1
    %v3615 = vld [vmem:[%s3614] sm:$0x1]
    %v3616 = vsel %vm170, %v3610, 0.0
    %3617 = vadd.xlane.f32.xlu0 %v3616
    %v3618 = vpop.xlane.xlu0 %3617
    %v3619 = vsel %vm170, %v3611, 0.0
    %3620 = vadd.xlane.f32.xlu0 %v3619
    %v3621 = vpop.xlane.xlu0 %3620
    %v3622 = vmul.f32 %v3618, %v198
    %v3623 = vmul.f32 %v3621, %v198
    %v3624 = vsub.f32 %v3610, %v3622
    %v3625 = vsub.f32 %v3611, %v3623
    %v3626 = vmul.f32 %v3624, %v3624
    %v3627 = vmul.f32 %v3625, %v3625
    %v3628 = vsel %vm170, %v3626, 0.0
    %3629 = vadd.xlane.f32.xlu0 %v3628
    %v3630 = vpop.xlane.xlu0 %3629
    %v3631 = vsel %vm170, %v3627, 0.0
    %3632 = vadd.xlane.f32.xlu0 %v3631
    %v3633 = vpop.xlane.xlu0 %3632
    %v3634 = vmul.f32 %v3630, %v198
    %v3635 = vmul.f32 %v3633, %v198
    %v3636 = vadd.f32 %v3634, 1e-05
    %v3637 = vadd.f32 %v3635, 1e-05
    %v3638 = vrsqrt.pop %v3636
    %v3639 = vrsqrt.pop %v3637
    %v3640 = vmul.f32 %v3624, %v3638
    %v3641 = vmul.f32 %v3625, %v3639
    %v3643 = vlaneseq
    %v3644 = vshrl.u32 %v3643, 7
    %v3645 = vsub.s32 0, %v3644
    %v3646 = vrot.slane %v3613, %v3645
    %v3648 = vmul.f32 %v3640, %v3646
    %v3649 = vmul.f32 %v3641, %v3646
    %v3651 = vlaneseq
    %v3652 = vshrl.u32 %v3651, 7
    %v3653 = vsub.s32 0, %v3652
    %v3654 = vrot.slane %v3615, %v3653
    %v3656 = vadd.f32 %v3648, %v3654
    %v3657 = vadd.f32 %v3649, %v3654
    %s3658 = scalar_lea.vmem %s11, 32
    %v3659 = vld [vmem:[%s3658] sm:$0xff]
    %v3660 = vld [vmem:[%s3658 + $0x8] sm:$0xff]
    %v3661 = vld [vmem:[%s3658 + $0x10] sm:$0xff]
    %v3662 = vld [vmem:[%s3658 + $0x18] sm:$0xff]
    %s3663 = scalar_lea.vmem %s12, 1
    %v3664 = vld [vmem:[%s3663] sm:$0x1]
    %v3666 = vlaneseq
    %v3667 = vshrl.u32 %v3666, 7
    %v3668 = vsub.s32 0, %v3667
    %v3669 = vrot.slane %v3664, %v3668
    %v3672 = vsel %vm170, %v3656, 0
    %v3675 = vsel %vm170, %v3657, 0
    %3677 = vmatprep.subr.mxu0 0.0
    %3678 = vmatpush1.msra.mxu0 %v3659
    %3679 = vmatprep.subr.mxu0 0.0
    %3680 = vmatpush1.msra.mxu0 %v3660
    %3681 = vmatprep.subr.mxu0 0.0
    %3682 = vmatpush1.msra.mxu0 %v3661
    %3683 = vmatprep.subr.mxu0 0.0
    %3684 = vmatpush1.msra.mxu0 %v3662
    %3685 = vmatprep.subr.mxu0 0.0
    %3686 = vmatpush1.msra.mxu0 0.0
    %3687 = vmatprep.subr.mxu0 0.0
    %3688 = vmatpush1.msra.mxu0 0.0
    %3689 = vmatprep.subr.mxu0 0.0
    %3690 = vmatpush1.msra.mxu0 0.0
    %3691 = vmatprep.subr.mxu0 0.0
    %3692 = vmatpush1.msra.mxu0 0.0
    %3693 = vmatprep.subr.mxu0 0.0
    %3694 = vmatpush1.msra.mxu0 0.0
    %3695 = vmatprep.subr.mxu0 0.0
    %3696 = vmatpush1.msra.mxu0 0.0
    %3697 = vmatprep.subr.mxu0 0.0
    %3698 = vmatpush1.msra.mxu0 0.0
    %3699 = vmatprep.subr.mxu0 0.0
    %3700 = vmatpush1.msra.mxu0 0.0
    %3701 = vmatprep.subr.mxu0 0.0
    %3702 = vmatpush1.msra.mxu0 0.0
    %3703 = vmatprep.subr.mxu0 0.0
    %3704 = vmatpush1.msra.mxu0 0.0
    %3705 = vmatprep.subr.mxu0 0.0
    %3706 = vmatpush1.msra.mxu0 0.0
    %3707 = vmatprep.subr.mxu0 0.0
    %3708 = vmatpush1.msra.mxu0 0.0
    %3709 = vmatprep.subr.mxu0 0.0
    %3710 = vmatpush1.msra.mxu0 0.0
    %3711 = vmatprep.subr.mxu0 0.0
    %3712 = vmatpush1.msra.mxu0 0.0
    %3713 = vmatprep.subr.mxu0 0.0
    %3714 = vmatpush1.msra.mxu0 0.0
    %3715 = vmatprep.subr.mxu0 0.0
    %3716 = vmatpush1.msra.mxu0 0.0
    %3717 = vmatprep.subr.mxu0 0.0
    %3718 = vmatpush1.msra.mxu0 0.0
    %3719 = vmatprep.subr.mxu0 0.0
    %3720 = vmatpush1.msra.mxu0 0.0
    %3721 = vmatprep.subr.mxu0 0.0
    %3722 = vmatpush1.msra.mxu0 0.0
    %3723 = vmatprep.subr.mxu0 0.0
    %3724 = vmatpush1.msra.mxu0 0.0
    %3725 = vmatprep.subr.mxu0 0.0
    %3726 = vmatpush1.msra.mxu0 0.0
    %3727 = vmatprep.subr.mxu0 0.0
    %3728 = vmatpush1.msra.mxu0 0.0
    %3729 = vmatprep.subr.mxu0 0.0
    %3730 = vmatpush1.msra.mxu0 0.0
    %3731 = vmatprep.subr.mxu0 0.0
    %3732 = vmatpush1.msra.mxu0 0.0
    %3733 = vmatprep.subr.mxu0 0.0
    %3734 = vmatpush1.msra.mxu0 0.0
    %3735 = vmatprep.subr.mxu0 0.0
    %3736 = vmatpush1.msra.mxu0 0.0
    %3737 = vmatprep.subr.mxu0 0.0
    %3738 = vmatpush1.msra.mxu0 0.0
    %3739 = vmatprep.subr.mxu0 0.0
    %3740 = vmatpush1.msra.mxu0 0.0
    %3741 = vmatprep.mubr.f32.mxu0 0.0
    %3742 = vmatmul.mubr.f32.gmra.mrb[0].mxu0 %v3672
    %v3743 = vpop.f32.mrb[0].mxu0
    %v3744 = vadd.f32 %v3669, %v3743
    %v3745 = vpop.f32.mrb[0].mxu0
    %3746 = vmatprep.mubr.f32.mxu0 0.0
    %3747 = vmatmul.mubr.f32.gmra.mrb[0].mxu0 %v3675
    %v3748 = vpop.f32.mrb[0].mxu0
    %v3749 = vadd.f32 %v3669, %v3748
    %v3750 = vpop.f32.mrb[0].mxu0
    %3751 = vdwg.mxu0
    %v3752 = vmul.f32 %v3744, %v3744
    %v3753 = vmul.f32 %v3749, %v3749
    %v3754 = vmul.f32 %v3744, %v3752
    %v3755 = vmul.f32 %v3749, %v3753
    %v3756 = vmul.f32 %v3754, 0.044715
    %v3757 = vmul.f32 %v3755, 0.044715
    %v3758 = vadd.f32 %v3744, %v3756
    %v3759 = vadd.f32 %v3749, %v3757
    %v3760 = vmul.f32 %v3758, 0.7978846
    %v3761 = vmul.f32 %v3759, 0.7978846
    %v3762 = vtanh.pop %v3760
    %v3763 = vtanh.pop %v3761
    %v3764 = vadd.f32 %v3762, 1.0
    %v3765 = vadd.f32 %v3763, 1.0
    %v3766 = vmul.f32 %v3764, 0.5
    %v3767 = vmul.f32 %v3765, 0.5
    %v3768 = vmul.f32 %v3744, %v3766
    %v3769 = vmul.f32 %v3749, %v3767
    %s3770 = scalar_lea.vmem %s13, 64
    %v3771 = vld [vmem:[%s3770] sm:$0xff]
    %v3772 = vld [vmem:[%s3770 + $0x8] sm:$0xff]
    %v3773 = vld [vmem:[%s3770 + $0x10] sm:$0xff]
    %v3774 = vld [vmem:[%s3770 + $0x18] sm:$0xff]
    %v3775 = vld [vmem:[%s3770 + $0x20] sm:$0xff]
    %v3776 = vld [vmem:[%s3770 + $0x28] sm:$0xff]
    %v3777 = vld [vmem:[%s3770 + $0x30] sm:$0xff]
    %v3778 = vld [vmem:[%s3770 + $0x38] sm:$0xff]
    %v3780 = vsel %vm96, %v3768, 0
    %v3783 = vsel %vm96, %v3769, 0
    %3785 = vmatprep.subr.mxu0 0.0
    %3786 = vmatpush1.msra.mxu0 %v3771
    %3787 = vmatprep.subr.mxu0 0.0
    %3788 = vmatpush1.msra.mxu0 %v3772
    %3789 = vmatprep.subr.mxu0 0.0
    %3790 = vmatpush1.msra.mxu0 %v3773
    %3791 = vmatprep.subr.mxu0 0.0
    %3792 = vmatpush1.msra.mxu0 %v3774
    %3793 = vmatprep.subr.mxu0 0.0
    %3794 = vmatpush1.msra.mxu0 %v3775
    %3795 = vmatprep.subr.mxu0 0.0
    %3796 = vmatpush1.msra.mxu0 %v3776
    %3797 = vmatprep.subr.mxu0 0.0
    %3798 = vmatpush1.msra.mxu0 %v3777
    %3799 = vmatprep.subr.mxu0 0.0
    %3800 = vmatpush1.msra.mxu0 %v3778
    %3801 = vmatprep.subr.mxu0 0.0
    %3802 = vmatpush1.msra.mxu0 0.0
    %3803 = vmatprep.subr.mxu0 0.0
    %3804 = vmatpush1.msra.mxu0 0.0
    %3805 = vmatprep.subr.mxu0 0.0
    %3806 = vmatpush1.msra.mxu0 0.0
    %3807 = vmatprep.subr.mxu0 0.0
    %3808 = vmatpush1.msra.mxu0 0.0
    %3809 = vmatprep.subr.mxu0 0.0
    %3810 = vmatpush1.msra.mxu0 0.0
    %3811 = vmatprep.subr.mxu0 0.0
    %3812 = vmatpush1.msra.mxu0 0.0
    %3813 = vmatprep.subr.mxu0 0.0
    %3814 = vmatpush1.msra.mxu0 0.0
    %3815 = vmatprep.subr.mxu0 0.0
    %3816 = vmatpush1.msra.mxu0 0.0
    %3817 = vmatprep.subr.mxu0 0.0
    %3818 = vmatpush1.msra.mxu0 0.0
    %3819 = vmatprep.subr.mxu0 0.0
    %3820 = vmatpush1.msra.mxu0 0.0
    %3821 = vmatprep.subr.mxu0 0.0
    %3822 = vmatpush1.msra.mxu0 0.0
    %3823 = vmatprep.subr.mxu0 0.0
    %3824 = vmatpush1.msra.mxu0 0.0
    %3825 = vmatprep.subr.mxu0 0.0
    %3826 = vmatpush1.msra.mxu0 0.0
    %3827 = vmatprep.subr.mxu0 0.0
    %3828 = vmatpush1.msra.mxu0 0.0
    %3829 = vmatprep.subr.mxu0 0.0
    %3830 = vmatpush1.msra.mxu0 0.0
    %3831 = vmatprep.subr.mxu0 0.0
    %3832 = vmatpush1.msra.mxu0 0.0
    %3833 = vmatprep.subr.mxu0 0.0
    %3834 = vmatpush1.msra.mxu0 0.0
    %3835 = vmatprep.subr.mxu0 0.0
    %3836 = vmatpush1.msra.mxu0 0.0
    %3837 = vmatprep.subr.mxu0 0.0
    %3838 = vmatpush1.msra.mxu0 0.0
    %3839 = vmatprep.subr.mxu0 0.0
    %3840 = vmatpush1.msra.mxu0 0.0
    %3841 = vmatprep.subr.mxu0 0.0
    %3842 = vmatpush1.msra.mxu0 0.0
    %3843 = vmatprep.subr.mxu0 0.0
    %3844 = vmatpush1.msra.mxu0 0.0
    %3845 = vmatprep.subr.mxu0 0.0
    %3846 = vmatpush1.msra.mxu0 0.0
    %3847 = vmatprep.subr.mxu0 0.0
    %3848 = vmatpush1.msra.mxu0 0.0
    %3849 = vmatprep.mubr.f32.mxu0 0.0
    %3850 = vmatmul.mubr.f32.gmra.mrb[0].mxu0 %v3780
    %v3851 = vpop.f32.mrb[0].mxu0
    %v3852 = vadd.f32 0.0, %v3851
    %v3853 = vpop.f32.mrb[0].mxu0
    %3854 = vmatprep.mubr.f32.mxu0 0.0
    %3855 = vmatmul.mubr.f32.gmra.mrb[0].mxu0 %v3783
    %v3856 = vpop.f32.mrb[0].mxu0
    %v3857 = vadd.f32 0.0, %v3856
    %v3858 = vpop.f32.mrb[0].mxu0
    %3859 = vdwg.mxu0
    %v3860 = vadd.f32 %v3610, %v3852
    %v3861 = vadd.f32 %v3611, %v3857
    %s3862 = scalar_lea.vmem %s14, 1
    %v3863 = vld [vmem:[%s3862] sm:$0x1]
    %v3865 = vlaneseq
    %v3866 = vshrl.u32 %v3865, 7
    %v3867 = vsub.s32 0, %v3866
    %v3868 = vrot.slane %v3863, %v3867
    %v3870 = vadd.f32 %v3860, %v3868
    %v3871 = vadd.f32 %v3861, %v3868
    %v3872 = vld [vmem:[%s15] sm:$0x1]
    %v3873 = vld [vmem:[%s16] sm:$0x1]
    %v3874 = vsel %vm170, %v3870, 0.0
    %3875 = vadd.xlane.f32.xlu0 %v3874
    %v3876 = vpop.xlane.xlu0 %3875
    %v3877 = vsel %vm170, %v3871, 0.0
    %3878 = vadd.xlane.f32.xlu0 %v3877
    %v3879 = vpop.xlane.xlu0 %3878
    %v3880 = vmul.f32 %v3876, %v198
    %v3881 = vmul.f32 %v3879, %v198
    %v3882 = vsub.f32 %v3870, %v3880
    %v3883 = vsub.f32 %v3871, %v3881
    %v3884 = vmul.f32 %v3882, %v3882
    %v3885 = vmul.f32 %v3883, %v3883
    %v3886 = vsel %vm170, %v3884, 0.0
    %3887 = vadd.xlane.f32.xlu0 %v3886
    %v3888 = vpop.xlane.xlu0 %3887
    %v3889 = vsel %vm170, %v3885, 0.0
    %3890 = vadd.xlane.f32.xlu0 %v3889
    %v3891 = vpop.xlane.xlu0 %3890
    %v3892 = vmul.f32 %v3888, %v198
    %v3893 = vmul.f32 %v3891, %v198
    %v3894 = vadd.f32 %v3892, 1e-05
    %v3895 = vadd.f32 %v3893, 1e-05
    %v3896 = vrsqrt.pop %v3894
    %v3897 = vrsqrt.pop %v3895
    %v3898 = vmul.f32 %v3882, %v3896
    %v3899 = vmul.f32 %v3883, %v3897
    %v3901 = vlaneseq
    %v3902 = vshrl.u32 %v3901, 7
    %v3903 = vsub.s32 0, %v3902
    %v3904 = vrot.slane %v3872, %v3903
    %v3906 = vmul.f32 %v3898, %v3904
    %v3907 = vmul.f32 %v3899, %v3904
    %v3909 = vlaneseq
    %v3910 = vshrl.u32 %v3909, 7
    %v3911 = vsub.s32 0, %v3910
    %v3912 = vrot.slane %v3873, %v3911
    %v3914 = vadd.f32 %v3906, %v3912
    %v3915 = vadd.f32 %v3907, %v3912
    %v3916 = vld [vmem:[%s17] sm:$0xff]
    %v3917 = vld [vmem:[%s17 + $0x8] sm:$0xff]
    %v3918 = vld [vmem:[%s17 + $0x10] sm:$0xff]
    %v3919 = vld [vmem:[%s17 + $0x18] sm:$0xff]
    %v3920 = vld [vmem:[%s18] sm:$0x1]
    %v3922 = vlaneseq
    %v3923 = vshrl.u32 %v3922, 7
    %v3924 = vsub.s32 0, %v3923
    %v3925 = vrot.slane %v3920, %v3924
    %v3928 = vsel %vm170, %v3914, 0
    %v3931 = vsel %vm170, %v3915, 0
    %3933 = vmatprep.subr.mxu0 0.0
    %3934 = vmatpush1.msra.mxu0 %v3916
    %3935 = vmatprep.subr.mxu0 0.0
    %3936 = vmatpush1.msra.mxu0 %v3917
    %3937 = vmatprep.subr.mxu0 0.0
    %3938 = vmatpush1.msra.mxu0 %v3918
    %3939 = vmatprep.subr.mxu0 0.0
    %3940 = vmatpush1.msra.mxu0 %v3919
    %3941 = vmatprep.subr.mxu0 0.0
    %3942 = vmatpush1.msra.mxu0 0.0
    %3943 = vmatprep.subr.mxu0 0.0
    %3944 = vmatpush1.msra.mxu0 0.0
    %3945 = vmatprep.subr.mxu0 0.0
    %3946 = vmatpush1.msra.mxu0 0.0
    %3947 = vmatprep.subr.mxu0 0.0
    %3948 = vmatpush1.msra.mxu0 0.0
    %3949 = vmatprep.subr.mxu0 0.0
    %3950 = vmatpush1.msra.mxu0 0.0
    %3951 = vmatprep.subr.mxu0 0.0
    %3952 = vmatpush1.msra.mxu0 0.0
    %3953 = vmatprep.subr.mxu0 0.0
    %3954 = vmatpush1.msra.mxu0 0.0
    %3955 = vmatprep.subr.mxu0 0.0
    %3956 = vmatpush1.msra.mxu0 0.0
    %3957 = vmatprep.subr.mxu0 0.0
    %3958 = vmatpush1.msra.mxu0 0.0
    %3959 = vmatprep.subr.mxu0 0.0
    %3960 = vmatpush1.msra.mxu0 0.0
    %3961 = vmatprep.subr.mxu0 0.0
    %3962 = vmatpush1.msra.mxu0 0.0
    %3963 = vmatprep.subr.mxu0 0.0
    %3964 = vmatpush1.msra.mxu0 0.0
    %3965 = vmatprep.subr.mxu0 0.0
    %3966 = vmatpush1.msra.mxu0 0.0
    %3967 = vmatprep.subr.mxu0 0.0
    %3968 = vmatpush1.msra.mxu0 0.0
    %3969 = vmatprep.subr.mxu0 0.0
    %3970 = vmatpush1.msra.mxu0 0.0
    %3971 = vmatprep.subr.mxu0 0.0
    %3972 = vmatpush1.msra.mxu0 0.0
    %3973 = vmatprep.subr.mxu0 0.0
    %3974 = vmatpush1.msra.mxu0 0.0
    %3975 = vmatprep.subr.mxu0 0.0
    %3976 = vmatpush1.msra.mxu0 0.0
    %3977 = vmatprep.subr.mxu0 0.0
    %3978 = vmatpush1.msra.mxu0 0.0
    %3979 = vmatprep.subr.mxu0 0.0
    %3980 = vmatpush1.msra.mxu0 0.0
    %3981 = vmatprep.subr.mxu0 0.0
    %3982 = vmatpush1.msra.mxu0 0.0
    %3983 = vmatprep.subr.mxu0 0.0
    %3984 = vmatpush1.msra.mxu0 0.0
    %3985 = vmatprep.subr.mxu0 0.0
    %3986 = vmatpush1.msra.mxu0 0.0
    %3987 = vmatprep.subr.mxu0 0.0
    %3988 = vmatpush1.msra.mxu0 0.0
    %3989 = vmatprep.subr.mxu0 0.0
    %3990 = vmatpush1.msra.mxu0 0.0
    %3991 = vmatprep.subr.mxu0 0.0
    %3992 = vmatpush1.msra.mxu0 0.0
    %3993 = vmatprep.subr.mxu0 0.0
    %3994 = vmatpush1.msra.mxu0 0.0
    %3995 = vmatprep.subr.mxu0 0.0
    %3996 = vmatpush1.msra.mxu0 0.0
    %3997 = vmatprep.mubr.f32.mxu0 0.0
    %3998 = vmatmul.mubr.f32.gmra.mrb[0].mxu0 %v3928
    %v3999 = vpop.f32.mrb[0].mxu0
    %v4000 = vadd.f32 %v3925, %v3999
    %v4001 = vpop.f32.mrb[0].mxu0
    %4002 = vmatprep.mubr.f32.mxu0 0.0
    %4003 = vmatmul.mubr.f32.gmra.mrb[0].mxu0 %v3931
    %v4004 = vpop.f32.mrb[0].mxu0
    %v4005 = vadd.f32 %v3925, %v4004
    %v4006 = vpop.f32.mrb[0].mxu0
    %4007 = vdwg.mxu0
    %vm4008 = vcmask 73728
    %4009 = vst.msk [vmem:[#allocation3] sm:$0x1] %vm4008, %v4000
    %4010 = vst.msk [vmem:[#allocation3 + $0x1] sm:$0x1] %vm4008, %v4005
    // Predicated region
    $region78: #{vit_forward.1} parent=1 // pred_check
      _
    $region79: #{vit_forward.1} parent=1 // pred_check_branch
      %4012 = sbr.rel (0) target = $region81
    $region80: #{vit_forward.1} parent=1 // pred_region
      %s4014 = ssub.s32 32, 32
      %4015 = vsyncadd [#allocation4], %s4014
      %s4017 = sshll.u32 [#allocation3], 4
      %s4018 = int_to_ptr.vmem [resolvable:$true] %s4017
      %4020 = dma.vmem_to_hbm [thread:$0]  %s4018, 32, %s19, [#allocation4]
    $region81: #{vit_forward.1} parent=1 // pred_fallthru
      _
    // Predicated region
    $region82: #{vit_forward.1} parent=1 // pred_check
      _
    $region83: #{vit_forward.1} parent=1 // pred_check_branch
      %4022 = sbr.rel (0) target = $region85
    $region84: #{vit_forward.1} parent=1 // pred_region
      %4023 = dma.done [#allocation4], 32
    $region85: #{vit_forward.1} parent=1 // pred_fallthru
      _
    %4024 = vsyncpa [#allocation4], 1

</llo_original>
